<compile_context>
chip_gen: v6e
topology: v6e:2x2x1
jax: 0.10.0
libtpu: 0.0.40
codegen_flags: <defaults>
</compile_context>

<pallas_src>
import functools

import jax
import jax.numpy as jnp
from jax import lax
from jax.experimental import pallas as pl
from jax.experimental.pallas import tpu as pltpu


def _round_up(x, m):
    return (x + m - 1) // m * m


def _enc_gru_kernel(emb_f_ref, emb_b_ref, len_ref, h0_ref,
                    wih_ref, bx_ref, whh_ref, bhn_ref,
                    out_f_ref, out_b_ref, hn_ref,
                    h_scr, gxf_scr, gxb_scr, *, unroll):
    """One (batch-tile, T-chunk) grid step of the fused bidirectional GRU.

    emb_f_ref : (Tc, Bt, Hpad)   forward chunk  (ascending T)   compute dtype
    emb_b_ref : (Tc, Bt, Hpad)   backward chunk (reversed T)    compute dtype
    len_ref   : (Bt, 1) int32    sequence lengths
    h0_ref    : (Bt, 2*Hp)       initial hidden [h0_f | h0_b]   f32
    wih_ref   : (2, Hpad, 3*Hp)  input weights (fwd, bwd)       compute dtype
    bx_ref    : (2, 1, 3*Hp)     b_ih + b_hh(r,z) folded        f32
    whh_ref   : (2, Hp, 3*Hp)    recurrent weights              compute dtype
    bhn_ref   : (2, 1, Hp)       b_hn (stays inside r*(.))      f32
    out_f_ref : (Tc, Bt, Hp)     forward outputs
    out_b_ref : (Tc, Bt, Hp)     backward outputs
    hn_ref    : (2, Bt, Hp)      final hidden
    h_scr     : (Bt, 2*Hp)       running hidden across chunks   f32
    gxf/gxb   : (Tc*Bt, 3*Hp)    per-chunk input projections    f32
    """
    ti = pl.program_id(1)
    nT = pl.num_programs(1)
    Tc, Bt, Hp = out_f_ref.shape
    Hpad = emb_f_ref.shape[2]
    T_total = nT * Tc

    @pl.when(ti == 0)
    def _():
        h_scr[...] = h0_ref[...]

    # ---- Fused input projection for this chunk: one big MXU matmul per dir ----
    wih_f = wih_ref[0]
    wih_b = wih_ref[1]
    cdt = wih_f.dtype
    emb_f2d = emb_f_ref[...].reshape(Tc * Bt, Hpad)
    emb_b2d = emb_b_ref[...].reshape(Tc * Bt, Hpad)
    gxf_scr[...] = jnp.dot(emb_f2d, wih_f,
                           preferred_element_type=jnp.float32) + bx_ref[0]
    gxb_scr[...] = jnp.dot(emb_b2d, wih_b,
                           preferred_element_type=jnp.float32) + bx_ref[1]

    # ---- Loop-invariant loads ----
    lens = len_ref[...]                      # (Bt, 1) int32
    whh_f = whh_ref[0]                       # (Hp, 3Hp)
    whh_b = whh_ref[1]
    bhn_f = bhn_ref[0]                       # (1, Hp)
    bhn_b = bhn_ref[1]

    hf0 = h_scr[:, :Hp]
    hb0 = h_scr[:, Hp:]
    t_base = ti * Tc

    def step(j, carry):
        hf, hb = carry
        tf = t_base + j                      # global forward timestep
        tb = T_total - 1 - tf                # global backward timestep

        row_f = pl.multiple_of(j * Bt, Bt)
        row_b = pl.multiple_of((Tc - 1 - j) * Bt, Bt)
        gxf = gxf_scr[pl.ds(row_f, Bt), :]   # (Bt, 3Hp)
        gxb = gxb_scr[pl.ds(row_b, Bt), :]

        # Small recurrent dots (optionally bf16 operands, f32 accumulate).
        gh_f = jnp.dot(hf.astype(cdt), whh_f, preferred_element_type=jnp.float32)
        gh_b = jnp.dot(hb.astype(cdt), whh_b, preferred_element_type=jnp.float32)

        # PyTorch GRU gate order: r, z, n.
        r_f = jax.nn.sigmoid(gxf[:, :Hp] + gh_f[:, :Hp])
        z_f = jax.nn.sigmoid(gxf[:, Hp:2 * Hp] + gh_f[:, Hp:2 * Hp])
        n_f = jnp.tanh(gxf[:, 2 * Hp:] + r_f * (gh_f[:, 2 * Hp:] + bhn_f))
        hf_new = (1.0 - z_f) * n_f + z_f * hf

        r_b = jax.nn.sigmoid(gxb[:, :Hp] + gh_b[:, :Hp])
        z_b = jax.nn.sigmoid(gxb[:, Hp:2 * Hp] + gh_b[:, Hp:2 * Hp])
        n_b = jnp.tanh(gxb[:, 2 * Hp:] + r_b * (gh_b[:, 2 * Hp:] + bhn_b))
        hb_new = (1.0 - z_b) * n_b + z_b * hb

        m_f = tf < lens                      # (Bt, 1) bool
        m_b = tb < lens

        # pad_packed_sequence: padded positions -> 0.
        out_f_ref[j] = jnp.where(m_f, hf_new, 0.0)
        out_b_ref[Tc - 1 - j] = jnp.where(m_b, hb_new, 0.0)

        # packed-sequence: hidden frozen past the sequence end.
        hf = jnp.where(m_f, hf_new, hf)
        hb = jnp.where(m_b, hb_new, hb)
        return (hf, hb)

    hf_fin, hb_fin = lax.fori_loop(0, Tc, step, (hf0, hb0), unroll=unroll)

    h_scr[:, :Hp] = hf_fin
    h_scr[:, Hp:] = hb_fin
    hn_ref[0] = hf_fin
    hn_ref[1] = hb_fin


def encoder_forward(params, input_ids, hidden, lengths, *,
                    compute_dtype=jnp.float32, t_chunk=8, b_chunk=None):
    """Mirrors Encoder.forward (eval mode).

    input_ids: (B, T) int32; hidden: (2, B, Hh); lengths: Python sequence of
    static ints, sorted descending (as pack_padded_sequence requires).
    compute_dtype: dtype of MXU operands (bf16 recommended on v6e/v7x);
    state / gate math / accumulation stay f32.
    """
    lengths_list = [int(l) for l in lengths]   # must be static Python ints
    t_out = max(lengths_list)

    B, T = input_ids.shape
    H = params["embedding"].shape[1]
    Hh = H // 2

    # ---- Padding for lane-dense slices/stores ----
    Hp = _round_up(Hh, 128)          # half-hidden, lane aligned
    Hpad = _round_up(H, 128)         # embedding/contraction dim, lane aligned
    Bp = _round_up(B, 8)
    Bt = Bp if b_chunk is None else _round_up(min(int(b_chunk), Bp), 8)
    Bp = _round_up(Bp, Bt)
    Tc = max(1, min(int(t_chunk), T))
    T_pad = _round_up(T, Tc)
    nB, nT = Bp // Bt, T_pad // Tc

    # ---- Embedding lookup (glue); emb_drop identity in eval mode ----
    emb = params["embedding"][input_ids].astype(jnp.float32)        # (B, T, H)
    emb_t = jnp.transpose(emb, (1, 0, 2))                           # (T, B, H)
    emb_p = jnp.zeros((T_pad, Bp, Hpad), compute_dtype)
    emb_p = emb_p.at[:T, :B, :H].set(emb_t.astype(compute_dtype))

    # ---- Gate-block-padded weights: gate g occupies cols [g*Hp, g*Hp+Hh) ----
    def pad_gate_cols(w, rows_to, rows_from):
        out = jnp.zeros((rows_to, 3 * Hp), jnp.float32)
        for g in range(3):
            out = out.at[:rows_from, g * Hp:g * Hp + Hh].set(
                w[:, g * Hh:(g + 1) * Hh])
        return out

    wih = jnp.stack([pad_gate_cols(params["wih_f"], Hpad, H),
                     pad_gate_cols(params["wih_b"], Hpad, H)]).astype(compute_dtype)
    whh = jnp.stack([pad_gate_cols(params["whh_f"], Hp, Hh),
                     pad_gate_cols(params["whh_b"], Hp, Hh)]).astype(compute_dtype)

    # Fold b_ih (all gates) + b_hh (r,z) into the gx bias; keep b_hn separate.
    def pad_bias(bih, bhh):
        bx = jnp.zeros((1, 3 * Hp), jnp.float32)
        bx = bx.at[:, 0:Hh].set(bih[:, 0:Hh] + bhh[:, 0:Hh])                    # r
        bx = bx.at[:, Hp:Hp + Hh].set(bih[:, Hh:2 * Hh] + bhh[:, Hh:2 * Hh])    # z
        bx = bx.at[:, 2 * Hp:2 * Hp + Hh].set(bih[:, 2 * Hh:3 * Hh])            # n (input)
        bhn = jnp.zeros((1, Hp), jnp.float32).at[:, :Hh].set(bhh[:, 2 * Hh:3 * Hh])
        return bx, bhn

    bx_f, bhn_f = pad_bias(params["bih_f"], params["bhh_f"])
    bx_b, bhn_b = pad_bias(params["bih_b"], params["bhh_b"])
    bx = jnp.stack([bx_f, bx_b])      # (2, 1, 3Hp)
    bhn = jnp.stack([bhn_f, bhn_b])   # (2, 1, Hp)

    h0 = jnp.zeros((Bp, 2 * Hp), jnp.float32)
    h0 = h0.at[:B, :Hh].set(hidden[0])
    h0 = h0.at[:B, Hp:Hp + Hh].set(hidden[1])

    lens = jnp.zeros((Bp, 1), jnp.int32)
    lens = lens.at[:B, 0].set(jnp.asarray(lengths_list, jnp.int32))

    # ---- Size-dependent unroll ----
    if Bt * Hp <= 4096:
        unroll = 4
    elif Bt * Hp <= 32768:
        unroll = 2
    else:
        unroll = 1
    unroll = max(1, min(unroll, Tc))

    # ---- VMEM budget (double-buffered blocks + weights + scratch) ----
    esz = jnp.dtype(compute_dtype).itemsize
    w_bytes = (2 * Hpad * 3 * Hp + 2 * Hp * 3 * Hp) * esz + (2 * 3 * Hp + 2 * Hp) * 4
    blk_bytes = (2 * Tc * Bt * Hpad * esz       # emb fwd + bwd
                 + 2 * Tc * Bt * Hp * 4         # out fwd + bwd
                 + Bt * (2 * Hp + 128) * 4      # h0 + lengths (lane padded)
                 + 2 * Bt * Hp * 4)             # hn
    scr_bytes = Bt * 2 * Hp * 4 + 2 * Tc * Bt * 3 * Hp * 4
    vmem_need = 2 * (w_bytes + blk_bytes) + scr_bytes
    vmem_limit = int(min(max(2 * vmem_need, 32 * 1024 * 1024), 64 * 1024 * 1024))

    const3 = lambda bi, ti: (0, 0, 0)
    in_specs = [
        pl.BlockSpec((Tc, Bt, Hpad), lambda bi, ti: (ti, bi, 0)),           # emb fwd
        pl.BlockSpec((Tc, Bt, Hpad), lambda bi, ti: (nT - 1 - ti, bi, 0)),  # emb bwd
        pl.BlockSpec((Bt, 1), lambda bi, ti: (bi, 0)),                      # lengths
        pl.BlockSpec((Bt, 2 * Hp), lambda bi, ti: (bi, 0)),                 # h0
        pl.BlockSpec((2, Hpad, 3 * Hp), const3),                            # wih
        pl.BlockSpec((2, 1, 3 * Hp), const3),                               # bx
        pl.BlockSpec((2, Hp, 3 * Hp), const3),                              # whh
        pl.BlockSpec((2, 1, Hp), const3),                                   # bhn
    ]
    out_specs = (
        pl.BlockSpec((Tc, Bt, Hp), lambda bi, ti: (ti, bi, 0)),             # out_f
        pl.BlockSpec((Tc, Bt, Hp), lambda bi, ti: (nT - 1 - ti, bi, 0)),    # out_b
        pl.BlockSpec((2, Bt, Hp), lambda bi, ti: (0, bi, 0)),               # hn
    )

    out_f, out_b, hn_p = pl.pallas_call(
        functools.partial(_enc_gru_kernel, unroll=unroll),
        out_shape=(jax.ShapeDtypeStruct((T_pad, Bp, Hp), jnp.float32),
                   jax.ShapeDtypeStruct((T_pad, Bp, Hp), jnp.float32),
                   jax.ShapeDtypeStruct((2, Bp, Hp), jnp.float32)),
        grid=(nB, nT),
        in_specs=in_specs,
        out_specs=out_specs,
        scratch_shapes=[pltpu.VMEM((Bt, 2 * Hp), jnp.float32),
                        pltpu.VMEM((Tc * Bt, 3 * Hp), jnp.float32),
                        pltpu.VMEM((Tc * Bt, 3 * Hp), jnp.float32)],
        compiler_params=pltpu.CompilerParams(
            dimension_semantics=("parallel", "arbitrary"),
            vmem_limit_bytes=vmem_limit),
    )(emb_p, emb_p, lens, h0, wih, bx, whh, bhn)

    # Un-pad and assemble (B, t_out, H); gru_out_drop / gru_hid_drop identity.
    out = jnp.concatenate([out_f[:, :B, :Hh], out_b[:, :B, :Hh]], axis=-1)   # (T_pad, B, H)
    out = jnp.transpose(out, (1, 0, 2))[:, :t_out]                           # (B, t_out, H)
    hn = hn_p[:, :B, :Hh]                                                    # (2, B, Hh)
    return out, hn


def reference_forward(params, input_ids, hidden, lengths):
    """Pure-JAX f32 reference for correctness checking."""
    lengths_list = [int(l) for l in lengths]
    lengths_arr = jnp.asarray(lengths_list, dtype=jnp.int32)
    emb = params["embedding"][input_ids].astype(jnp.float32)
    B, T, H = emb.shape
    Hh = H // 2

    def cell(x, h, wih, whh, bih, bhh):
        gx = x @ wih + bih
        gh = h @ whh + bhh
        r = jax.nn.sigmoid(gx[:, :Hh] + gh[:, :Hh])
        z = jax.nn.sigmoid(gx[:, Hh:2 * Hh] + gh[:, Hh:2 * Hh])
        n = jnp.tanh(gx[:, 2 * Hh:] + r * gh[:, 2 * Hh:])
        return (1.0 - z) * n + z * h

    out_f = []
    h = hidden[0]
    for t in range(T):
        h_new = cell(emb[:, t], h, params["wih_f"], params["whh_f"],
                     params["bih_f"], params["bhh_f"])
        m = (t < lengths_arr).astype(jnp.float32)[:, None]
        h = m * h_new + (1 - m) * h
        out_f.append(m * h_new)
    hf = h

    out_b = [None] * T
    h = hidden[1]
    for t in range(T - 1, -1, -1):
        h_new = cell(emb[:, t], h, params["wih_b"], params["whh_b"],
                     params["bih_b"], params["bhh_b"])
        m = (t < lengths_arr).astype(jnp.float32)[:, None]
        h = m * h_new + (1 - m) * h
        out_b[t] = m * h_new
    hb = h

    out = jnp.concatenate([jnp.stack(out_f, 1), jnp.stack(out_b, 1)], axis=-1)
    return out[:, :max(lengths_list)], jnp.stack([hf, hb])


def init_params(key, input_size, hidden_size):
    Hh = hidden_size // 2
    ks = jax.random.split(key, 12)
    bound = 1.0 / jnp.sqrt(Hh)
    u = lambda k, s: jax.random.uniform(k, s, jnp.float32, -bound, bound)
    return {
        # nn.Embedding default: N(0, 1)
        "embedding": jax.random.normal(ks[0], (input_size, hidden_size), jnp.float32),
        # GRU weights stored pre-transposed: x @ wih -> (B, 3*Hh)
        "wih_f": u(ks[1], (hidden_size, 3 * Hh)),
        "whh_f": u(ks[2], (Hh, 3 * Hh)),
        "bih_f": u(ks[3], (1, 3 * Hh)),
        "bhh_f": u(ks[4], (1, 3 * Hh)),
        "wih_b": u(ks[5], (hidden_size, 3 * Hh)),
        "whh_b": u(ks[6], (Hh, 3 * Hh)),
        "bih_b": u(ks[7], (1, 3 * Hh)),
        "bhh_b": u(ks[8], (1, 3 * Hh)),
        # hidden_init: N(0, 0.05), shape (2, 1, Hh)
        "hidden_init": 0.05 * jax.random.normal(ks[9], (2, 1, Hh), jnp.float32),
    }


def init_hidden(params, bs):
    Hh = params["hidden_init"].shape[-1]
    return jnp.broadcast_to(params["hidden_init"], (2, bs, Hh))


if __name__ == "__main__":
    key = jax.random.PRNGKey(0)
    input_size = 20     # vocab
    hidden_size = 32
    B, T = 4, 12
    lengths = [12, 9, 7, 3]   # sorted descending, as pack_padded_sequence requires

    kp, kx = jax.random.split(key)
    params = init_params(kp, input_size, hidden_size)
    input_ids = jax.random.randint(kx, (B, T), 0, input_size, dtype=jnp.int32)
    hidden0 = init_hidden(params, B)

    out_ref, hid_ref = reference_forward(params, input_ids, hidden0, lengths)

    # f32 MXU operands: tight check (exercises a 3-chunk streamed grid).
    out, hid = encoder_forward(params, input_ids, hidden0, lengths,
                               compute_dtype=jnp.float32, t_chunk=4)
    out = jax.block_until_ready(out)
    hid = jax.block_until_ready(hid)
    assert out.shape == (B, max(lengths), hidden_size), out.shape
    assert hid.shape == (2, B, hidden_size // 2), hid.shape
    assert jnp.allclose(out, out_ref, atol=1e-4, rtol=1e-4), \
        float(jnp.max(jnp.abs(out - out_ref)))
    assert jnp.allclose(hid, hid_ref, atol=1e-4, rtol=1e-4), \
        float(jnp.max(jnp.abs(hid - hid_ref)))

    # bf16 MXU operands (production setting for v6e/v7x): loose sanity check.
    out16, hid16 = encoder_forward(params, input_ids, hidden0, lengths,
                                   compute_dtype=jnp.bfloat16, t_chunk=4)
    out16 = jax.block_until_ready(out16)
    hid16 = jax.block_until_ready(hid16)
    assert jnp.allclose(out16, out_ref, atol=1e-1, rtol=1e-1), \
        float(jnp.max(jnp.abs(out16 - out_ref)))
    assert jnp.allclose(hid16, hid_ref, atol=1e-1, rtol=1e-1), \
        float(jnp.max(jnp.abs(hid16 - hid_ref)))

    print("KERNEL_OK")
</pallas_src>

<mosaic_0001>
module attributes {stable_mosaic.version = 11 : i64} {
  func.func @_enc_gru_kernel(%arg0: i32, %arg1: i32, %arg2: memref<4x8x128xf32, #tpu.memory_space<vmem>>, %arg3: memref<4x8x128xf32, #tpu.memory_space<vmem>>, %arg4: memref<8x1xi32, #tpu.memory_space<vmem>>, %arg5: memref<8x256xf32, #tpu.memory_space<vmem>>, %arg6: memref<2x128x384xf32, #tpu.memory_space<vmem>>, %arg7: memref<2x1x384xf32, #tpu.memory_space<vmem>>, %arg8: memref<2x128x384xf32, #tpu.memory_space<vmem>>, %arg9: memref<2x1x128xf32, #tpu.memory_space<vmem>>, %arg10: memref<4x8x128xf32, #tpu.memory_space<vmem>>, %arg11: memref<4x8x128xf32, #tpu.memory_space<vmem>>, %arg12: memref<2x8x128xf32, #tpu.memory_space<vmem>>, %arg13: memref<8x256xf32, #tpu.memory_space<vmem>>, %arg14: memref<32x384xf32, #tpu.memory_space<vmem>>, %arg15: memref<32x384xf32, #tpu.memory_space<vmem>>) attributes {dimension_semantics = [#tpu.dimension_semantics<parallel>, #tpu.dimension_semantics<arbitrary>], iteration_bounds = array<i64: 1, 3>, scalar_prefetch = 0 : i64, scratch_operands = 3 : i64, tpu.core_type = #tpu.core_type<tc>, window_params = [{transform_indices = @transform_0, window_bounds = array<i64: 4, 8, 128>}, {transform_indices = @transform_1, window_bounds = array<i64: 4, 8, 128>}, {transform_indices = @transform_2, window_bounds = array<i64: 8, 1>}, {transform_indices = @transform_3, window_bounds = array<i64: 8, 256>}, {pipeline_mode = #tpu.pipeline_mode<synchronous>, transform_indices = @transform_4, window_bounds = array<i64: 2, 128, 384>}, {pipeline_mode = #tpu.pipeline_mode<synchronous>, transform_indices = @transform_5, window_bounds = array<i64: 2, 1, 384>}, {pipeline_mode = #tpu.pipeline_mode<synchronous>, transform_indices = @transform_6, window_bounds = array<i64: 2, 128, 384>}, {pipeline_mode = #tpu.pipeline_mode<synchronous>, transform_indices = @transform_7, window_bounds = array<i64: 2, 1, 128>}, {transform_indices = @transform_8, window_bounds = array<i64: 4, 8, 128>}, {transform_indices = @transform_9, window_bounds = array<i64: 4, 8, 128>}, {transform_indices = @transform_10, window_bounds = array<i64: 2, 8, 128>}]} {
    %c0_i32 = arith.constant 0 : i32
    %0 = arith.cmpi eq, %arg1, %c0_i32 : i32
    %1 = arith.extui %0 : i1 to i32
    %c0_i32_0 = arith.constant 0 : i32
    %2 = arith.cmpi ne, %1, %c0_i32_0 : i32
    scf.if %2 {
      %c0_133 = arith.constant 0 : index
      %c0_134 = arith.constant 0 : index
      %427 = vector.load %arg5[%c0_133, %c0_134] : memref<8x256xf32, #tpu.memory_space<vmem>>, vector<8x256xf32>
      %c0_135 = arith.constant 0 : index
      %c0_136 = arith.constant 0 : index
      %428 = vector.load %arg13[%c0_135, %c0_136] : memref<8x256xf32, #tpu.memory_space<vmem>>, vector<8x256xf32>
      tpu.vector_store %arg13[%c0_135, %c0_136], %427 {strides = array<i32>} : memref<8x256xf32, #tpu.memory_space<vmem>>, vector<8x256xf32>,
    } else {
    }
    %c0 = arith.constant 0 : index
    %c0_1 = arith.constant 0 : index
    %c0_2 = arith.constant 0 : index
    %3 = vector.load %arg6[%c0, %c0_1, %c0_2] : memref<2x128x384xf32, #tpu.memory_space<vmem>>, vector<1x128x384xf32>
    %4 = vector.shape_cast %3 : vector<1x128x384xf32> to vector<128x384xf32>
    %c1 = arith.constant 1 : index
    %c0_3 = arith.constant 0 : index
    %c0_4 = arith.constant 0 : index
    %5 = vector.load %arg6[%c1, %c0_3, %c0_4] : memref<2x128x384xf32, #tpu.memory_space<vmem>>, vector<1x128x384xf32>
    %6 = vector.shape_cast %5 : vector<1x128x384xf32> to vector<128x384xf32>
    %c0_5 = arith.constant 0 : index
    %c0_6 = arith.constant 0 : index
    %c0_7 = arith.constant 0 : index
    %7 = vector.load %arg2[%c0_5, %c0_6, %c0_7] : memref<4x8x128xf32, #tpu.memory_space<vmem>>, vector<4x8x128xf32>
    %8 = vector.shape_cast %7 : vector<4x8x128xf32> to vector<32x128xf32>
    %c0_8 = arith.constant 0 : index
    %c0_9 = arith.constant 0 : index
    %c0_10 = arith.constant 0 : index
    %9 = vector.load %arg3[%c0_8, %c0_9, %c0_10] : memref<4x8x128xf32, #tpu.memory_space<vmem>>, vector<4x8x128xf32>
    %10 = vector.shape_cast %9 : vector<4x8x128xf32> to vector<32x128xf32>
    %cst = arith.constant dense<0.000000e+00> : vector<32x384xf32>
    %11 = tpu.matmul %8, %4, %cst {dimension_numbers = #tpu.dot_dimension_numbers<[1], [0], [0], [1], [0, 0, 1, 1], [], []>} : vector<32x128xf32>, vector<128x384xf32>, vector<32x384xf32> -> vector<32x384xf32>
    %c0_11 = arith.constant 0 : index
    %c0_12 = arith.constant 0 : index
    %c0_13 = arith.constant 0 : index
    %12 = vector.load %arg7[%c0_11, %c0_12, %c0_13] : memref<2x1x384xf32, #tpu.memory_space<vmem>>, vector<1x1x384xf32>
    %13 = vector.shape_cast %12 : vector<1x1x384xf32> to vector<1x384xf32>
    %14 = vector.broadcast %13 : vector<1x384xf32> to vector<32x384xf32>
    %15 = arith.addf %11, %14 : vector<32x384xf32>
    %c0_14 = arith.constant 0 : index
    %c0_15 = arith.constant 0 : index
    %16 = vector.load %arg14[%c0_14, %c0_15] : memref<32x384xf32, #tpu.memory_space<vmem>>, vector<32x384xf32>
    tpu.vector_store %arg14[%c0_14, %c0_15], %15 {strides = array<i32>} : memref<32x384xf32, #tpu.memory_space<vmem>>, vector<32x384xf32>,
    %cst_16 = arith.constant dense<0.000000e+00> : vector<32x384xf32>
    %17 = tpu.matmul %10, %6, %cst_16 {dimension_numbers = #tpu.dot_dimension_numbers<[1], [0], [0], [1], [0, 0, 1, 1], [], []>} : vector<32x128xf32>, vector<128x384xf32>, vector<32x384xf32> -> vector<32x384xf32>
    %c1_17 = arith.constant 1 : index
    %c0_18 = arith.constant 0 : index
    %c0_19 = arith.constant 0 : index
    %18 = vector.load %arg7[%c1_17, %c0_18, %c0_19] : memref<2x1x384xf32, #tpu.memory_space<vmem>>, vector<1x1x384xf32>
    %19 = vector.shape_cast %18 : vector<1x1x384xf32> to vector<1x384xf32>
    %20 = vector.broadcast %19 : vector<1x384xf32> to vector<32x384xf32>
    %21 = arith.addf %17, %20 : vector<32x384xf32>
    %c0_20 = arith.constant 0 : index
    %c0_21 = arith.constant 0 : index
    %22 = vector.load %arg15[%c0_20, %c0_21] : memref<32x384xf32, #tpu.memory_space<vmem>>, vector<32x384xf32>
    tpu.vector_store %arg15[%c0_20, %c0_21], %21 {strides = array<i32>} : memref<32x384xf32, #tpu.memory_space<vmem>>, vector<32x384xf32>,
    %c0_22 = arith.constant 0 : index
    %c0_23 = arith.constant 0 : index
    %23 = vector.load %arg4[%c0_22, %c0_23] : memref<8x1xi32, #tpu.memory_space<vmem>>, vector<8x1xi32>
    %c0_24 = arith.constant 0 : index
    %c0_25 = arith.constant 0 : index
    %c0_26 = arith.constant 0 : index
    %24 = vector.load %arg8[%c0_24, %c0_25, %c0_26] : memref<2x128x384xf32, #tpu.memory_space<vmem>>, vector<1x128x384xf32>
    %25 = vector.shape_cast %24 : vector<1x128x384xf32> to vector<128x384xf32>
    %c1_27 = arith.constant 1 : index
    %c0_28 = arith.constant 0 : index
    %c0_29 = arith.constant 0 : index
    %26 = vector.load %arg8[%c1_27, %c0_28, %c0_29] : memref<2x128x384xf32, #tpu.memory_space<vmem>>, vector<1x128x384xf32>
    %27 = vector.shape_cast %26 : vector<1x128x384xf32> to vector<128x384xf32>
    %c0_30 = arith.constant 0 : index
    %c0_31 = arith.constant 0 : index
    %c0_32 = arith.constant 0 : index
    %28 = vector.load %arg9[%c0_30, %c0_31, %c0_32] : memref<2x1x128xf32, #tpu.memory_space<vmem>>, vector<1x1x128xf32>
    %29 = vector.shape_cast %28 : vector<1x1x128xf32> to vector<1x128xf32>
    %c1_33 = arith.constant 1 : index
    %c0_34 = arith.constant 0 : index
    %c0_35 = arith.constant 0 : index
    %30 = vector.load %arg9[%c1_33, %c0_34, %c0_35] : memref<2x1x128xf32, #tpu.memory_space<vmem>>, vector<1x1x128xf32>
    %31 = vector.shape_cast %30 : vector<1x1x128xf32> to vector<1x128xf32>
    %c0_36 = arith.constant 0 : index
    %c0_37 = arith.constant 0 : index
    %32 = vector.load %arg13[%c0_36, %c0_37] : memref<8x256xf32, #tpu.memory_space<vmem>>, vector<8x128xf32>
    %c0_38 = arith.constant 0 : index
    %c128 = arith.constant 128 : index
    %33 = vector.load %arg13[%c0_38, %c128] : memref<8x256xf32, #tpu.memory_space<vmem>>, vector<8x128xf32>
    %c4_i32 = arith.constant 4 : i32
    %34 = arith.muli %arg1, %c4_i32 : i32
    %c0_i32_39 = arith.constant 0 : i32
    %35 = arith.addi %34, %c0_i32_39 : i32
    %c11_i32 = arith.constant 11 : i32
    %36 = arith.subi %c11_i32, %35 : i32
    %c8_i32 = arith.constant 8 : i32
    %37 = arith.muli %c0_i32_39, %c8_i32 : i32
    %38 = tpu.assume_multiple %37, 8 : i32
    %c3_i32 = arith.constant 3 : i32
    %39 = arith.subi %c3_i32, %c0_i32_39 : i32
    %c8_i32_40 = arith.constant 8 : i32
    %40 = arith.muli %39, %c8_i32_40 : i32
    %41 = tpu.assume_multiple %40, 8 : i32
    %42 = arith.index_cast %38 : i32 to index
    %c0_41 = arith.constant 0 : index
    %43 = vector.load %arg14[%42, %c0_41] : memref<32x384xf32, #tpu.memory_space<vmem>>, vector<8x384xf32>
    %44 = arith.index_cast %41 : i32 to index
    %c0_42 = arith.constant 0 : index
    %45 = vector.load %arg15[%44, %c0_42] : memref<32x384xf32, #tpu.memory_space<vmem>>, vector<8x384xf32>
    %cst_43 = arith.constant dense<0.000000e+00> : vector<8x384xf32>
    %46 = tpu.matmul %32, %25, %cst_43 {dimension_numbers = #tpu.dot_dimension_numbers<[1], [0], [0], [1], [0, 0, 1, 1], [], []>} : vector<8x128xf32>, vector<128x384xf32>, vector<8x384xf32> -> vector<8x384xf32>
    %cst_44 = arith.constant dense<0.000000e+00> : vector<8x384xf32>
    %47 = tpu.matmul %33, %27, %cst_44 {dimension_numbers = #tpu.dot_dimension_numbers<[1], [0], [0], [1], [0, 0, 1, 1], [], []>} : vector<8x128xf32>, vector<128x384xf32>, vector<8x384xf32> -> vector<8x384xf32>
    %48 = vector.extract_strided_slice %43 {offsets = [0, 0], sizes = [8, 128], strides = [1, 1]} : vector<8x384xf32> to vector<8x128xf32>
    %49 = vector.extract_strided_slice %46 {offsets = [0, 0], sizes = [8, 128], strides = [1, 1]} : vector<8x384xf32> to vector<8x128xf32>
    %50 = arith.addf %48, %49 : vector<8x128xf32>
    %51 = arith.negf %50 : vector<8x128xf32>
    %52 = math.exp %51 : vector<8x128xf32>
    %cst_45 = arith.constant 1.000000e+00 : f32
    %53 = vector.broadcast %cst_45 : f32 to vector<8x128xf32>
    %54 = arith.addf %53, %52 : vector<8x128xf32>
    %55 = arith.divf %53, %54 : vector<8x128xf32>
    %56 = vector.extract_strided_slice %43 {offsets = [0, 128], sizes = [8, 128], strides = [1, 1]} : vector<8x384xf32> to vector<8x128xf32>
    %57 = vector.extract_strided_slice %46 {offsets = [0, 128], sizes = [8, 128], strides = [1, 1]} : vector<8x384xf32> to vector<8x128xf32>
    %58 = arith.addf %56, %57 : vector<8x128xf32>
    %59 = arith.negf %58 : vector<8x128xf32>
    %60 = math.exp %59 : vector<8x128xf32>
    %cst_46 = arith.constant 1.000000e+00 : f32
    %61 = vector.broadcast %cst_46 : f32 to vector<8x128xf32>
    %62 = arith.addf %61, %60 : vector<8x128xf32>
    %63 = arith.divf %61, %62 : vector<8x128xf32>
    %64 = vector.extract_strided_slice %43 {offsets = [0, 256], sizes = [8, 128], strides = [1, 1]} : vector<8x384xf32> to vector<8x128xf32>
    %65 = vector.extract_strided_slice %46 {offsets = [0, 256], sizes = [8, 128], strides = [1, 1]} : vector<8x384xf32> to vector<8x128xf32>
    %66 = vector.broadcast %29 : vector<1x128xf32> to vector<8x128xf32>
    %67 = arith.addf %65, %66 : vector<8x128xf32>
    %68 = arith.mulf %55, %67 : vector<8x128xf32>
    %69 = arith.addf %64, %68 : vector<8x128xf32>
    %70 = math.tanh %69 : vector<8x128xf32>
    %cst_47 = arith.constant 1.000000e+00 : f32
    %71 = vector.broadcast %cst_47 : f32 to vector<8x128xf32>
    %72 = arith.subf %71, %63 : vector<8x128xf32>
    %73 = arith.mulf %72, %70 : vector<8x128xf32>
    %74 = arith.mulf %63, %32 : vector<8x128xf32>
    %75 = arith.addf %73, %74 : vector<8x128xf32>
    %76 = vector.extract_strided_slice %45 {offsets = [0, 0], sizes = [8, 128], strides = [1, 1]} : vector<8x384xf32> to vector<8x128xf32>
    %77 = vector.extract_strided_slice %47 {offsets = [0, 0], sizes = [8, 128], strides = [1, 1]} : vector<8x384xf32> to vector<8x128xf32>
    %78 = arith.addf %76, %77 : vector<8x128xf32>
    %79 = arith.negf %78 : vector<8x128xf32>
    %80 = math.exp %79 : vector<8x128xf32>
    %cst_48 = arith.constant 1.000000e+00 : f32
    %81 = vector.broadcast %cst_48 : f32 to vector<8x128xf32>
    %82 = arith.addf %81, %80 : vector<8x128xf32>
    %83 = arith.divf %81, %82 : vector<8x128xf32>
    %84 = vector.extract_strided_slice %45 {offsets = [0, 128], sizes = [8, 128], strides = [1, 1]} : vector<8x384xf32> to vector<8x128xf32>
    %85 = vector.extract_strided_slice %47 {offsets = [0, 128], sizes = [8, 128], strides = [1, 1]} : vector<8x384xf32> to vector<8x128xf32>
    %86 = arith.addf %84, %85 : vector<8x128xf32>
    %87 = arith.negf %86 : vector<8x128xf32>
    %88 = math.exp %87 : vector<8x128xf32>
    %cst_49 = arith.constant 1.000000e+00 : f32
    %89 = vector.broadcast %cst_49 : f32 to vector<8x128xf32>
    %90 = arith.addf %89, %88 : vector<8x128xf32>
    %91 = arith.divf %89, %90 : vector<8x128xf32>
    %92 = vector.extract_strided_slice %45 {offsets = [0, 256], sizes = [8, 128], strides = [1, 1]} : vector<8x384xf32> to vector<8x128xf32>
    %93 = vector.extract_strided_slice %47 {offsets = [0, 256], sizes = [8, 128], strides = [1, 1]} : vector<8x384xf32> to vector<8x128xf32>
    %94 = vector.broadcast %31 : vector<1x128xf32> to vector<8x128xf32>
    %95 = arith.addf %93, %94 : vector<8x128xf32>
    %96 = arith.mulf %83, %95 : vector<8x128xf32>
    %97 = arith.addf %92, %96 : vector<8x128xf32>
    %98 = math.tanh %97 : vector<8x128xf32>
    %cst_50 = arith.constant 1.000000e+00 : f32
    %99 = vector.broadcast %cst_50 : f32 to vector<8x128xf32>
    %100 = arith.subf %99, %91 : vector<8x128xf32>
    %101 = arith.mulf %100, %98 : vector<8x128xf32>
    %102 = arith.mulf %91, %33 : vector<8x128xf32>
    %103 = arith.addf %101, %102 : vector<8x128xf32>
    %104 = vector.broadcast %35 : i32 to vector<8x1xi32>
    %105 = arith.cmpi slt, %104, %23 : vector<8x1xi32>
    %106 = vector.broadcast %36 : i32 to vector<8x1xi32>
    %107 = arith.cmpi slt, %106, %23 : vector<8x1xi32>
    %cst_51 = arith.constant 0.000000e+00 : f32
    %108 = vector.shape_cast %105 : vector<8x1xi1> to vector<8x1xi1>
    %109 = vector.broadcast %108 : vector<8x1xi1> to vector<8x128xi1>
    %110 = vector.broadcast %cst_51 : f32 to vector<8x128xf32>
    %111 = arith.select %109, %75, %110 : vector<8x128xi1>, vector<8x128xf32>
    %112 = arith.index_cast %c0_i32_39 : i32 to index
    %c0_52 = arith.constant 0 : index
    %c0_53 = arith.constant 0 : index
    %113 = vector.load %arg10[%112, %c0_52, %c0_53] : memref<4x8x128xf32, #tpu.memory_space<vmem>>, vector<1x8x128xf32>
    %114 = vector.shape_cast %113 : vector<1x8x128xf32> to vector<8x128xf32>
    %115 = vector.shape_cast %111 : vector<8x128xf32> to vector<1x8x128xf32>
    tpu.vector_store %arg10[%112, %c0_52, %c0_53], %115 {strides = array<i32>} : memref<4x8x128xf32, #tpu.memory_space<vmem>>, vector<1x8x128xf32>,
    %cst_54 = arith.constant 0.000000e+00 : f32
    %116 = vector.shape_cast %107 : vector<8x1xi1> to vector<8x1xi1>
    %117 = vector.broadcast %116 : vector<8x1xi1> to vector<8x128xi1>
    %118 = vector.broadcast %cst_54 : f32 to vector<8x128xf32>
    %119 = arith.select %117, %103, %118 : vector<8x128xi1>, vector<8x128xf32>
    %c3_i32_55 = arith.constant 3 : i32
    %120 = arith.subi %c3_i32_55, %c0_i32_39 : i32
    %121 = arith.index_cast %120 : i32 to index
    %c0_56 = arith.constant 0 : index
    %c0_57 = arith.constant 0 : index
    %122 = vector.load %arg11[%121, %c0_56, %c0_57] : memref<4x8x128xf32, #tpu.memory_space<vmem>>, vector<1x8x128xf32>
    %123 = vector.shape_cast %122 : vector<1x8x128xf32> to vector<8x128xf32>
    %124 = vector.shape_cast %119 : vector<8x128xf32> to vector<1x8x128xf32>
    tpu.vector_store %arg11[%121, %c0_56, %c0_57], %124 {strides = array<i32>} : memref<4x8x128xf32, #tpu.memory_space<vmem>>, vector<1x8x128xf32>,
    %125 = vector.shape_cast %105 : vector<8x1xi1> to vector<8x1xi1>
    %126 = vector.broadcast %125 : vector<8x1xi1> to vector<8x128xi1>
    %127 = arith.select %126, %75, %32 : vector<8x128xi1>, vector<8x128xf32>
    %128 = vector.shape_cast %107 : vector<8x1xi1> to vector<8x1xi1>
    %129 = vector.broadcast %128 : vector<8x1xi1> to vector<8x128xi1>
    %130 = arith.select %129, %103, %33 : vector<8x128xi1>, vector<8x128xf32>
    %c1_i32 = arith.constant 1 : i32
    %131 = arith.addi %34, %c1_i32 : i32
    %c11_i32_58 = arith.constant 11 : i32
    %132 = arith.subi %c11_i32_58, %131 : i32
    %c8_i32_59 = arith.constant 8 : i32
    %133 = arith.muli %c1_i32, %c8_i32_59 : i32
    %134 = tpu.assume_multiple %133, 8 : i32
    %c3_i32_60 = arith.constant 3 : i32
    %135 = arith.subi %c3_i32_60, %c1_i32 : i32
    %c8_i32_61 = arith.constant 8 : i32
    %136 = arith.muli %135, %c8_i32_61 : i32
    %137 = tpu.assume_multiple %136, 8 : i32
    %138 = arith.index_cast %134 : i32 to index
    %c0_62 = arith.constant 0 : index
    %139 = vector.load %arg14[%138, %c0_62] : memref<32x384xf32, #tpu.memory_space<vmem>>, vector<8x384xf32>
    %140 = arith.index_cast %137 : i32 to index
    %c0_63 = arith.constant 0 : index
    %141 = vector.load %arg15[%140, %c0_63] : memref<32x384xf32, #tpu.memory_space<vmem>>, vector<8x384xf32>
    %cst_64 = arith.constant dense<0.000000e+00> : vector<8x384xf32>
    %142 = tpu.matmul %127, %25, %cst_64 {dimension_numbers = #tpu.dot_dimension_numbers<[1], [0], [0], [1], [0, 0, 1, 1], [], []>} : vector<8x128xf32>, vector<128x384xf32>, vector<8x384xf32> -> vector<8x384xf32>
    %cst_65 = arith.constant dense<0.000000e+00> : vector<8x384xf32>
    %143 = tpu.matmul %130, %27, %cst_65 {dimension_numbers = #tpu.dot_dimension_numbers<[1], [0], [0], [1], [0, 0, 1, 1], [], []>} : vector<8x128xf32>, vector<128x384xf32>, vector<8x384xf32> -> vector<8x384xf32>
    %144 = vector.extract_strided_slice %139 {offsets = [0, 0], sizes = [8, 128], strides = [1, 1]} : vector<8x384xf32> to vector<8x128xf32>
    %145 = vector.extract_strided_slice %142 {offsets = [0, 0], sizes = [8, 128], strides = [1, 1]} : vector<8x384xf32> to vector<8x128xf32>
    %146 = arith.addf %144, %145 : vector<8x128xf32>
    %147 = arith.negf %146 : vector<8x128xf32>
    %148 = math.exp %147 : vector<8x128xf32>
    %cst_66 = arith.constant 1.000000e+00 : f32
    %149 = vector.broadcast %cst_66 : f32 to vector<8x128xf32>
    %150 = arith.addf %149, %148 : vector<8x128xf32>
    %151 = arith.divf %149, %150 : vector<8x128xf32>
    %152 = vector.extract_strided_slice %139 {offsets = [0, 128], sizes = [8, 128], strides = [1, 1]} : vector<8x384xf32> to vector<8x128xf32>
    %153 = vector.extract_strided_slice %142 {offsets = [0, 128], sizes = [8, 128], strides = [1, 1]} : vector<8x384xf32> to vector<8x128xf32>
    %154 = arith.addf %152, %153 : vector<8x128xf32>
    %155 = arith.negf %154 : vector<8x128xf32>
    %156 = math.exp %155 : vector<8x128xf32>
    %cst_67 = arith.constant 1.000000e+00 : f32
    %157 = vector.broadcast %cst_67 : f32 to vector<8x128xf32>
    %158 = arith.addf %157, %156 : vector<8x128xf32>
    %159 = arith.divf %157, %158 : vector<8x128xf32>
    %160 = vector.extract_strided_slice %139 {offsets = [0, 256], sizes = [8, 128], strides = [1, 1]} : vector<8x384xf32> to vector<8x128xf32>
    %161 = vector.extract_strided_slice %142 {offsets = [0, 256], sizes = [8, 128], strides = [1, 1]} : vector<8x384xf32> to vector<8x128xf32>
    %162 = vector.broadcast %29 : vector<1x128xf32> to vector<8x128xf32>
    %163 = arith.addf %161, %162 : vector<8x128xf32>
    %164 = arith.mulf %151, %163 : vector<8x128xf32>
    %165 = arith.addf %160, %164 : vector<8x128xf32>
    %166 = math.tanh %165 : vector<8x128xf32>
    %cst_68 = arith.constant 1.000000e+00 : f32
    %167 = vector.broadcast %cst_68 : f32 to vector<8x128xf32>
    %168 = arith.subf %167, %159 : vector<8x128xf32>
    %169 = arith.mulf %168, %166 : vector<8x128xf32>
    %170 = arith.mulf %159, %127 : vector<8x128xf32>
    %171 = arith.addf %169, %170 : vector<8x128xf32>
    %172 = vector.extract_strided_slice %141 {offsets = [0, 0], sizes = [8, 128], strides = [1, 1]} : vector<8x384xf32> to vector<8x128xf32>
    %173 = vector.extract_strided_slice %143 {offsets = [0, 0], sizes = [8, 128], strides = [1, 1]} : vector<8x384xf32> to vector<8x128xf32>
    %174 = arith.addf %172, %173 : vector<8x128xf32>
    %175 = arith.negf %174 : vector<8x128xf32>
    %176 = math.exp %175 : vector<8x128xf32>
    %cst_69 = arith.constant 1.000000e+00 : f32
    %177 = vector.broadcast %cst_69 : f32 to vector<8x128xf32>
    %178 = arith.addf %177, %176 : vector<8x128xf32>
    %179 = arith.divf %177, %178 : vector<8x128xf32>
    %180 = vector.extract_strided_slice %141 {offsets = [0, 128], sizes = [8, 128], strides = [1, 1]} : vector<8x384xf32> to vector<8x128xf32>
    %181 = vector.extract_strided_slice %143 {offsets = [0, 128], sizes = [8, 128], strides = [1, 1]} : vector<8x384xf32> to vector<8x128xf32>
    %182 = arith.addf %180, %181 : vector<8x128xf32>
    %183 = arith.negf %182 : vector<8x128xf32>
    %184 = math.exp %183 : vector<8x128xf32>
    %cst_70 = arith.constant 1.000000e+00 : f32
    %185 = vector.broadcast %cst_70 : f32 to vector<8x128xf32>
    %186 = arith.addf %185, %184 : vector<8x128xf32>
    %187 = arith.divf %185, %186 : vector<8x128xf32>
    %188 = vector.extract_strided_slice %141 {offsets = [0, 256], sizes = [8, 128], strides = [1, 1]} : vector<8x384xf32> to vector<8x128xf32>
    %189 = vector.extract_strided_slice %143 {offsets = [0, 256], sizes = [8, 128], strides = [1, 1]} : vector<8x384xf32> to vector<8x128xf32>
    %190 = vector.broadcast %31 : vector<1x128xf32> to vector<8x128xf32>
    %191 = arith.addf %189, %190 : vector<8x128xf32>
    %192 = arith.mulf %179, %191 : vector<8x128xf32>
    %193 = arith.addf %188, %192 : vector<8x128xf32>
    %194 = math.tanh %193 : vector<8x128xf32>
    %cst_71 = arith.constant 1.000000e+00 : f32
    %195 = vector.broadcast %cst_71 : f32 to vector<8x128xf32>
    %196 = arith.subf %195, %187 : vector<8x128xf32>
    %197 = arith.mulf %196, %194 : vector<8x128xf32>
    %198 = arith.mulf %187, %130 : vector<8x128xf32>
    %199 = arith.addf %197, %198 : vector<8x128xf32>
    %200 = vector.broadcast %131 : i32 to vector<8x1xi32>
    %201 = arith.cmpi slt, %200, %23 : vector<8x1xi32>
    %202 = vector.broadcast %132 : i32 to vector<8x1xi32>
    %203 = arith.cmpi slt, %202, %23 : vector<8x1xi32>
    %cst_72 = arith.constant 0.000000e+00 : f32
    %204 = vector.shape_cast %201 : vector<8x1xi1> to vector<8x1xi1>
    %205 = vector.broadcast %204 : vector<8x1xi1> to vector<8x128xi1>
    %206 = vector.broadcast %cst_72 : f32 to vector<8x128xf32>
    %207 = arith.select %205, %171, %206 : vector<8x128xi1>, vector<8x128xf32>
    %208 = arith.index_cast %c1_i32 : i32 to index
    %c0_73 = arith.constant 0 : index
    %c0_74 = arith.constant 0 : index
    %209 = vector.load %arg10[%208, %c0_73, %c0_74] : memref<4x8x128xf32, #tpu.memory_space<vmem>>, vector<1x8x128xf32>
    %210 = vector.shape_cast %209 : vector<1x8x128xf32> to vector<8x128xf32>
    %211 = vector.shape_cast %207 : vector<8x128xf32> to vector<1x8x128xf32>
    tpu.vector_store %arg10[%208, %c0_73, %c0_74], %211 {strides = array<i32>} : memref<4x8x128xf32, #tpu.memory_space<vmem>>, vector<1x8x128xf32>,
    %cst_75 = arith.constant 0.000000e+00 : f32
    %212 = vector.shape_cast %203 : vector<8x1xi1> to vector<8x1xi1>
    %213 = vector.broadcast %212 : vector<8x1xi1> to vector<8x128xi1>
    %214 = vector.broadcast %cst_75 : f32 to vector<8x128xf32>
    %215 = arith.select %213, %199, %214 : vector<8x128xi1>, vector<8x128xf32>
    %c3_i32_76 = arith.constant 3 : i32
    %216 = arith.subi %c3_i32_76, %c1_i32 : i32
    %217 = arith.index_cast %216 : i32 to index
    %c0_77 = arith.constant 0 : index
    %c0_78 = arith.constant 0 : index
    %218 = vector.load %arg11[%217, %c0_77, %c0_78] : memref<4x8x128xf32, #tpu.memory_space<vmem>>, vector<1x8x128xf32>
    %219 = vector.shape_cast %218 : vector<1x8x128xf32> to vector<8x128xf32>
    %220 = vector.shape_cast %215 : vector<8x128xf32> to vector<1x8x128xf32>
    tpu.vector_store %arg11[%217, %c0_77, %c0_78], %220 {strides = array<i32>} : memref<4x8x128xf32, #tpu.memory_space<vmem>>, vector<1x8x128xf32>,
    %221 = vector.shape_cast %201 : vector<8x1xi1> to vector<8x1xi1>
    %222 = vector.broadcast %221 : vector<8x1xi1> to vector<8x128xi1>
    %223 = arith.select %222, %171, %127 : vector<8x128xi1>, vector<8x128xf32>
    %224 = vector.shape_cast %203 : vector<8x1xi1> to vector<8x1xi1>
    %225 = vector.broadcast %224 : vector<8x1xi1> to vector<8x128xi1>
    %226 = arith.select %225, %199, %130 : vector<8x128xi1>, vector<8x128xf32>
    %c2_i32 = arith.constant 2 : i32
    %227 = arith.addi %34, %c2_i32 : i32
    %c11_i32_79 = arith.constant 11 : i32
    %228 = arith.subi %c11_i32_79, %227 : i32
    %c8_i32_80 = arith.constant 8 : i32
    %229 = arith.muli %c2_i32, %c8_i32_80 : i32
    %230 = tpu.assume_multiple %229, 8 : i32
    %c3_i32_81 = arith.constant 3 : i32
    %231 = arith.subi %c3_i32_81, %c2_i32 : i32
    %c8_i32_82 = arith.constant 8 : i32
    %232 = arith.muli %231, %c8_i32_82 : i32
    %233 = tpu.assume_multiple %232, 8 : i32
    %234 = arith.index_cast %230 : i32 to index
    %c0_83 = arith.constant 0 : index
    %235 = vector.load %arg14[%234, %c0_83] : memref<32x384xf32, #tpu.memory_space<vmem>>, vector<8x384xf32>
    %236 = arith.index_cast %233 : i32 to index
    %c0_84 = arith.constant 0 : index
    %237 = vector.load %arg15[%236, %c0_84] : memref<32x384xf32, #tpu.memory_space<vmem>>, vector<8x384xf32>
    %cst_85 = arith.constant dense<0.000000e+00> : vector<8x384xf32>
    %238 = tpu.matmul %223, %25, %cst_85 {dimension_numbers = #tpu.dot_dimension_numbers<[1], [0], [0], [1], [0, 0, 1, 1], [], []>} : vector<8x128xf32>, vector<128x384xf32>, vector<8x384xf32> -> vector<8x384xf32>
    %cst_86 = arith.constant dense<0.000000e+00> : vector<8x384xf32>
    %239 = tpu.matmul %226, %27, %cst_86 {dimension_numbers = #tpu.dot_dimension_numbers<[1], [0], [0], [1], [0, 0, 1, 1], [], []>} : vector<8x128xf32>, vector<128x384xf32>, vector<8x384xf32> -> vector<8x384xf32>
    %240 = vector.extract_strided_slice %235 {offsets = [0, 0], sizes = [8, 128], strides = [1, 1]} : vector<8x384xf32> to vector<8x128xf32>
    %241 = vector.extract_strided_slice %238 {offsets = [0, 0], sizes = [8, 128], strides = [1, 1]} : vector<8x384xf32> to vector<8x128xf32>
    %242 = arith.addf %240, %241 : vector<8x128xf32>
    %243 = arith.negf %242 : vector<8x128xf32>
    %244 = math.exp %243 : vector<8x128xf32>
    %cst_87 = arith.constant 1.000000e+00 : f32
    %245 = vector.broadcast %cst_87 : f32 to vector<8x128xf32>
    %246 = arith.addf %245, %244 : vector<8x128xf32>
    %247 = arith.divf %245, %246 : vector<8x128xf32>
    %248 = vector.extract_strided_slice %235 {offsets = [0, 128], sizes = [8, 128], strides = [1, 1]} : vector<8x384xf32> to vector<8x128xf32>
    %249 = vector.extract_strided_slice %238 {offsets = [0, 128], sizes = [8, 128], strides = [1, 1]} : vector<8x384xf32> to vector<8x128xf32>
    %250 = arith.addf %248, %249 : vector<8x128xf32>
    %251 = arith.negf %250 : vector<8x128xf32>
    %252 = math.exp %251 : vector<8x128xf32>
    %cst_88 = arith.constant 1.000000e+00 : f32
    %253 = vector.broadcast %cst_88 : f32 to vector<8x128xf32>
    %254 = arith.addf %253, %252 : vector<8x128xf32>
    %255 = arith.divf %253, %254 : vector<8x128xf32>
    %256 = vector.extract_strided_slice %235 {offsets = [0, 256], sizes = [8, 128], strides = [1, 1]} : vector<8x384xf32> to vector<8x128xf32>
    %257 = vector.extract_strided_slice %238 {offsets = [0, 256], sizes = [8, 128], strides = [1, 1]} : vector<8x384xf32> to vector<8x128xf32>
    %258 = vector.broadcast %29 : vector<1x128xf32> to vector<8x128xf32>
    %259 = arith.addf %257, %258 : vector<8x128xf32>
    %260 = arith.mulf %247, %259 : vector<8x128xf32>
    %261 = arith.addf %256, %260 : vector<8x128xf32>
    %262 = math.tanh %261 : vector<8x128xf32>
    %cst_89 = arith.constant 1.000000e+00 : f32
    %263 = vector.broadcast %cst_89 : f32 to vector<8x128xf32>
    %264 = arith.subf %263, %255 : vector<8x128xf32>
    %265 = arith.mulf %264, %262 : vector<8x128xf32>
    %266 = arith.mulf %255, %223 : vector<8x128xf32>
    %267 = arith.addf %265, %266 : vector<8x128xf32>
    %268 = vector.extract_strided_slice %237 {offsets = [0, 0], sizes = [8, 128], strides = [1, 1]} : vector<8x384xf32> to vector<8x128xf32>
    %269 = vector.extract_strided_slice %239 {offsets = [0, 0], sizes = [8, 128], strides = [1, 1]} : vector<8x384xf32> to vector<8x128xf32>
    %270 = arith.addf %268, %269 : vector<8x128xf32>
    %271 = arith.negf %270 : vector<8x128xf32>
    %272 = math.exp %271 : vector<8x128xf32>
    %cst_90 = arith.constant 1.000000e+00 : f32
    %273 = vector.broadcast %cst_90 : f32 to vector<8x128xf32>
    %274 = arith.addf %273, %272 : vector<8x128xf32>
    %275 = arith.divf %273, %274 : vector<8x128xf32>
    %276 = vector.extract_strided_slice %237 {offsets = [0, 128], sizes = [8, 128], strides = [1, 1]} : vector<8x384xf32> to vector<8x128xf32>
    %277 = vector.extract_strided_slice %239 {offsets = [0, 128], sizes = [8, 128], strides = [1, 1]} : vector<8x384xf32> to vector<8x128xf32>
    %278 = arith.addf %276, %277 : vector<8x128xf32>
    %279 = arith.negf %278 : vector<8x128xf32>
    %280 = math.exp %279 : vector<8x128xf32>
    %cst_91 = arith.constant 1.000000e+00 : f32
    %281 = vector.broadcast %cst_91 : f32 to vector<8x128xf32>
    %282 = arith.addf %281, %280 : vector<8x128xf32>
    %283 = arith.divf %281, %282 : vector<8x128xf32>
    %284 = vector.extract_strided_slice %237 {offsets = [0, 256], sizes = [8, 128], strides = [1, 1]} : vector<8x384xf32> to vector<8x128xf32>
    %285 = vector.extract_strided_slice %239 {offsets = [0, 256], sizes = [8, 128], strides = [1, 1]} : vector<8x384xf32> to vector<8x128xf32>
    %286 = vector.broadcast %31 : vector<1x128xf32> to vector<8x128xf32>
    %287 = arith.addf %285, %286 : vector<8x128xf32>
    %288 = arith.mulf %275, %287 : vector<8x128xf32>
    %289 = arith.addf %284, %288 : vector<8x128xf32>
    %290 = math.tanh %289 : vector<8x128xf32>
    %cst_92 = arith.constant 1.000000e+00 : f32
    %291 = vector.broadcast %cst_92 : f32 to vector<8x128xf32>
    %292 = arith.subf %291, %283 : vector<8x128xf32>
    %293 = arith.mulf %292, %290 : vector<8x128xf32>
    %294 = arith.mulf %283, %226 : vector<8x128xf32>
    %295 = arith.addf %293, %294 : vector<8x128xf32>
    %296 = vector.broadcast %227 : i32 to vector<8x1xi32>
    %297 = arith.cmpi slt, %296, %23 : vector<8x1xi32>
    %298 = vector.broadcast %228 : i32 to vector<8x1xi32>
    %299 = arith.cmpi slt, %298, %23 : vector<8x1xi32>
    %cst_93 = arith.constant 0.000000e+00 : f32
    %300 = vector.shape_cast %297 : vector<8x1xi1> to vector<8x1xi1>
    %301 = vector.broadcast %300 : vector<8x1xi1> to vector<8x128xi1>
    %302 = vector.broadcast %cst_93 : f32 to vector<8x128xf32>
    %303 = arith.select %301, %267, %302 : vector<8x128xi1>, vector<8x128xf32>
    %304 = arith.index_cast %c2_i32 : i32 to index
    %c0_94 = arith.constant 0 : index
    %c0_95 = arith.constant 0 : index
    %305 = vector.load %arg10[%304, %c0_94, %c0_95] : memref<4x8x128xf32, #tpu.memory_space<vmem>>, vector<1x8x128xf32>
    %306 = vector.shape_cast %305 : vector<1x8x128xf32> to vector<8x128xf32>
    %307 = vector.shape_cast %303 : vector<8x128xf32> to vector<1x8x128xf32>
    tpu.vector_store %arg10[%304, %c0_94, %c0_95], %307 {strides = array<i32>} : memref<4x8x128xf32, #tpu.memory_space<vmem>>, vector<1x8x128xf32>,
    %cst_96 = arith.constant 0.000000e+00 : f32
    %308 = vector.shape_cast %299 : vector<8x1xi1> to vector<8x1xi1>
    %309 = vector.broadcast %308 : vector<8x1xi1> to vector<8x128xi1>
    %310 = vector.broadcast %cst_96 : f32 to vector<8x128xf32>
    %311 = arith.select %309, %295, %310 : vector<8x128xi1>, vector<8x128xf32>
    %c3_i32_97 = arith.constant 3 : i32
    %312 = arith.subi %c3_i32_97, %c2_i32 : i32
    %313 = arith.index_cast %312 : i32 to index
    %c0_98 = arith.constant 0 : index
    %c0_99 = arith.constant 0 : index
    %314 = vector.load %arg11[%313, %c0_98, %c0_99] : memref<4x8x128xf32, #tpu.memory_space<vmem>>, vector<1x8x128xf32>
    %315 = vector.shape_cast %314 : vector<1x8x128xf32> to vector<8x128xf32>
    %316 = vector.shape_cast %311 : vector<8x128xf32> to vector<1x8x128xf32>
    tpu.vector_store %arg11[%313, %c0_98, %c0_99], %316 {strides = array<i32>} : memref<4x8x128xf32, #tpu.memory_space<vmem>>, vector<1x8x128xf32>,
    %317 = vector.shape_cast %297 : vector<8x1xi1> to vector<8x1xi1>
    %318 = vector.broadcast %317 : vector<8x1xi1> to vector<8x128xi1>
    %319 = arith.select %318, %267, %223 : vector<8x128xi1>, vector<8x128xf32>
    %320 = vector.shape_cast %299 : vector<8x1xi1> to vector<8x1xi1>
    %321 = vector.broadcast %320 : vector<8x1xi1> to vector<8x128xi1>
    %322 = arith.select %321, %295, %226 : vector<8x128xi1>, vector<8x128xf32>
    %c3_i32_100 = arith.constant 3 : i32
    %323 = arith.addi %34, %c3_i32_100 : i32
    %c11_i32_101 = arith.constant 11 : i32
    %324 = arith.subi %c11_i32_101, %323 : i32
    %c8_i32_102 = arith.constant 8 : i32
    %325 = arith.muli %c3_i32_100, %c8_i32_102 : i32
    %326 = tpu.assume_multiple %325, 8 : i32
    %c3_i32_103 = arith.constant 3 : i32
    %327 = arith.subi %c3_i32_103, %c3_i32_100 : i32
    %c8_i32_104 = arith.constant 8 : i32
    %328 = arith.muli %327, %c8_i32_104 : i32
    %329 = tpu.assume_multiple %328, 8 : i32
    %330 = arith.index_cast %326 : i32 to index
    %c0_105 = arith.constant 0 : index
    %331 = vector.load %arg14[%330, %c0_105] : memref<32x384xf32, #tpu.memory_space<vmem>>, vector<8x384xf32>
    %332 = arith.index_cast %329 : i32 to index
    %c0_106 = arith.constant 0 : index
    %333 = vector.load %arg15[%332, %c0_106] : memref<32x384xf32, #tpu.memory_space<vmem>>, vector<8x384xf32>
    %cst_107 = arith.constant dense<0.000000e+00> : vector<8x384xf32>
    %334 = tpu.matmul %319, %25, %cst_107 {dimension_numbers = #tpu.dot_dimension_numbers<[1], [0], [0], [1], [0, 0, 1, 1], [], []>} : vector<8x128xf32>, vector<128x384xf32>, vector<8x384xf32> -> vector<8x384xf32>
    %cst_108 = arith.constant dense<0.000000e+00> : vector<8x384xf32>
    %335 = tpu.matmul %322, %27, %cst_108 {dimension_numbers = #tpu.dot_dimension_numbers<[1], [0], [0], [1], [0, 0, 1, 1], [], []>} : vector<8x128xf32>, vector<128x384xf32>, vector<8x384xf32> -> vector<8x384xf32>
    %336 = vector.extract_strided_slice %331 {offsets = [0, 0], sizes = [8, 128], strides = [1, 1]} : vector<8x384xf32> to vector<8x128xf32>
    %337 = vector.extract_strided_slice %334 {offsets = [0, 0], sizes = [8, 128], strides = [1, 1]} : vector<8x384xf32> to vector<8x128xf32>
    %338 = arith.addf %336, %337 : vector<8x128xf32>
    %339 = arith.negf %338 : vector<8x128xf32>
    %340 = math.exp %339 : vector<8x128xf32>
    %cst_109 = arith.constant 1.000000e+00 : f32
    %341 = vector.broadcast %cst_109 : f32 to vector<8x128xf32>
    %342 = arith.addf %341, %340 : vector<8x128xf32>
    %343 = arith.divf %341, %342 : vector<8x128xf32>
    %344 = vector.extract_strided_slice %331 {offsets = [0, 128], sizes = [8, 128], strides = [1, 1]} : vector<8x384xf32> to vector<8x128xf32>
    %345 = vector.extract_strided_slice %334 {offsets = [0, 128], sizes = [8, 128], strides = [1, 1]} : vector<8x384xf32> to vector<8x128xf32>
    %346 = arith.addf %344, %345 : vector<8x128xf32>
    %347 = arith.negf %346 : vector<8x128xf32>
    %348 = math.exp %347 : vector<8x128xf32>
    %cst_110 = arith.constant 1.000000e+00 : f32
    %349 = vector.broadcast %cst_110 : f32 to vector<8x128xf32>
    %350 = arith.addf %349, %348 : vector<8x128xf32>
    %351 = arith.divf %349, %350 : vector<8x128xf32>
    %352 = vector.extract_strided_slice %331 {offsets = [0, 256], sizes = [8, 128], strides = [1, 1]} : vector<8x384xf32> to vector<8x128xf32>
    %353 = vector.extract_strided_slice %334 {offsets = [0, 256], sizes = [8, 128], strides = [1, 1]} : vector<8x384xf32> to vector<8x128xf32>
    %354 = vector.broadcast %29 : vector<1x128xf32> to vector<8x128xf32>
    %355 = arith.addf %353, %354 : vector<8x128xf32>
    %356 = arith.mulf %343, %355 : vector<8x128xf32>
    %357 = arith.addf %352, %356 : vector<8x128xf32>
    %358 = math.tanh %357 : vector<8x128xf32>
    %cst_111 = arith.constant 1.000000e+00 : f32
    %359 = vector.broadcast %cst_111 : f32 to vector<8x128xf32>
    %360 = arith.subf %359, %351 : vector<8x128xf32>
    %361 = arith.mulf %360, %358 : vector<8x128xf32>
    %362 = arith.mulf %351, %319 : vector<8x128xf32>
    %363 = arith.addf %361, %362 : vector<8x128xf32>
    %364 = vector.extract_strided_slice %333 {offsets = [0, 0], sizes = [8, 128], strides = [1, 1]} : vector<8x384xf32> to vector<8x128xf32>
    %365 = vector.extract_strided_slice %335 {offsets = [0, 0], sizes = [8, 128], strides = [1, 1]} : vector<8x384xf32> to vector<8x128xf32>
    %366 = arith.addf %364, %365 : vector<8x128xf32>
    %367 = arith.negf %366 : vector<8x128xf32>
    %368 = math.exp %367 : vector<8x128xf32>
    %cst_112 = arith.constant 1.000000e+00 : f32
    %369 = vector.broadcast %cst_112 : f32 to vector<8x128xf32>
    %370 = arith.addf %369, %368 : vector<8x128xf32>
    %371 = arith.divf %369, %370 : vector<8x128xf32>
    %372 = vector.extract_strided_slice %333 {offsets = [0, 128], sizes = [8, 128], strides = [1, 1]} : vector<8x384xf32> to vector<8x128xf32>
    %373 = vector.extract_strided_slice %335 {offsets = [0, 128], sizes = [8, 128], strides = [1, 1]} : vector<8x384xf32> to vector<8x128xf32>
    %374 = arith.addf %372, %373 : vector<8x128xf32>
    %375 = arith.negf %374 : vector<8x128xf32>
    %376 = math.exp %375 : vector<8x128xf32>
    %cst_113 = arith.constant 1.000000e+00 : f32
    %377 = vector.broadcast %cst_113 : f32 to vector<8x128xf32>
    %378 = arith.addf %377, %376 : vector<8x128xf32>
    %379 = arith.divf %377, %378 : vector<8x128xf32>
    %380 = vector.extract_strided_slice %333 {offsets = [0, 256], sizes = [8, 128], strides = [1, 1]} : vector<8x384xf32> to vector<8x128xf32>
    %381 = vector.extract_strided_slice %335 {offsets = [0, 256], sizes = [8, 128], strides = [1, 1]} : vector<8x384xf32> to vector<8x128xf32>
    %382 = vector.broadcast %31 : vector<1x128xf32> to vector<8x128xf32>
    %383 = arith.addf %381, %382 : vector<8x128xf32>
    %384 = arith.mulf %371, %383 : vector<8x128xf32>
    %385 = arith.addf %380, %384 : vector<8x128xf32>
    %386 = math.tanh %385 : vector<8x128xf32>
    %cst_114 = arith.constant 1.000000e+00 : f32
    %387 = vector.broadcast %cst_114 : f32 to vector<8x128xf32>
    %388 = arith.subf %387, %379 : vector<8x128xf32>
    %389 = arith.mulf %388, %386 : vector<8x128xf32>
    %390 = arith.mulf %379, %322 : vector<8x128xf32>
    %391 = arith.addf %389, %390 : vector<8x128xf32>
    %392 = vector.broadcast %323 : i32 to vector<8x1xi32>
    %393 = arith.cmpi slt, %392, %23 : vector<8x1xi32>
    %394 = vector.broadcast %324 : i32 to vector<8x1xi32>
    %395 = arith.cmpi slt, %394, %23 : vector<8x1xi32>
    %cst_115 = arith.constant 0.000000e+00 : f32
    %396 = vector.shape_cast %393 : vector<8x1xi1> to vector<8x1xi1>
    %397 = vector.broadcast %396 : vector<8x1xi1> to vector<8x128xi1>
    %398 = vector.broadcast %cst_115 : f32 to vector<8x128xf32>
    %399 = arith.select %397, %363, %398 : vector<8x128xi1>, vector<8x128xf32>
    %400 = arith.index_cast %c3_i32_100 : i32 to index
    %c0_116 = arith.constant 0 : index
    %c0_117 = arith.constant 0 : index
    %401 = vector.load %arg10[%400, %c0_116, %c0_117] : memref<4x8x128xf32, #tpu.memory_space<vmem>>, vector<1x8x128xf32>
    %402 = vector.shape_cast %401 : vector<1x8x128xf32> to vector<8x128xf32>
    %403 = vector.shape_cast %399 : vector<8x128xf32> to vector<1x8x128xf32>
    tpu.vector_store %arg10[%400, %c0_116, %c0_117], %403 {strides = array<i32>} : memref<4x8x128xf32, #tpu.memory_space<vmem>>, vector<1x8x128xf32>,
    %cst_118 = arith.constant 0.000000e+00 : f32
    %404 = vector.shape_cast %395 : vector<8x1xi1> to vector<8x1xi1>
    %405 = vector.broadcast %404 : vector<8x1xi1> to vector<8x128xi1>
    %406 = vector.broadcast %cst_118 : f32 to vector<8x128xf32>
    %407 = arith.select %405, %391, %406 : vector<8x128xi1>, vector<8x128xf32>
    %c3_i32_119 = arith.constant 3 : i32
    %408 = arith.subi %c3_i32_119, %c3_i32_100 : i32
    %409 = arith.index_cast %408 : i32 to index
    %c0_120 = arith.constant 0 : index
    %c0_121 = arith.constant 0 : index
    %410 = vector.load %arg11[%409, %c0_120, %c0_121] : memref<4x8x128xf32, #tpu.memory_space<vmem>>, vector<1x8x128xf32>
    %411 = vector.shape_cast %410 : vector<1x8x128xf32> to vector<8x128xf32>
    %412 = vector.shape_cast %407 : vector<8x128xf32> to vector<1x8x128xf32>
    tpu.vector_store %arg11[%409, %c0_120, %c0_121], %412 {strides = array<i32>} : memref<4x8x128xf32, #tpu.memory_space<vmem>>, vector<1x8x128xf32>,
    %413 = vector.shape_cast %393 : vector<8x1xi1> to vector<8x1xi1>
    %414 = vector.broadcast %413 : vector<8x1xi1> to vector<8x128xi1>
    %415 = arith.select %414, %363, %319 : vector<8x128xi1>, vector<8x128xf32>
    %416 = vector.shape_cast %395 : vector<8x1xi1> to vector<8x1xi1>
    %417 = vector.broadcast %416 : vector<8x1xi1> to vector<8x128xi1>
    %418 = arith.select %417, %391, %322 : vector<8x128xi1>, vector<8x128xf32>
    %c4_i32_122 = arith.constant 4 : i32
    %c0_123 = arith.constant 0 : index
    %c0_124 = arith.constant 0 : index
    %419 = vector.load %arg13[%c0_123, %c0_124] : memref<8x256xf32, #tpu.memory_space<vmem>>, vector<8x128xf32>
    tpu.vector_store %arg13[%c0_123, %c0_124], %415 {strides = array<i32>} : memref<8x256xf32, #tpu.memory_space<vmem>>, vector<8x128xf32>,
    %c0_125 = arith.constant 0 : index
    %c128_126 = arith.constant 128 : index
    %420 = vector.load %arg13[%c0_125, %c128_126] : memref<8x256xf32, #tpu.memory_space<vmem>>, vector<8x128xf32>
    tpu.vector_store %arg13[%c0_125, %c128_126], %418 {strides = array<i32>} : memref<8x256xf32, #tpu.memory_space<vmem>>, vector<8x128xf32>,
    %c0_127 = arith.constant 0 : index
    %c0_128 = arith.constant 0 : index
    %c0_129 = arith.constant 0 : index
    %421 = vector.load %arg12[%c0_127, %c0_128, %c0_129] : memref<2x8x128xf32, #tpu.memory_space<vmem>>, vector<1x8x128xf32>
    %422 = vector.shape_cast %421 : vector<1x8x128xf32> to vector<8x128xf32>
    %423 = vector.shape_cast %415 : vector<8x128xf32> to vector<1x8x128xf32>
    tpu.vector_store %arg12[%c0_127, %c0_128, %c0_129], %423 {strides = array<i32>} : memref<2x8x128xf32, #tpu.memory_space<vmem>>, vector<1x8x128xf32>,
    %c1_130 = arith.constant 1 : index
    %c0_131 = arith.constant 0 : index
    %c0_132 = arith.constant 0 : index
    %424 = vector.load %arg12[%c1_130, %c0_131, %c0_132] : memref<2x8x128xf32, #tpu.memory_space<vmem>>, vector<1x8x128xf32>
    %425 = vector.shape_cast %424 : vector<1x8x128xf32> to vector<8x128xf32>
    %426 = vector.shape_cast %418 : vector<8x128xf32> to vector<1x8x128xf32>
    tpu.vector_store %arg12[%c1_130, %c0_131, %c0_132], %426 {strides = array<i32>} : memref<2x8x128xf32, #tpu.memory_space<vmem>>, vector<1x8x128xf32>,
    return
  }
  func.func @transform_0(%arg0: i32, %arg1: i32) -> (i32, i32, i32) {
    %c0_i32 = arith.constant 0 : i32
    %c0_i32_0 = arith.constant 0 : i32
    return %arg1, %arg0, %c0_i32 : i32, i32, i32
  }
  func.func @transform_1(%arg0: i32, %arg1: i32) -> (i32, i32, i32) {
    %c2_i32 = arith.constant 2 : i32
    %0 = arith.subi %c2_i32, %arg1 : i32
    %c0_i32 = arith.constant 0 : i32
    %c0_i32_0 = arith.constant 0 : i32
    return %0, %arg0, %c0_i32 : i32, i32, i32
  }
  func.func @transform_2(%arg0: i32, %arg1: i32) -> (i32, i32) {
    %c0_i32 = arith.constant 0 : i32
    %c0_i32_0 = arith.constant 0 : i32
    return %arg0, %c0_i32 : i32, i32
  }
  func.func @transform_3(%arg0: i32, %arg1: i32) -> (i32, i32) {
    %c0_i32 = arith.constant 0 : i32
    %c0_i32_0 = arith.constant 0 : i32
    return %arg0, %c0_i32 : i32, i32
  }
  func.func @transform_4(%arg0: i32, %arg1: i32) -> (i32, i32, i32) {
    %c0_i32 = arith.constant 0 : i32
    %c0_i32_0 = arith.constant 0 : i32
    %c0_i32_1 = arith.constant 0 : i32
    %c0_i32_2 = arith.constant 0 : i32
    return %c0_i32, %c0_i32_0, %c0_i32_1 : i32, i32, i32
  }
  func.func @transform_5(%arg0: i32, %arg1: i32) -> (i32, i32, i32) {
    %c0_i32 = arith.constant 0 : i32
    %c0_i32_0 = arith.constant 0 : i32
    %c0_i32_1 = arith.constant 0 : i32
    %c0_i32_2 = arith.constant 0 : i32
    return %c0_i32, %c0_i32_0, %c0_i32_1 : i32, i32, i32
  }
  func.func @transform_6(%arg0: i32, %arg1: i32) -> (i32, i32, i32) {
    %c0_i32 = arith.constant 0 : i32
    %c0_i32_0 = arith.constant 0 : i32
    %c0_i32_1 = arith.constant 0 : i32
    %c0_i32_2 = arith.constant 0 : i32
    return %c0_i32, %c0_i32_0, %c0_i32_1 : i32, i32, i32
  }
  func.func @transform_7(%arg0: i32, %arg1: i32) -> (i32, i32, i32) {
    %c0_i32 = arith.constant 0 : i32
    %c0_i32_0 = arith.constant 0 : i32
    %c0_i32_1 = arith.constant 0 : i32
    %c0_i32_2 = arith.constant 0 : i32
    return %c0_i32, %c0_i32_0, %c0_i32_1 : i32, i32, i32
  }
  func.func @transform_8(%arg0: i32, %arg1: i32) -> (i32, i32, i32) {
    %c0_i32 = arith.constant 0 : i32
    %c0_i32_0 = arith.constant 0 : i32
    return %arg1, %arg0, %c0_i32 : i32, i32, i32
  }
  func.func @transform_9(%arg0: i32, %arg1: i32) -> (i32, i32, i32) {
    %c2_i32 = arith.constant 2 : i32
    %0 = arith.subi %c2_i32, %arg1 : i32
    %c0_i32 = arith.constant 0 : i32
    %c0_i32_0 = arith.constant 0 : i32
    return %0, %arg0, %c0_i32 : i32, i32, i32
  }
  func.func @transform_10(%arg0: i32, %arg1: i32) -> (i32, i32, i32) {
    %c0_i32 = arith.constant 0 : i32
    %c0_i32_0 = arith.constant 0 : i32
    %c0_i32_1 = arith.constant 0 : i32
    return %c0_i32, %arg0, %c0_i32_0 : i32, i32, i32
  }
}

</mosaic_0001>

<llo_original>
// kernel: tpu_custom_call.1
$region0: #{tpu_custom_call.1}
  #allocation0 [shape = 'u32[]', space=smem, size = 0x4, offset = 0x4, fixed_abs, tag = 'smem constant byte address 0x4 - core index']
  #allocation1 [shape = 'u32[144,128]{1,0:T(1,128)}', space=vmem, size = 0x12000, scoped, tag = 'internal scratch']
  #allocation2 [shape = 'f32[8,256]{1,0:T(8,128)}', space=vmem, size = 0x2000, scoped, tag = 'scratch operand']
  #allocation3 [shape = 'f32[32,384]{1,0:T(8,128)}', space=vmem, size = 0xc000, scoped, tag = 'scratch operand']
  #allocation4 [shape = 'f32[32,384]{1,0:T(8,128)}', space=vmem, size = 0xc000, scoped, tag = 'scratch operand']
  %s0 = inlined_call_operand.hbm [shape: f32[12,8,128], index: 0, kind: input, shape index: {}]
  %s1 = inlined_call_operand.hbm [shape: f32[12,8,128], index: 1, kind: input, shape index: {}]
  %s2 = inlined_call_operand.vmem [shape: s32[8,1], index: 2, kind: input, shape index: {}]
  %s3 = inlined_call_operand.hbm [shape: f32[8,256], index: 3, kind: input, shape index: {}]
  %s4 = inlined_call_operand.hbm [shape: f32[2,128,384], index: 4, kind: input, shape index: {}]
  %s5 = inlined_call_operand.vmem [shape: f32[2,1,384], index: 5, kind: input, shape index: {}]
  %s6 = inlined_call_operand.hbm [shape: f32[2,128,384], index: 6, kind: input, shape index: {}]
  %s7 = inlined_call_operand.vmem [shape: f32[2,1,128], index: 7, kind: input, shape index: {}]
  %s8 = inlined_call_operand.hbm [shape: f32[12,8,128], index: 8, kind: output, shape index: {0}]
  %s9 = inlined_call_operand.hbm [shape: f32[12,8,128], index: 9, kind: output, shape index: {1}]
  %s10 = inlined_call_operand.hbm [shape: f32[2,8,128], index: 10, kind: output, shape index: {2}]
  %11 = xla_tuple %s8, %s9, %s10
  %s12 = sld [smem:[#allocation0]]
  $region105: #{tpu_custom_call.1} parent=0
    _
  %s14 = ssub.s32 1, %s12
  %s15 = scalar_select 0, %s14, %s12
  $region1: #{tpu_custom_call.1} parent=0
    #allocation5 [shape = 'u8[32768]{0}', space=vmem, size = 0x8000, scoped, tag = 'input window, operand 0']
    #allocation6 [shape = 's32[2]{0}', space=sflag, size = 0x8, scoped, tag = 'scoped memory for tpu_custom_call.1']
    #allocation7 [shape = 's32[2]{0}', space=sflag, size = 0x8, scoped, tag = 'scoped memory for tpu_custom_call.1']
    #allocation8 [shape = 'u8[32768]{0}', space=vmem, size = 0x8000, scoped, tag = 'input window, operand 1']
    #allocation9 [shape = 's32[2]{0}', space=sflag, size = 0x8, scoped, tag = 'scoped memory for tpu_custom_call.1']
    #allocation10 [shape = 'u8[8192]{0}', space=vmem, size = 0x2000, scoped, tag = 'input window, operand 3, single buffered']
    #allocation11 [shape = 'u8[393216]{0}', space=vmem, size = 0x60000, scoped, tag = 'input window, operand 4, single buffered']
    #allocation12 [shape = 's32[1]{0}', space=sflag, size = 0x4, scoped, tag = 'scoped memory for tpu_custom_call.1']
    #allocation13 [shape = 'u8[393216]{0}', space=vmem, size = 0x60000, scoped, tag = 'input window, operand 6, single buffered']
    #allocation14 [shape = 'u8[32768]{0}', space=vmem, size = 0x8000, scoped, tag = 'output window, operand 0']
    #allocation15 [shape = 'u8[32768]{0}', space=vmem, size = 0x8000, scoped, tag = 'output window, operand 1']
    #allocation16 [shape = 's32[2]{0}', space=sflag, size = 0x8, scoped, tag = 'scoped memory for tpu_custom_call.1']
    #allocation17 [shape = 'u8[8192]{0}', space=vmem, size = 0x2000, scoped, tag = 'output window, operand 2, single buffered']
    %16 = vsyncpa [#allocation6], 0
    %s17 = scalar_lea.sflag [#allocation6], 1
    %18 = vsyncpa %s17, 0
    %19 = vsyncpa [#allocation9], 0
    %s20 = scalar_lea.sflag [#allocation9], 1
    %21 = vsyncpa %s20, 0
    %22 = vsyncpa [#allocation12], 0
    %23 = vsyncpa [#allocation7], 0
    %s24 = scalar_lea.sflag [#allocation7], 1
    %25 = vsyncpa %s24, 0
    %26 = vsyncpa [#allocation16], 0
    %s27 = scalar_lea.sflag [#allocation16], 1
    %28 = vsyncpa %s27, 0
    loop: start=0, step=1, limit=5
    $region2: #{tpu_custom_call.1} parent=1 // loop_pre_header
      _
    $region3: #{tpu_custom_call.1} parent=1 // loop_header
      %s30 = sphi 0, %s34
      %p31 = scmp.ge.s32.totalorder %s30, 5
      %s37 = sphi 0, %s49
      %s38 = sphi 0, %s45
      %s39 = sphi 0, %s37
      %s40 = sphi 0, %s38
      %s41 = sphi 0, %s39
      %s42 = sphi 0, %s40
      %s54 = sphi 0, %s56
      %s57 = sphi 0, %s54
      %s58 = sphi 0, %s57
      %s74 = sphi 0, %s58
      %s84 = sphi 0, %s86
      %s87 = sphi 0, %s84
      %s88 = sphi 0, %s87
      %s104 = sphi 0, %s88
      %s110 = sphi 0, %s112
      %s113 = sphi 0, %s110
      %s114 = sphi 0, %s113
      %s130 = sphi 0, %s114
      %s136 = sphi 0, %s138
      %s139 = sphi 0, %s136
      %s140 = sphi 0, %s139
      %s156 = sphi 0, %s140
      %s160 = sphi 0, %s160
      %s162 = sphi 0, %s160
      %s163 = sphi 0, %s162
      %s177 = sphi 0, %s163
      %s181 = sphi 0, %s181
      %s183 = sphi 0, %s181
      %s184 = sphi 0, %s183
      %s198 = sphi 0, %s184
      %s202 = sphi 0, %s202
      %s204 = sphi 0, %s202
      %s205 = sphi 0, %s204
      %s219 = sphi 0, %s205
      %s223 = sphi 0, %s223
      %s225 = sphi 0, %s223
      %s226 = sphi 0, %s225
      %s240 = sphi 0, %s226
      %s248 = sphi 0, %s250
      %s251 = sphi 0, %s248
      %s252 = sphi 0, %s251
      %s268 = sphi 0, %s252
      %s278 = sphi 0, %s280
      %s281 = sphi 0, %s278
      %s282 = sphi 0, %s281
      %s298 = sphi 0, %s282
      %s304 = sphi 0, %s306
      %s307 = sphi 0, %s304
      %s308 = sphi 0, %s307
      %s324 = sphi 0, %s308
    $region4: #{tpu_custom_call.1} parent=1 // loop_header_branch
      %33 = sbr.rel (%p31) target = $region8
    $region5: #{tpu_custom_call.1} parent=1 // loop_body
      %s35 = ssub.s32 %s30, 1
      %s36 = ssub.s32 %s30, 2
      %s43 = sadd.s32 1, %s38
      %p44 = scmp.ge.s32.totalorder %s43, 3
      %s45 = scalar_select %p44, 0, %s43
      %s46 = sadd.s32 1, %s37
      %s47 = scalar_select %p44, %s46, %s37
      %p48 = scmp.ge.s32.totalorder %s47, 1
      %s49 = scalar_select %p48, 0, %s47
      %s50 = ssub.s32 %s38, %s45
      %s51 = ssub.s32 %s37, %s49
      %s52 = sor.u32 %s50, %s51
      %p53 = scmp.eq.s32.totalorder %s52, 0
      %s55 = sadd.s32 %s54, 1
      %s56 = scalar_select %p53, %s54, %s55
      %p59 = pneg %p53
      %p60 = scmp.eq.s32.totalorder %s30, 2
      %p61 = por %p59, %p60
      %p62 = scmp.ne.s32.totalorder %s54, %s57
      %p63 = scmp.eq.s32.totalorder %s30, 0
      %p64 = por %p62, %p63
      %p65 = scmp.ne.s32.totalorder %s54, %s57
      %p66 = scmp.eq.s32.totalorder %s35, 2
      %p67 = por %p65, %p66
      %p68 = scmp.ne.s32.totalorder %s57, %s58
      %p69 = scmp.eq.s32.totalorder %s35, 0
      %p70 = por %p68, %p69
      %p71 = scmp.ne.s32.totalorder %s57, %s58
      %p72 = scmp.eq.s32.totalorder %s36, 2
      %p73 = por %p71, %p72
      %p75 = scmp.ne.s32.totalorder %s58, %s74
      %p76 = scmp.eq.s32.totalorder %s36, 0
      %p77 = por %p75, %p76
      %s78 = ssub.s32 2, %s38
      %s79 = ssub.s32 2, %s45
      %s80 = ssub.s32 %s78, %s79
      %s81 = ssub.s32 %s37, %s49
      %s82 = sor.u32 %s80, %s81
      %p83 = scmp.eq.s32.totalorder %s82, 0
      %s85 = sadd.s32 %s84, 1
      %s86 = scalar_select %p83, %s84, %s85
      %p89 = pneg %p83
      %p90 = scmp.eq.s32.totalorder %s30, 2
      %p91 = por %p89, %p90
      %p92 = scmp.ne.s32.totalorder %s84, %s87
      %p93 = scmp.eq.s32.totalorder %s30, 0
      %p94 = por %p92, %p93
      %p95 = scmp.ne.s32.totalorder %s84, %s87
      %p96 = scmp.eq.s32.totalorder %s35, 2
      %p97 = por %p95, %p96
      %p98 = scmp.ne.s32.totalorder %s87, %s88
      %p99 = scmp.eq.s32.totalorder %s35, 0
      %p100 = por %p98, %p99
      %p101 = scmp.ne.s32.totalorder %s87, %s88
      %p102 = scmp.eq.s32.totalorder %s36, 2
      %p103 = por %p101, %p102
      %p105 = scmp.ne.s32.totalorder %s88, %s104
      %p106 = scmp.eq.s32.totalorder %s36, 0
      %p107 = por %p105, %p106
      %s108 = ssub.s32 %s37, %s49
      %p109 = scmp.eq.s32.totalorder %s108, 0
      %s111 = sadd.s32 %s110, 1
      %s112 = scalar_select %p109, %s110, %s111
      %p115 = pneg %p109
      %p116 = scmp.eq.s32.totalorder %s30, 2
      %p117 = por %p115, %p116
      %p118 = scmp.ne.s32.totalorder %s110, %s113
      %p119 = scmp.eq.s32.totalorder %s30, 0
      %p120 = por %p118, %p119
      %p121 = scmp.ne.s32.totalorder %s110, %s113
      %p122 = scmp.eq.s32.totalorder %s35, 2
      %p123 = por %p121, %p122
      %p124 = scmp.ne.s32.totalorder %s113, %s114
      %p125 = scmp.eq.s32.totalorder %s35, 0
      %p126 = por %p124, %p125
      %p127 = scmp.ne.s32.totalorder %s113, %s114
      %p128 = scmp.eq.s32.totalorder %s36, 2
      %p129 = por %p127, %p128
      %p131 = scmp.ne.s32.totalorder %s114, %s130
      %p132 = scmp.eq.s32.totalorder %s36, 0
      %p133 = por %p131, %p132
      %s134 = ssub.s32 %s37, %s49
      %p135 = scmp.eq.s32.totalorder %s134, 0
      %s137 = sadd.s32 %s136, 1
      %s138 = scalar_select %p135, %s136, %s137
      %p141 = pneg %p135
      %p142 = scmp.eq.s32.totalorder %s30, 2
      %p143 = por %p141, %p142
      %p144 = scmp.ne.s32.totalorder %s136, %s139
      %p145 = scmp.eq.s32.totalorder %s30, 0
      %p146 = por %p144, %p145
      %p147 = scmp.ne.s32.totalorder %s136, %s139
      %p148 = scmp.eq.s32.totalorder %s35, 2
      %p149 = por %p147, %p148
      %p150 = scmp.ne.s32.totalorder %s139, %s140
      %p151 = scmp.eq.s32.totalorder %s35, 0
      %p152 = por %p150, %p151
      %p153 = scmp.ne.s32.totalorder %s139, %s140
      %p154 = scmp.eq.s32.totalorder %s36, 2
      %p155 = por %p153, %p154
      %p157 = scmp.ne.s32.totalorder %s140, %s156
      %p158 = scmp.eq.s32.totalorder %s36, 0
      %p159 = por %p157, %p158
      %s161 = sadd.s32 %s160, 1
      %p164 = scmp.eq.s32.totalorder %s30, 2
      %p165 = scmp.ne.s32.totalorder %s160, %s162
      %p166 = scmp.eq.s32.totalorder %s30, 0
      %p167 = por %p165, %p166
      %p168 = scmp.ne.s32.totalorder %s160, %s162
      %p169 = scmp.eq.s32.totalorder %s35, 2
      %p170 = por %p168, %p169
      %p171 = scmp.ne.s32.totalorder %s162, %s163
      %p172 = scmp.eq.s32.totalorder %s35, 0
      %p173 = por %p171, %p172
      %p174 = scmp.ne.s32.totalorder %s162, %s163
      %p175 = scmp.eq.s32.totalorder %s36, 2
      %p176 = por %p174, %p175
      %p178 = scmp.ne.s32.totalorder %s163, %s177
      %p179 = scmp.eq.s32.totalorder %s36, 0
      %p180 = por %p178, %p179
      %s182 = sadd.s32 %s181, 1
      %p185 = scmp.eq.s32.totalorder %s30, 2
      %p186 = scmp.ne.s32.totalorder %s181, %s183
      %p187 = scmp.eq.s32.totalorder %s30, 0
      %p188 = por %p186, %p187
      %p189 = scmp.ne.s32.totalorder %s181, %s183
      %p190 = scmp.eq.s32.totalorder %s35, 2
      %p191 = por %p189, %p190
      %p192 = scmp.ne.s32.totalorder %s183, %s184
      %p193 = scmp.eq.s32.totalorder %s35, 0
      %p194 = por %p192, %p193
      %p195 = scmp.ne.s32.totalorder %s183, %s184
      %p196 = scmp.eq.s32.totalorder %s36, 2
      %p197 = por %p195, %p196
      %p199 = scmp.ne.s32.totalorder %s184, %s198
      %p200 = scmp.eq.s32.totalorder %s36, 0
      %p201 = por %p199, %p200
      %s203 = sadd.s32 %s202, 1
      %p206 = scmp.eq.s32.totalorder %s30, 2
      %p207 = scmp.ne.s32.totalorder %s202, %s204
      %p208 = scmp.eq.s32.totalorder %s30, 0
      %p209 = por %p207, %p208
      %p210 = scmp.ne.s32.totalorder %s202, %s204
      %p211 = scmp.eq.s32.totalorder %s35, 2
      %p212 = por %p210, %p211
      %p213 = scmp.ne.s32.totalorder %s204, %s205
      %p214 = scmp.eq.s32.totalorder %s35, 0
      %p215 = por %p213, %p214
      %p216 = scmp.ne.s32.totalorder %s204, %s205
      %p217 = scmp.eq.s32.totalorder %s36, 2
      %p218 = por %p216, %p217
      %p220 = scmp.ne.s32.totalorder %s205, %s219
      %p221 = scmp.eq.s32.totalorder %s36, 0
      %p222 = por %p220, %p221
      %s224 = sadd.s32 %s223, 1
      %p227 = scmp.eq.s32.totalorder %s30, 2
      %p228 = scmp.ne.s32.totalorder %s223, %s225
      %p229 = scmp.eq.s32.totalorder %s30, 0
      %p230 = por %p228, %p229
      %p231 = scmp.ne.s32.totalorder %s223, %s225
      %p232 = scmp.eq.s32.totalorder %s35, 2
      %p233 = por %p231, %p232
      %p234 = scmp.ne.s32.totalorder %s225, %s226
      %p235 = scmp.eq.s32.totalorder %s35, 0
      %p236 = por %p234, %p235
      %p237 = scmp.ne.s32.totalorder %s225, %s226
      %p238 = scmp.eq.s32.totalorder %s36, 2
      %p239 = por %p237, %p238
      %p241 = scmp.ne.s32.totalorder %s226, %s240
      %p242 = scmp.eq.s32.totalorder %s36, 0
      %p243 = por %p241, %p242
      %s244 = ssub.s32 %s38, %s45
      %s245 = ssub.s32 %s37, %s49
      %s246 = sor.u32 %s244, %s245
      %p247 = scmp.eq.s32.totalorder %s246, 0
      %s249 = sadd.s32 %s248, 1
      %s250 = scalar_select %p247, %s248, %s249
      %p253 = pneg %p247
      %p254 = scmp.eq.s32.totalorder %s30, 2
      %p255 = por %p253, %p254
      %p256 = scmp.ne.s32.totalorder %s248, %s251
      %p257 = scmp.eq.s32.totalorder %s30, 0
      %p258 = por %p256, %p257
      %p259 = scmp.ne.s32.totalorder %s248, %s251
      %p260 = scmp.eq.s32.totalorder %s35, 2
      %p261 = por %p259, %p260
      %p262 = scmp.ne.s32.totalorder %s251, %s252
      %p263 = scmp.eq.s32.totalorder %s35, 0
      %p264 = por %p262, %p263
      %p265 = scmp.ne.s32.totalorder %s251, %s252
      %p266 = scmp.eq.s32.totalorder %s36, 2
      %p267 = por %p265, %p266
      %p269 = scmp.ne.s32.totalorder %s252, %s268
      %p270 = scmp.eq.s32.totalorder %s36, 0
      %p271 = por %p269, %p270
      %s272 = ssub.s32 2, %s38
      %s273 = ssub.s32 2, %s45
      %s274 = ssub.s32 %s272, %s273
      %s275 = ssub.s32 %s37, %s49
      %s276 = sor.u32 %s274, %s275
      %p277 = scmp.eq.s32.totalorder %s276, 0
      %s279 = sadd.s32 %s278, 1
      %s280 = scalar_select %p277, %s278, %s279
      %p283 = pneg %p277
      %p284 = scmp.eq.s32.totalorder %s30, 2
      %p285 = por %p283, %p284
      %p286 = scmp.ne.s32.totalorder %s278, %s281
      %p287 = scmp.eq.s32.totalorder %s30, 0
      %p288 = por %p286, %p287
      %p289 = scmp.ne.s32.totalorder %s278, %s281
      %p290 = scmp.eq.s32.totalorder %s35, 2
      %p291 = por %p289, %p290
      %p292 = scmp.ne.s32.totalorder %s281, %s282
      %p293 = scmp.eq.s32.totalorder %s35, 0
      %p294 = por %p292, %p293
      %p295 = scmp.ne.s32.totalorder %s281, %s282
      %p296 = scmp.eq.s32.totalorder %s36, 2
      %p297 = por %p295, %p296
      %p299 = scmp.ne.s32.totalorder %s282, %s298
      %p300 = scmp.eq.s32.totalorder %s36, 0
      %p301 = por %p299, %p300
      %s302 = ssub.s32 %s37, %s49
      %p303 = scmp.eq.s32.totalorder %s302, 0
      %s305 = sadd.s32 %s304, 1
      %s306 = scalar_select %p303, %s304, %s305
      %p309 = pneg %p303
      %p310 = scmp.eq.s32.totalorder %s30, 2
      %p311 = por %p309, %p310
      %p312 = scmp.ne.s32.totalorder %s304, %s307
      %p313 = scmp.eq.s32.totalorder %s30, 0
      %p314 = por %p312, %p313
      %p315 = scmp.ne.s32.totalorder %s304, %s307
      %p316 = scmp.eq.s32.totalorder %s35, 2
      %p317 = por %p315, %p316
      %p318 = scmp.ne.s32.totalorder %s307, %s308
      %p319 = scmp.eq.s32.totalorder %s35, 0
      %p320 = por %p318, %p319
      %p321 = scmp.ne.s32.totalorder %s307, %s308
      %p322 = scmp.eq.s32.totalorder %s36, 2
      %p323 = por %p321, %p322
      %p325 = scmp.ne.s32.totalorder %s308, %s324
      %p326 = scmp.eq.s32.totalorder %s36, 0
      %p327 = por %p325, %p326
      %p328 = scmp.le.s32.totalorder 1, %s30
      %p329 = scmp.lt.s32.totalorder %s30, 4
      %p330 = pnand %p328, %p329
      %p331 = pneg %p330
      // Predicated region
      $region9: #{tpu_custom_call.1} parent=5 // pred_check
        _
      $region10: #{tpu_custom_call.1} parent=5 // pred_check_branch
        %333 = sbr.rel (%p330) target = $region12
      $region11: #{tpu_custom_call.1} parent=5 // pred_region
        %s334 = ssub.s32 %s30, 1
        // Predicated region
        $region13: #{tpu_custom_call.1} parent=11 // pred_check
          %p335 = pneg %p126
        $region14: #{tpu_custom_call.1} parent=11 // pred_check_branch
          %337 = sbr.rel (%p335) target = $region16
        $region15: #{tpu_custom_call.1} parent=11 // pred_region
          %p338 = scmp.lt.s32.totalorder %s39, 0
          %s339 = scalar_select %p338, %s39, 0
          %s340 = smul.addr %s339, 8
          %s341 = scalar_lea.vmem %s2, %s340
        $region16: #{tpu_custom_call.1} parent=11 // pred_fallthru
          _
        // Predicated region
        $region17: #{tpu_custom_call.1} parent=11 // pred_check
          %p342 = pneg %p152
        $region18: #{tpu_custom_call.1} parent=11 // pred_check_branch
          %344 = sbr.rel (%p342) target = $region20
        $region19: #{tpu_custom_call.1} parent=11 // pred_region
          %s346 = ssub.s32 256, 256
          %347 = vsyncadd [#allocation9], %s346
          %s348 = smul.addr %s39, 2
          %s349 = smul.addr %s348, 128
          %s350 = scalar_lea.hbm %s3, %s349
          %s352 = sshll.u32 [#allocation10], 4
          %s353 = int_to_ptr.vmem [resolvable:$true] %s352
          %355 = dma.hbm_to_vmem [thread:$0]  %s350, 256, %s353, [#allocation9]
        $region20: #{tpu_custom_call.1} parent=11 // pred_fallthru
          _
        // Predicated region
        $region21: #{tpu_custom_call.1} parent=11 // pred_check
          %p356 = pneg %p173
        $region22: #{tpu_custom_call.1} parent=11 // pred_check_branch
          %358 = sbr.rel (%p356) target = $region24
        $region23: #{tpu_custom_call.1} parent=11 // pred_region
          %s360 = ssub.s32 12288, 12288
          %361 = vsyncadd [#allocation12], %s360
          %s362 = sshll.u32 [#allocation11], 4
          %s363 = int_to_ptr.vmem [resolvable:$true] %s362
          %368 = dma.hbm_to_vmem [thread:$0]  %s4, 12288, %s363, [#allocation12], 384, 384, 24
        $region24: #{tpu_custom_call.1} parent=11 // pred_fallthru
          _
        // Predicated region
        $region25: #{tpu_custom_call.1} parent=11 // pred_check
          %p369 = pneg %p194
        $region26: #{tpu_custom_call.1} parent=11 // pred_check_branch
          %371 = sbr.rel (%p369) target = $region28
        $region27: #{tpu_custom_call.1} parent=11 // pred_region
          _
        $region28: #{tpu_custom_call.1} parent=11 // pred_fallthru
          _
        // Predicated region
        $region29: #{tpu_custom_call.1} parent=11 // pred_check
          %p372 = pneg %p215
        $region30: #{tpu_custom_call.1} parent=11 // pred_check_branch
          %374 = sbr.rel (%p372) target = $region32
        $region31: #{tpu_custom_call.1} parent=11 // pred_region
          %s376 = ssub.s32 12288, 12288
          %377 = vsyncadd [#allocation12], %s376
          %s378 = sshll.u32 [#allocation13], 4
          %s379 = int_to_ptr.vmem [resolvable:$true] %s378
          %384 = dma.hbm_to_vmem [thread:$0]  %s6, 12288, %s379, [#allocation12], 384, 384, 24
        $region32: #{tpu_custom_call.1} parent=11 // pred_fallthru
          _
        // Predicated region
        $region33: #{tpu_custom_call.1} parent=11 // pred_check
          %p385 = pneg %p236
        $region34: #{tpu_custom_call.1} parent=11 // pred_check_branch
          %387 = sbr.rel (%p385) target = $region36
        $region35: #{tpu_custom_call.1} parent=11 // pred_region
          _
        $region36: #{tpu_custom_call.1} parent=11 // pred_fallthru
          _
      $region12: #{tpu_custom_call.1} parent=5 // pred_fallthru
        _
      %p388 = scmp.lt.s32.totalorder %s30, 3
      // Predicated region
      $region37: #{tpu_custom_call.1} parent=5 // pred_check
        %p389 = pneg %p388
      $region38: #{tpu_custom_call.1} parent=5 // pred_check_branch
        %391 = sbr.rel (%p389) target = $region40
      $region39: #{tpu_custom_call.1} parent=5 // pred_region
        // Predicated region
        $region41: #{tpu_custom_call.1} parent=39 // pred_check
          %p392 = pneg %p64
        $region42: #{tpu_custom_call.1} parent=39 // pred_check_branch
          %394 = sbr.rel (%p392) target = $region44
        $region43: #{tpu_custom_call.1} parent=39 // pred_region
          %s395 = sand.u32 %s54, 1
          %s396 = scalar_lea.sflag [#allocation6], %s395
          %s397 = sand.u32 %s54, 1
          %s398 = smul.addr %s397, 32
          %s399 = scalar_lea.vmem [#allocation5], %s398
          %s400 = smul.u32 4, %s38
          %s402 = ssub.s32 512, 512
          %403 = vsyncadd %s396, %s402
          %s404 = sadd.s32 %s37, %s400
          %s405 = smul.addr %s404, 128
          %s406 = scalar_lea.hbm %s0, %s405
          %s407 = sshll.u32 %s399, 4
          %s408 = int_to_ptr.vmem [resolvable:$true] %s407
          %413 = dma.hbm_to_vmem [thread:$0]  %s406, 512, %s408, %s396, 128, 128, 8
        $region44: #{tpu_custom_call.1} parent=39 // pred_fallthru
          _
        // Predicated region
        $region45: #{tpu_custom_call.1} parent=39 // pred_check
          %p414 = pneg %p94
        $region46: #{tpu_custom_call.1} parent=39 // pred_check_branch
          %416 = sbr.rel (%p414) target = $region48
        $region47: #{tpu_custom_call.1} parent=39 // pred_region
          %s417 = sand.u32 %s30, 1
          %s418 = scalar_lea.sflag [#allocation9], %s417
          %s419 = sand.u32 %s84, 1
          %s420 = smul.addr %s419, 32
          %s421 = scalar_lea.vmem [#allocation8], %s420
          %s422 = ssub.s32 2, %s38
          %s423 = smul.u32 4, %s422
          %s425 = ssub.s32 512, 512
          %426 = vsyncadd %s418, %s425
          %s427 = sadd.s32 %s37, %s423
          %s428 = smul.addr %s427, 128
          %s429 = scalar_lea.hbm %s1, %s428
          %s430 = sshll.u32 %s421, 4
          %s431 = int_to_ptr.vmem [resolvable:$true] %s430
          %436 = dma.hbm_to_vmem [thread:$0]  %s429, 512, %s431, %s418, 128, 128, 8
        $region48: #{tpu_custom_call.1} parent=39 // pred_fallthru
          _
      $region40: #{tpu_custom_call.1} parent=5 // pred_fallthru
        _
      %p437 = scmp.le.s32.totalorder 1, %s30
      %p438 = scmp.lt.s32.totalorder %s30, 4
      %p439 = pnand %p437, %p438
      %p440 = pneg %p439
      // Predicated region
      $region49: #{tpu_custom_call.1} parent=5 // pred_check
        _
      $region50: #{tpu_custom_call.1} parent=5 // pred_check_branch
        %442 = sbr.rel (%p439) target = $region52
      $region51: #{tpu_custom_call.1} parent=5 // pred_region
        %s443 = ssub.s32 %s30, 1
        %s444 = sand.u32 %s57, 1
        %s445 = scalar_lea.sflag [#allocation6], %s444
        %s446 = sand.u32 %s57, 1
        %s447 = smul.addr %s446, 32
        %s448 = scalar_lea.vmem [#allocation5], %s447
        // Predicated region
        $region53: #{tpu_custom_call.1} parent=51 // pred_check
          %p449 = pneg %p70
        $region54: #{tpu_custom_call.1} parent=51 // pred_check_branch
          %451 = sbr.rel (%p449) target = $region56
        $region55: #{tpu_custom_call.1} parent=51 // pred_region
          %452 = dma.done %s445, 512
        $region56: #{tpu_custom_call.1} parent=51 // pred_fallthru
          _
        %s453 = sand.u32 %s35, 1
        %s454 = scalar_lea.sflag [#allocation9], %s453
        %s455 = sand.u32 %s87, 1
        %s456 = smul.addr %s455, 32
        %s457 = scalar_lea.vmem [#allocation8], %s456
        // Predicated region
        $region57: #{tpu_custom_call.1} parent=51 // pred_check
          %p458 = pneg %p100
        $region58: #{tpu_custom_call.1} parent=51 // pred_check_branch
          %460 = sbr.rel (%p458) target = $region60
        $region59: #{tpu_custom_call.1} parent=51 // pred_region
          %461 = dma.done %s454, 512
        $region60: #{tpu_custom_call.1} parent=51 // pred_fallthru
          _
        // Predicated region
        $region61: #{tpu_custom_call.1} parent=51 // pred_check
          %p462 = pneg %p152
        $region62: #{tpu_custom_call.1} parent=51 // pred_check_branch
          %464 = sbr.rel (%p462) target = $region64
        $region63: #{tpu_custom_call.1} parent=51 // pred_region
          %465 = dma.done [#allocation9], 256
        $region64: #{tpu_custom_call.1} parent=51 // pred_fallthru
          _
        // Predicated region
        $region65: #{tpu_custom_call.1} parent=51 // pred_check
          %p466 = pneg %p173
        $region66: #{tpu_custom_call.1} parent=51 // pred_check_branch
          %468 = sbr.rel (%p466) target = $region68
        $region67: #{tpu_custom_call.1} parent=51 // pred_region
          %469 = dma.done [#allocation12], 12288
        $region68: #{tpu_custom_call.1} parent=51 // pred_fallthru
          _
        // Predicated region
        $region69: #{tpu_custom_call.1} parent=51 // pred_check
          %p470 = pneg %p215
        $region70: #{tpu_custom_call.1} parent=51 // pred_check_branch
          %472 = sbr.rel (%p470) target = $region72
        $region71: #{tpu_custom_call.1} parent=51 // pred_region
          %473 = dma.done [#allocation12], 12288
        $region72: #{tpu_custom_call.1} parent=51 // pred_fallthru
          _
        %s474 = sand.u32 %s57, 1
        %s475 = scalar_lea.sflag [#allocation6], %s474
        %s476 = sand.u32 %s57, 1
        %s477 = smul.addr %s476, 32
        %s478 = scalar_lea.vmem [#allocation5], %s477
        %p479 = pneg %p70
        %p480 = pneg %p67
        %s481 = sand.u32 %s35, 1
        %s482 = scalar_lea.sflag [#allocation9], %s481
        %s483 = sand.u32 %s87, 1
        %s484 = smul.addr %s483, 32
        %s485 = scalar_lea.vmem [#allocation8], %s484
        %p486 = pneg %p100
        %p487 = pneg %p97
        %p488 = scmp.lt.s32.totalorder %s39, 0
        %s489 = scalar_select %p488, %s39, 0
        %s490 = smul.addr %s489, 8
        %s491 = scalar_lea.vmem %s2, %s490
        %p492 = pneg %p126
        %p493 = pneg %p123
        %p494 = pneg %p152
        %p495 = pneg %p149
        %p496 = pneg %p173
        %p497 = pneg %p170
        %p498 = pneg %p194
        %p499 = pneg %p191
        %p500 = pneg %p215
        %p501 = pneg %p212
        %p502 = pneg %p236
        %p503 = pneg %p233
        %p504 = pneg %p264
        %p505 = pneg %p261
        %s506 = sand.u32 %s251, 1
        %s507 = scalar_lea.sflag [#allocation7], %s506
        %s508 = sand.u32 %s251, 1
        %s509 = smul.addr %s508, 32
        %s510 = scalar_lea.vmem [#allocation14], %s509
        %p511 = pneg %p294
        %p512 = pneg %p291
        %s513 = sand.u32 %s35, 1
        %s514 = scalar_lea.sflag [#allocation16], %s513
        %s515 = sand.u32 %s281, 1
        %s516 = smul.addr %s515, 32
        %s517 = scalar_lea.vmem [#allocation15], %s516
        %p518 = pneg %p320
        %p519 = pneg %p317
        %s520 = smul.u32 4, %s40
        %s521 = ssub.s32 2, %s40
        %s522 = smul.u32 4, %s521
        %p523 = scmp.lt.s32.totalorder %s39, 0
        %s524 = scalar_select %p523, %s39, 0
        %s525 = smul.addr %s524, 8
        %s526 = scalar_lea.vmem %s2, %s525
        %s527 = smul.u32 4, %s40
        %s528 = ssub.s32 2, %s40
        %s529 = smul.u32 4, %s528
        %p530 = scmp.eq.s32.totalorder %s40, 0
        // Predicated region
        $region73: #{tpu_custom_call.1} parent=51 // pred_check
          %p531 = pneg %p530
        $region74: #{tpu_custom_call.1} parent=51 // pred_check_branch
          %533 = sbr.rel (%p531) target = $region76
        $region75: #{tpu_custom_call.1} parent=51 // pred_region
          %v534 = vld [vmem:[#allocation10] sm:$0xff]
          %v535 = vld [vmem:[#allocation10 + $0x8] sm:$0xff]
          %536 = vst [vmem:[#allocation2] sm:$0xff] %v534
          %537 = vst [vmem:[#allocation2 + $0x8] sm:$0xff] %v535
        $region76: #{tpu_custom_call.1} parent=51 // pred_fallthru
          _
        %v538 = vld [vmem:[#allocation11] sm:$0xff]
        %v539 = vld [vmem:[#allocation11 + $0x8] sm:$0xff]
        %v540 = vld [vmem:[#allocation11 + $0x10] sm:$0xff]
        %v541 = vld [vmem:[#allocation11 + $0x18] sm:$0xff]
        %v542 = vld [vmem:[#allocation11 + $0x20] sm:$0xff]
        %v543 = vld [vmem:[#allocation11 + $0x28] sm:$0xff]
        %v544 = vld [vmem:[#allocation11 + $0x30] sm:$0xff]
        %v545 = vld [vmem:[#allocation11 + $0x38] sm:$0xff]
        %v546 = vld [vmem:[#allocation11 + $0x40] sm:$0xff]
        %v547 = vld [vmem:[#allocation11 + $0x48] sm:$0xff]
        %v548 = vld [vmem:[#allocation11 + $0x50] sm:$0xff]
        %v549 = vld [vmem:[#allocation11 + $0x58] sm:$0xff]
        %v550 = vld [vmem:[#allocation11 + $0x60] sm:$0xff]
        %v551 = vld [vmem:[#allocation11 + $0x68] sm:$0xff]
        %v552 = vld [vmem:[#allocation11 + $0x70] sm:$0xff]
        %v553 = vld [vmem:[#allocation11 + $0x78] sm:$0xff]
        %v554 = vld [vmem:[#allocation11 + $0x80] sm:$0xff]
        %v555 = vld [vmem:[#allocation11 + $0x88] sm:$0xff]
        %v556 = vld [vmem:[#allocation11 + $0x90] sm:$0xff]
        %v557 = vld [vmem:[#allocation11 + $0x98] sm:$0xff]
        %v558 = vld [vmem:[#allocation11 + $0xa0] sm:$0xff]
        %v559 = vld [vmem:[#allocation11 + $0xa8] sm:$0xff]
        %v560 = vld [vmem:[#allocation11 + $0xb0] sm:$0xff]
        %v561 = vld [vmem:[#allocation11 + $0xb8] sm:$0xff]
        %v562 = vld [vmem:[#allocation11 + $0xc0] sm:$0xff]
        %v563 = vld [vmem:[#allocation11 + $0xc8] sm:$0xff]
        %v564 = vld [vmem:[#allocation11 + $0xd0] sm:$0xff]
        %v565 = vld [vmem:[#allocation11 + $0xd8] sm:$0xff]
        %v566 = vld [vmem:[#allocation11 + $0xe0] sm:$0xff]
        %v567 = vld [vmem:[#allocation11 + $0xe8] sm:$0xff]
        %v568 = vld [vmem:[#allocation11 + $0xf0] sm:$0xff]
        %v569 = vld [vmem:[#allocation11 + $0xf8] sm:$0xff]
        %v570 = vld [vmem:[#allocation11 + $0x100] sm:$0xff]
        %v571 = vld [vmem:[#allocation11 + $0x108] sm:$0xff]
        %v572 = vld [vmem:[#allocation11 + $0x110] sm:$0xff]
        %v573 = vld [vmem:[#allocation11 + $0x118] sm:$0xff]
        %v574 = vld [vmem:[#allocation11 + $0x120] sm:$0xff]
        %v575 = vld [vmem:[#allocation11 + $0x128] sm:$0xff]
        %v576 = vld [vmem:[#allocation11 + $0x130] sm:$0xff]
        %v577 = vld [vmem:[#allocation11 + $0x138] sm:$0xff]
        %v578 = vld [vmem:[#allocation11 + $0x140] sm:$0xff]
        %v579 = vld [vmem:[#allocation11 + $0x148] sm:$0xff]
        %v580 = vld [vmem:[#allocation11 + $0x150] sm:$0xff]
        %v581 = vld [vmem:[#allocation11 + $0x158] sm:$0xff]
        %v582 = vld [vmem:[#allocation11 + $0x160] sm:$0xff]
        %v583 = vld [vmem:[#allocation11 + $0x168] sm:$0xff]
        %v584 = vld [vmem:[#allocation11 + $0x170] sm:$0xff]
        %v585 = vld [vmem:[#allocation11 + $0x178] sm:$0xff]
        %s586 = scalar_lea.vmem [#allocation11], 384
        %v587 = vld [vmem:[%s586] sm:$0xff]
        %v588 = vld [vmem:[%s586 + $0x8] sm:$0xff]
        %v589 = vld [vmem:[%s586 + $0x10] sm:$0xff]
        %v590 = vld [vmem:[%s586 + $0x18] sm:$0xff]
        %v591 = vld [vmem:[%s586 + $0x20] sm:$0xff]
        %v592 = vld [vmem:[%s586 + $0x28] sm:$0xff]
        %v593 = vld [vmem:[%s586 + $0x30] sm:$0xff]
        %v594 = vld [vmem:[%s586 + $0x38] sm:$0xff]
        %v595 = vld [vmem:[%s586 + $0x40] sm:$0xff]
        %v596 = vld [vmem:[%s586 + $0x48] sm:$0xff]
        %v597 = vld [vmem:[%s586 + $0x50] sm:$0xff]
        %v598 = vld [vmem:[%s586 + $0x58] sm:$0xff]
        %v599 = vld [vmem:[%s586 + $0x60] sm:$0xff]
        %v600 = vld [vmem:[%s586 + $0x68] sm:$0xff]
        %v601 = vld [vmem:[%s586 + $0x70] sm:$0xff]
        %v602 = vld [vmem:[%s586 + $0x78] sm:$0xff]
        %v603 = vld [vmem:[%s586 + $0x80] sm:$0xff]
        %v604 = vld [vmem:[%s586 + $0x88] sm:$0xff]
        %v605 = vld [vmem:[%s586 + $0x90] sm:$0xff]
        %v606 = vld [vmem:[%s586 + $0x98] sm:$0xff]
        %v607 = vld [vmem:[%s586 + $0xa0] sm:$0xff]
        %v608 = vld [vmem:[%s586 + $0xa8] sm:$0xff]
        %v609 = vld [vmem:[%s586 + $0xb0] sm:$0xff]
        %v610 = vld [vmem:[%s586 + $0xb8] sm:$0xff]
        %v611 = vld [vmem:[%s586 + $0xc0] sm:$0xff]
        %v612 = vld [vmem:[%s586 + $0xc8] sm:$0xff]
        %v613 = vld [vmem:[%s586 + $0xd0] sm:$0xff]
        %v614 = vld [vmem:[%s586 + $0xd8] sm:$0xff]
        %v615 = vld [vmem:[%s586 + $0xe0] sm:$0xff]
        %v616 = vld [vmem:[%s586 + $0xe8] sm:$0xff]
        %v617 = vld [vmem:[%s586 + $0xf0] sm:$0xff]
        %v618 = vld [vmem:[%s586 + $0xf8] sm:$0xff]
        %v619 = vld [vmem:[%s586 + $0x100] sm:$0xff]
        %v620 = vld [vmem:[%s586 + $0x108] sm:$0xff]
        %v621 = vld [vmem:[%s586 + $0x110] sm:$0xff]
        %v622 = vld [vmem:[%s586 + $0x118] sm:$0xff]
        %v623 = vld [vmem:[%s586 + $0x120] sm:$0xff]
        %v624 = vld [vmem:[%s586 + $0x128] sm:$0xff]
        %v625 = vld [vmem:[%s586 + $0x130] sm:$0xff]
        %v626 = vld [vmem:[%s586 + $0x138] sm:$0xff]
        %v627 = vld [vmem:[%s586 + $0x140] sm:$0xff]
        %v628 = vld [vmem:[%s586 + $0x148] sm:$0xff]
        %v629 = vld [vmem:[%s586 + $0x150] sm:$0xff]
        %v630 = vld [vmem:[%s586 + $0x158] sm:$0xff]
        %v631 = vld [vmem:[%s586 + $0x160] sm:$0xff]
        %v632 = vld [vmem:[%s586 + $0x168] sm:$0xff]
        %v633 = vld [vmem:[%s586 + $0x170] sm:$0xff]
        %v634 = vld [vmem:[%s586 + $0x178] sm:$0xff]
        %v635 = vld [vmem:[%s448] sm:$0xff]
        %v636 = vld [vmem:[%s448 + $0x8] sm:$0xff]
        %v637 = vld [vmem:[%s448 + $0x10] sm:$0xff]
        %v638 = vld [vmem:[%s448 + $0x18] sm:$0xff]
        %v639 = vld [vmem:[%s457] sm:$0xff]
        %v640 = vld [vmem:[%s457 + $0x8] sm:$0xff]
        %v641 = vld [vmem:[%s457 + $0x10] sm:$0xff]
        %v642 = vld [vmem:[%s457 + $0x18] sm:$0xff]
        %v643 = vld [vmem:[%s5] sm:$0x7]
        %v645 = vlaneseq
        %v646 = vshrl.u32 %v645, 7
        %v647 = vsub.s32 0, %v646
        %v648 = vrot.slane %v643, %v647
        %v649 = vlaneseq
        %v650 = vshrl.u32 %v649, 7
        %v651 = vsub.s32 1, %v650
        %v652 = vrot.slane %v643, %v651
        %v653 = vlaneseq
        %v654 = vshrl.u32 %v653, 7
        %v655 = vsub.s32 2, %v654
        %v656 = vrot.slane %v643, %v655
        %660 = vmatprep.subr.mxu0 %v584
        %661 = vmatpush1.msra.mxu0 %v583
        %662 = vmatprep.subr.mxu0 %v581
        %663 = vmatpush1.msra.mxu0 %v580
        %664 = vmatprep.subr.mxu0 %v578
        %665 = vmatpush1.msra.mxu0 %v577
        %666 = vmatprep.subr.mxu0 %v575
        %667 = vmatpush1.msra.mxu0 %v574
        %668 = vmatprep.subr.mxu0 %v572
        %669 = vmatpush1.msra.mxu0 %v571
        %670 = vmatprep.subr.mxu0 %v569
        %671 = vmatpush1.msra.mxu0 %v568
        %672 = vmatprep.subr.mxu0 %v566
        %673 = vmatpush1.msra.mxu0 %v565
        %674 = vmatprep.subr.mxu0 %v563
        %675 = vmatpush1.msra.mxu0 %v562
        %676 = vmatprep.subr.mxu0 %v560
        %677 = vmatpush1.msra.mxu0 %v559
        %678 = vmatprep.subr.mxu0 %v557
        %679 = vmatpush1.msra.mxu0 %v556
        %680 = vmatprep.subr.mxu0 %v554
        %681 = vmatpush1.msra.mxu0 %v553
        %682 = vmatprep.subr.mxu0 %v551
        %683 = vmatpush1.msra.mxu0 %v550
        %684 = vmatprep.subr.mxu0 %v548
        %685 = vmatpush1.msra.mxu0 %v547
        %686 = vmatprep.subr.mxu0 %v545
        %687 = vmatpush1.msra.mxu0 %v544
        %688 = vmatprep.subr.mxu0 %v542
        %689 = vmatpush1.msra.mxu0 %v541
        %690 = vmatprep.subr.mxu0 %v539
        %691 = vmatpush1.msra.mxu0 %v538
        %692 = vmatprep.subr.mxu0 0.0
        %693 = vmatpush2.msra.mxu0 0.0
        %694 = vmatprep.subr.mxu0 0.0
        %695 = vmatpush2.msra.mxu0 0.0
        %696 = vmatprep.subr.mxu0 0.0
        %697 = vmatpush2.msra.mxu0 0.0
        %698 = vmatprep.subr.mxu0 0.0
        %699 = vmatpush2.msra.mxu0 0.0
        %700 = vmatprep.subr.mxu0 0.0
        %701 = vmatpush2.msra.mxu0 0.0
        %702 = vmatprep.subr.mxu0 0.0
        %703 = vmatpush2.msra.mxu0 0.0
        %704 = vmatprep.subr.mxu0 0.0
        %705 = vmatpush2.msra.mxu0 0.0
        %706 = vmatprep.subr.mxu0 0.0
        %707 = vmatpush2.msra.mxu0 0.0
        %708 = vmatprep.subr.mxu0 0.0
        %709 = vmatpush2.msra.mxu0 0.0
        %710 = vmatprep.subr.mxu0 0.0
        %711 = vmatpush2.msra.mxu0 0.0
        %712 = vmatprep.subr.mxu0 0.0
        %713 = vmatpush2.msra.mxu0 0.0
        %714 = vmatprep.subr.mxu0 0.0
        %715 = vmatpush2.msra.mxu0 0.0
        %716 = vmatprep.subr.mxu0 0.0
        %717 = vmatpush2.msra.mxu0 0.0
        %718 = vmatprep.subr.mxu0 0.0
        %719 = vmatpush2.msra.mxu0 0.0
        %720 = vmatprep.subr.mxu0 0.0
        %721 = vmatpush2.msra.mxu0 0.0
        %722 = vmatprep.subr.mxu0 0.0
        %723 = vmatpush2.msra.mxu0 0.0
        %724 = vmatprep.mubr.f32.mxu0 0.0
        %725 = vmatmul.mubr.f32.gmra.mxu0 %v635
        %v726 = vpop.f32.mrf.mxu0
        %v727 = vadd.f32 %v648, %v726
        %v728 = vpop.f32.mrf.mxu0
        %v729 = vadd.f32 %v652, %v728
        %730 = vmatprep.mubr.f32.mxu0 0.0
        %731 = vmatmul.mubr.f32.gmra.mxu0 %v636
        %v732 = vpop.f32.mrf.mxu0
        %v733 = vadd.f32 %v648, %v732
        %v734 = vpop.f32.mrf.mxu0
        %v735 = vadd.f32 %v652, %v734
        %736 = vmatprep.mubr.f32.mxu0 0.0
        %737 = vmatmul.mubr.f32.gmra.mxu0 %v637
        %v738 = vpop.f32.mrf.mxu0
        %v739 = vadd.f32 %v648, %v738
        %v740 = vpop.f32.mrf.mxu0
        %v741 = vadd.f32 %v652, %v740
        %742 = vmatprep.mubr.f32.mxu0 0.0
        %743 = vmatmul.mubr.f32.gmra.mxu0 %v638
        %v744 = vpop.f32.mrf.mxu0
        %v745 = vadd.f32 %v648, %v744
        %v746 = vpop.f32.mrf.mxu0
        %v747 = vadd.f32 %v652, %v746
        %748 = vdwg.mxu0
        %749 = vmatprep.subr.mxu0 0.0
        %750 = vmatpush1.msra.mxu0 %v585
        %751 = vmatprep.subr.mxu0 0.0
        %752 = vmatpush1.msra.mxu0 %v582
        %753 = vmatprep.subr.mxu0 0.0
        %754 = vmatpush1.msra.mxu0 %v579
        %755 = vmatprep.subr.mxu0 0.0
        %756 = vmatpush1.msra.mxu0 %v576
        %757 = vmatprep.subr.mxu0 0.0
        %758 = vmatpush1.msra.mxu0 %v573
        %759 = vmatprep.subr.mxu0 0.0
        %760 = vmatpush1.msra.mxu0 %v570
        %761 = vmatprep.subr.mxu0 0.0
        %762 = vmatpush1.msra.mxu0 %v567
        %763 = vmatprep.subr.mxu0 0.0
        %764 = vmatpush1.msra.mxu0 %v564
        %765 = vmatprep.subr.mxu0 0.0
        %766 = vmatpush1.msra.mxu0 %v561
        %767 = vmatprep.subr.mxu0 0.0
        %768 = vmatpush1.msra.mxu0 %v558
        %769 = vmatprep.subr.mxu0 0.0
        %770 = vmatpush1.msra.mxu0 %v555
        %771 = vmatprep.subr.mxu0 0.0
        %772 = vmatpush1.msra.mxu0 %v552
        %773 = vmatprep.subr.mxu0 0.0
        %774 = vmatpush1.msra.mxu0 %v549
        %775 = vmatprep.subr.mxu0 0.0
        %776 = vmatpush1.msra.mxu0 %v546
        %777 = vmatprep.subr.mxu0 0.0
        %778 = vmatpush1.msra.mxu0 %v543
        %779 = vmatprep.subr.mxu0 0.0
        %780 = vmatpush1.msra.mxu0 %v540
        %781 = vmatprep.subr.mxu0 0.0
        %782 = vmatpush2.msra.mxu0 0.0
        %783 = vmatprep.subr.mxu0 0.0
        %784 = vmatpush2.msra.mxu0 0.0
        %785 = vmatprep.subr.mxu0 0.0
        %786 = vmatpush2.msra.mxu0 0.0
        %787 = vmatprep.subr.mxu0 0.0
        %788 = vmatpush2.msra.mxu0 0.0
        %789 = vmatprep.subr.mxu0 0.0
        %790 = vmatpush2.msra.mxu0 0.0
        %791 = vmatprep.subr.mxu0 0.0
        %792 = vmatpush2.msra.mxu0 0.0
        %793 = vmatprep.subr.mxu0 0.0
        %794 = vmatpush2.msra.mxu0 0.0
        %795 = vmatprep.subr.mxu0 0.0
        %796 = vmatpush2.msra.mxu0 0.0
        %797 = vmatprep.subr.mxu0 0.0
        %798 = vmatpush2.msra.mxu0 0.0
        %799 = vmatprep.subr.mxu0 0.0
        %800 = vmatpush2.msra.mxu0 0.0
        %801 = vmatprep.subr.mxu0 0.0
        %802 = vmatpush2.msra.mxu0 0.0
        %803 = vmatprep.subr.mxu0 0.0
        %804 = vmatpush2.msra.mxu0 0.0
        %805 = vmatprep.subr.mxu0 0.0
        %806 = vmatpush2.msra.mxu0 0.0
        %807 = vmatprep.subr.mxu0 0.0
        %808 = vmatpush2.msra.mxu0 0.0
        %809 = vmatprep.subr.mxu0 0.0
        %810 = vmatpush2.msra.mxu0 0.0
        %811 = vmatprep.subr.mxu0 0.0
        %812 = vmatpush2.msra.mxu0 0.0
        %813 = vmatprep.mubr.f32.mxu0 0.0
        %814 = vmatmul.mubr.f32.gmra.mxu0 %v635
        %v815 = vpop.f32.mrf.mxu0
        %v816 = vadd.f32 %v656, %v815
        %v817 = vpop.f32.mrf.mxu0
        %818 = vmatprep.mubr.f32.mxu0 0.0
        %819 = vmatmul.mubr.f32.gmra.mxu0 %v636
        %v820 = vpop.f32.mrf.mxu0
        %v821 = vadd.f32 %v656, %v820
        %v822 = vpop.f32.mrf.mxu0
        %823 = vmatprep.mubr.f32.mxu0 0.0
        %824 = vmatmul.mubr.f32.gmra.mxu0 %v637
        %v825 = vpop.f32.mrf.mxu0
        %v826 = vadd.f32 %v656, %v825
        %v827 = vpop.f32.mrf.mxu0
        %828 = vmatprep.mubr.f32.mxu0 0.0
        %829 = vmatmul.mubr.f32.gmra.mxu0 %v638
        %v830 = vpop.f32.mrf.mxu0
        %v831 = vadd.f32 %v656, %v830
        %v832 = vpop.f32.mrf.mxu0
        %833 = vdwg.mxu0
        %834 = vst [vmem:[#allocation3] sm:$0xff] %v727
        %835 = vst [vmem:[#allocation3 + $0x8] sm:$0xff] %v729
        %836 = vst [vmem:[#allocation3 + $0x10] sm:$0xff] %v816
        %837 = vst [vmem:[#allocation3 + $0x18] sm:$0xff] %v733
        %838 = vst [vmem:[#allocation3 + $0x20] sm:$0xff] %v735
        %839 = vst [vmem:[#allocation3 + $0x28] sm:$0xff] %v821
        %840 = vst [vmem:[#allocation3 + $0x30] sm:$0xff] %v739
        %841 = vst [vmem:[#allocation3 + $0x38] sm:$0xff] %v741
        %842 = vst [vmem:[#allocation3 + $0x40] sm:$0xff] %v826
        %843 = vst [vmem:[#allocation3 + $0x48] sm:$0xff] %v745
        %844 = vst [vmem:[#allocation3 + $0x50] sm:$0xff] %v747
        %845 = vst [vmem:[#allocation3 + $0x58] sm:$0xff] %v831
        %s846 = scalar_lea.vmem %s5, 3
        %v847 = vld [vmem:[%s846] sm:$0x7]
        %v849 = vlaneseq
        %v850 = vshrl.u32 %v849, 7
        %v851 = vsub.s32 0, %v850
        %v852 = vrot.slane %v847, %v851
        %v853 = vlaneseq
        %v854 = vshrl.u32 %v853, 7
        %v855 = vsub.s32 1, %v854
        %v856 = vrot.slane %v847, %v855
        %v857 = vlaneseq
        %v858 = vshrl.u32 %v857, 7
        %v859 = vsub.s32 2, %v858
        %v860 = vrot.slane %v847, %v859
        %864 = vmatprep.subr.mxu0 %v633
        %865 = vmatpush1.msra.mxu0 %v632
        %866 = vmatprep.subr.mxu0 %v630
        %867 = vmatpush1.msra.mxu0 %v629
        %868 = vmatprep.subr.mxu0 %v627
        %869 = vmatpush1.msra.mxu0 %v626
        %870 = vmatprep.subr.mxu0 %v624
        %871 = vmatpush1.msra.mxu0 %v623
        %872 = vmatprep.subr.mxu0 %v621
        %873 = vmatpush1.msra.mxu0 %v620
        %874 = vmatprep.subr.mxu0 %v618
        %875 = vmatpush1.msra.mxu0 %v617
        %876 = vmatprep.subr.mxu0 %v615
        %877 = vmatpush1.msra.mxu0 %v614
        %878 = vmatprep.subr.mxu0 %v612
        %879 = vmatpush1.msra.mxu0 %v611
        %880 = vmatprep.subr.mxu0 %v609
        %881 = vmatpush1.msra.mxu0 %v608
        %882 = vmatprep.subr.mxu0 %v606
        %883 = vmatpush1.msra.mxu0 %v605
        %884 = vmatprep.subr.mxu0 %v603
        %885 = vmatpush1.msra.mxu0 %v602
        %886 = vmatprep.subr.mxu0 %v600
        %887 = vmatpush1.msra.mxu0 %v599
        %888 = vmatprep.subr.mxu0 %v597
        %889 = vmatpush1.msra.mxu0 %v596
        %890 = vmatprep.subr.mxu0 %v594
        %891 = vmatpush1.msra.mxu0 %v593
        %892 = vmatprep.subr.mxu0 %v591
        %893 = vmatpush1.msra.mxu0 %v590
        %894 = vmatprep.subr.mxu0 %v588
        %895 = vmatpush1.msra.mxu0 %v587
        %896 = vmatprep.subr.mxu0 0.0
        %897 = vmatpush2.msra.mxu0 0.0
        %898 = vmatprep.subr.mxu0 0.0
        %899 = vmatpush2.msra.mxu0 0.0
        %900 = vmatprep.subr.mxu0 0.0
        %901 = vmatpush2.msra.mxu0 0.0
        %902 = vmatprep.subr.mxu0 0.0
        %903 = vmatpush2.msra.mxu0 0.0
        %904 = vmatprep.subr.mxu0 0.0
        %905 = vmatpush2.msra.mxu0 0.0
        %906 = vmatprep.subr.mxu0 0.0
        %907 = vmatpush2.msra.mxu0 0.0
        %908 = vmatprep.subr.mxu0 0.0
        %909 = vmatpush2.msra.mxu0 0.0
        %910 = vmatprep.subr.mxu0 0.0
        %911 = vmatpush2.msra.mxu0 0.0
        %912 = vmatprep.subr.mxu0 0.0
        %913 = vmatpush2.msra.mxu0 0.0
        %914 = vmatprep.subr.mxu0 0.0
        %915 = vmatpush2.msra.mxu0 0.0
        %916 = vmatprep.subr.mxu0 0.0
        %917 = vmatpush2.msra.mxu0 0.0
        %918 = vmatprep.subr.mxu0 0.0
        %919 = vmatpush2.msra.mxu0 0.0
        %920 = vmatprep.subr.mxu0 0.0
        %921 = vmatpush2.msra.mxu0 0.0
        %922 = vmatprep.subr.mxu0 0.0
        %923 = vmatpush2.msra.mxu0 0.0
        %924 = vmatprep.subr.mxu0 0.0
        %925 = vmatpush2.msra.mxu0 0.0
        %926 = vmatprep.subr.mxu0 0.0
        %927 = vmatpush2.msra.mxu0 0.0
        %928 = vmatprep.mubr.f32.mxu0 0.0
        %929 = vmatmul.mubr.f32.gmra.mxu0 %v639
        %v930 = vpop.f32.mrf.mxu0
        %v931 = vadd.f32 %v852, %v930
        %v932 = vpop.f32.mrf.mxu0
        %v933 = vadd.f32 %v856, %v932
        %934 = vmatprep.mubr.f32.mxu0 0.0
        %935 = vmatmul.mubr.f32.gmra.mxu0 %v640
        %v936 = vpop.f32.mrf.mxu0
        %v937 = vadd.f32 %v852, %v936
        %v938 = vpop.f32.mrf.mxu0
        %v939 = vadd.f32 %v856, %v938
        %940 = vmatprep.mubr.f32.mxu0 0.0
        %941 = vmatmul.mubr.f32.gmra.mxu0 %v641
        %v942 = vpop.f32.mrf.mxu0
        %v943 = vadd.f32 %v852, %v942
        %v944 = vpop.f32.mrf.mxu0
        %v945 = vadd.f32 %v856, %v944
        %946 = vmatprep.mubr.f32.mxu0 0.0
        %947 = vmatmul.mubr.f32.gmra.mxu0 %v642
        %v948 = vpop.f32.mrf.mxu0
        %v949 = vadd.f32 %v852, %v948
        %v950 = vpop.f32.mrf.mxu0
        %v951 = vadd.f32 %v856, %v950
        %952 = vdwg.mxu0
        %953 = vmatprep.subr.mxu0 0.0
        %954 = vmatpush1.msra.mxu0 %v634
        %955 = vmatprep.subr.mxu0 0.0
        %956 = vmatpush1.msra.mxu0 %v631
        %957 = vmatprep.subr.mxu0 0.0
        %958 = vmatpush1.msra.mxu0 %v628
        %959 = vmatprep.subr.mxu0 0.0
        %960 = vmatpush1.msra.mxu0 %v625
        %961 = vmatprep.subr.mxu0 0.0
        %962 = vmatpush1.msra.mxu0 %v622
        %963 = vmatprep.subr.mxu0 0.0
        %964 = vmatpush1.msra.mxu0 %v619
        %965 = vmatprep.subr.mxu0 0.0
        %966 = vmatpush1.msra.mxu0 %v616
        %967 = vmatprep.subr.mxu0 0.0
        %968 = vmatpush1.msra.mxu0 %v613
        %969 = vmatprep.subr.mxu0 0.0
        %970 = vmatpush1.msra.mxu0 %v610
        %971 = vmatprep.subr.mxu0 0.0
        %972 = vmatpush1.msra.mxu0 %v607
        %973 = vmatprep.subr.mxu0 0.0
        %974 = vmatpush1.msra.mxu0 %v604
        %975 = vmatprep.subr.mxu0 0.0
        %976 = vmatpush1.msra.mxu0 %v601
        %977 = vmatprep.subr.mxu0 0.0
        %978 = vmatpush1.msra.mxu0 %v598
        %979 = vmatprep.subr.mxu0 0.0
        %980 = vmatpush1.msra.mxu0 %v595
        %981 = vmatprep.subr.mxu0 0.0
        %982 = vmatpush1.msra.mxu0 %v592
        %983 = vmatprep.subr.mxu0 0.0
        %984 = vmatpush1.msra.mxu0 %v589
        %985 = vmatprep.subr.mxu0 0.0
        %986 = vmatpush2.msra.mxu0 0.0
        %987 = vmatprep.subr.mxu0 0.0
        %988 = vmatpush2.msra.mxu0 0.0
        %989 = vmatprep.subr.mxu0 0.0
        %990 = vmatpush2.msra.mxu0 0.0
        %991 = vmatprep.subr.mxu0 0.0
        %992 = vmatpush2.msra.mxu0 0.0
        %993 = vmatprep.subr.mxu0 0.0
        %994 = vmatpush2.msra.mxu0 0.0
        %995 = vmatprep.subr.mxu0 0.0
        %996 = vmatpush2.msra.mxu0 0.0
        %997 = vmatprep.subr.mxu0 0.0
        %998 = vmatpush2.msra.mxu0 0.0
        %999 = vmatprep.subr.mxu0 0.0
        %1000 = vmatpush2.msra.mxu0 0.0
        %1001 = vmatprep.subr.mxu0 0.0
        %1002 = vmatpush2.msra.mxu0 0.0
        %1003 = vmatprep.subr.mxu0 0.0
        %1004 = vmatpush2.msra.mxu0 0.0
        %1005 = vmatprep.subr.mxu0 0.0
        %1006 = vmatpush2.msra.mxu0 0.0
        %1007 = vmatprep.subr.mxu0 0.0
        %1008 = vmatpush2.msra.mxu0 0.0
        %1009 = vmatprep.subr.mxu0 0.0
        %1010 = vmatpush2.msra.mxu0 0.0
        %1011 = vmatprep.subr.mxu0 0.0
        %1012 = vmatpush2.msra.mxu0 0.0
        %1013 = vmatprep.subr.mxu0 0.0
        %1014 = vmatpush2.msra.mxu0 0.0
        %1015 = vmatprep.subr.mxu0 0.0
        %1016 = vmatpush2.msra.mxu0 0.0
        %1017 = vmatprep.mubr.f32.mxu0 0.0
        %1018 = vmatmul.mubr.f32.gmra.mxu0 %v639
        %v1019 = vpop.f32.mrf.mxu0
        %v1020 = vadd.f32 %v860, %v1019
        %v1021 = vpop.f32.mrf.mxu0
        %1022 = vmatprep.mubr.f32.mxu0 0.0
        %1023 = vmatmul.mubr.f32.gmra.mxu0 %v640
        %v1024 = vpop.f32.mrf.mxu0
        %v1025 = vadd.f32 %v860, %v1024
        %v1026 = vpop.f32.mrf.mxu0
        %1027 = vmatprep.mubr.f32.mxu0 0.0
        %1028 = vmatmul.mubr.f32.gmra.mxu0 %v641
        %v1029 = vpop.f32.mrf.mxu0
        %v1030 = vadd.f32 %v860, %v1029
        %v1031 = vpop.f32.mrf.mxu0
        %1032 = vmatprep.mubr.f32.mxu0 0.0
        %1033 = vmatmul.mubr.f32.gmra.mxu0 %v642
        %v1034 = vpop.f32.mrf.mxu0
        %v1035 = vadd.f32 %v860, %v1034
        %v1036 = vpop.f32.mrf.mxu0
        %1037 = vdwg.mxu0
        %1038 = vst [vmem:[#allocation4] sm:$0xff] %v931
        %1039 = vst [vmem:[#allocation4 + $0x8] sm:$0xff] %v933
        %1040 = vst [vmem:[#allocation4 + $0x10] sm:$0xff] %v1020
        %1041 = vst [vmem:[#allocation4 + $0x18] sm:$0xff] %v937
        %1042 = vst [vmem:[#allocation4 + $0x20] sm:$0xff] %v939
        %1043 = vst [vmem:[#allocation4 + $0x28] sm:$0xff] %v1025
        %1044 = vst [vmem:[#allocation4 + $0x30] sm:$0xff] %v943
        %1045 = vst [vmem:[#allocation4 + $0x38] sm:$0xff] %v945
        %1046 = vst [vmem:[#allocation4 + $0x40] sm:$0xff] %v1030
        %1047 = vst [vmem:[#allocation4 + $0x48] sm:$0xff] %v949
        %1048 = vst [vmem:[#allocation4 + $0x50] sm:$0xff] %v951
        %1049 = vst [vmem:[#allocation4 + $0x58] sm:$0xff] %v1035
        %v1050 = vld [vmem:[%s526] sm:$0xff]
        %v1051 = vld [vmem:[#allocation13] sm:$0xff]
        %v1052 = vld [vmem:[#allocation13 + $0x8] sm:$0xff]
        %v1053 = vld [vmem:[#allocation13 + $0x10] sm:$0xff]
        %v1054 = vld [vmem:[#allocation13 + $0x18] sm:$0xff]
        %v1055 = vld [vmem:[#allocation13 + $0x20] sm:$0xff]
        %v1056 = vld [vmem:[#allocation13 + $0x28] sm:$0xff]
        %v1057 = vld [vmem:[#allocation13 + $0x30] sm:$0xff]
        %v1058 = vld [vmem:[#allocation13 + $0x38] sm:$0xff]
        %v1059 = vld [vmem:[#allocation13 + $0x40] sm:$0xff]
        %v1060 = vld [vmem:[#allocation13 + $0x48] sm:$0xff]
        %v1061 = vld [vmem:[#allocation13 + $0x50] sm:$0xff]
        %v1062 = vld [vmem:[#allocation13 + $0x58] sm:$0xff]
        %v1063 = vld [vmem:[#allocation13 + $0x60] sm:$0xff]
        %v1064 = vld [vmem:[#allocation13 + $0x68] sm:$0xff]
        %v1065 = vld [vmem:[#allocation13 + $0x70] sm:$0xff]
        %v1066 = vld [vmem:[#allocation13 + $0x78] sm:$0xff]
        %v1067 = vld [vmem:[#allocation13 + $0x80] sm:$0xff]
        %v1068 = vld [vmem:[#allocation13 + $0x88] sm:$0xff]
        %v1069 = vld [vmem:[#allocation13 + $0x90] sm:$0xff]
        %v1070 = vld [vmem:[#allocation13 + $0x98] sm:$0xff]
        %v1071 = vld [vmem:[#allocation13 + $0xa0] sm:$0xff]
        %v1072 = vld [vmem:[#allocation13 + $0xa8] sm:$0xff]
        %v1073 = vld [vmem:[#allocation13 + $0xb0] sm:$0xff]
        %v1074 = vld [vmem:[#allocation13 + $0xb8] sm:$0xff]
        %v1075 = vld [vmem:[#allocation13 + $0xc0] sm:$0xff]
        %v1076 = vld [vmem:[#allocation13 + $0xc8] sm:$0xff]
        %v1077 = vld [vmem:[#allocation13 + $0xd0] sm:$0xff]
        %v1078 = vld [vmem:[#allocation13 + $0xd8] sm:$0xff]
        %v1079 = vld [vmem:[#allocation13 + $0xe0] sm:$0xff]
        %v1080 = vld [vmem:[#allocation13 + $0xe8] sm:$0xff]
        %v1081 = vld [vmem:[#allocation13 + $0xf0] sm:$0xff]
        %v1082 = vld [vmem:[#allocation13 + $0xf8] sm:$0xff]
        %v1083 = vld [vmem:[#allocation13 + $0x100] sm:$0xff]
        %v1084 = vld [vmem:[#allocation13 + $0x108] sm:$0xff]
        %v1085 = vld [vmem:[#allocation13 + $0x110] sm:$0xff]
        %v1086 = vld [vmem:[#allocation13 + $0x118] sm:$0xff]
        %v1087 = vld [vmem:[#allocation13 + $0x120] sm:$0xff]
        %v1088 = vld [vmem:[#allocation13 + $0x128] sm:$0xff]
        %v1089 = vld [vmem:[#allocation13 + $0x130] sm:$0xff]
        %v1090 = vld [vmem:[#allocation13 + $0x138] sm:$0xff]
        %v1091 = vld [vmem:[#allocation13 + $0x140] sm:$0xff]
        %v1092 = vld [vmem:[#allocation13 + $0x148] sm:$0xff]
        %v1093 = vld [vmem:[#allocation13 + $0x150] sm:$0xff]
        %v1094 = vld [vmem:[#allocation13 + $0x158] sm:$0xff]
        %v1095 = vld [vmem:[#allocation13 + $0x160] sm:$0xff]
        %v1096 = vld [vmem:[#allocation13 + $0x168] sm:$0xff]
        %v1097 = vld [vmem:[#allocation13 + $0x170] sm:$0xff]
        %v1098 = vld [vmem:[#allocation13 + $0x178] sm:$0xff]
        %s1099 = scalar_lea.vmem [#allocation13], 384
        %v1100 = vld [vmem:[%s1099] sm:$0xff]
        %v1101 = vld [vmem:[%s1099 + $0x8] sm:$0xff]
        %v1102 = vld [vmem:[%s1099 + $0x10] sm:$0xff]
        %v1103 = vld [vmem:[%s1099 + $0x18] sm:$0xff]
        %v1104 = vld [vmem:[%s1099 + $0x20] sm:$0xff]
        %v1105 = vld [vmem:[%s1099 + $0x28] sm:$0xff]
        %v1106 = vld [vmem:[%s1099 + $0x30] sm:$0xff]
        %v1107 = vld [vmem:[%s1099 + $0x38] sm:$0xff]
        %v1108 = vld [vmem:[%s1099 + $0x40] sm:$0xff]
        %v1109 = vld [vmem:[%s1099 + $0x48] sm:$0xff]
        %v1110 = vld [vmem:[%s1099 + $0x50] sm:$0xff]
        %v1111 = vld [vmem:[%s1099 + $0x58] sm:$0xff]
        %v1112 = vld [vmem:[%s1099 + $0x60] sm:$0xff]
        %v1113 = vld [vmem:[%s1099 + $0x68] sm:$0xff]
        %v1114 = vld [vmem:[%s1099 + $0x70] sm:$0xff]
        %v1115 = vld [vmem:[%s1099 + $0x78] sm:$0xff]
        %v1116 = vld [vmem:[%s1099 + $0x80] sm:$0xff]
        %v1117 = vld [vmem:[%s1099 + $0x88] sm:$0xff]
        %v1118 = vld [vmem:[%s1099 + $0x90] sm:$0xff]
        %v1119 = vld [vmem:[%s1099 + $0x98] sm:$0xff]
        %v1120 = vld [vmem:[%s1099 + $0xa0] sm:$0xff]
        %v1121 = vld [vmem:[%s1099 + $0xa8] sm:$0xff]
        %v1122 = vld [vmem:[%s1099 + $0xb0] sm:$0xff]
        %v1123 = vld [vmem:[%s1099 + $0xb8] sm:$0xff]
        %v1124 = vld [vmem:[%s1099 + $0xc0] sm:$0xff]
        %v1125 = vld [vmem:[%s1099 + $0xc8] sm:$0xff]
        %v1126 = vld [vmem:[%s1099 + $0xd0] sm:$0xff]
        %v1127 = vld [vmem:[%s1099 + $0xd8] sm:$0xff]
        %v1128 = vld [vmem:[%s1099 + $0xe0] sm:$0xff]
        %v1129 = vld [vmem:[%s1099 + $0xe8] sm:$0xff]
        %v1130 = vld [vmem:[%s1099 + $0xf0] sm:$0xff]
        %v1131 = vld [vmem:[%s1099 + $0xf8] sm:$0xff]
        %v1132 = vld [vmem:[%s1099 + $0x100] sm:$0xff]
        %v1133 = vld [vmem:[%s1099 + $0x108] sm:$0xff]
        %v1134 = vld [vmem:[%s1099 + $0x110] sm:$0xff]
        %v1135 = vld [vmem:[%s1099 + $0x118] sm:$0xff]
        %v1136 = vld [vmem:[%s1099 + $0x120] sm:$0xff]
        %v1137 = vld [vmem:[%s1099 + $0x128] sm:$0xff]
        %v1138 = vld [vmem:[%s1099 + $0x130] sm:$0xff]
        %v1139 = vld [vmem:[%s1099 + $0x138] sm:$0xff]
        %v1140 = vld [vmem:[%s1099 + $0x140] sm:$0xff]
        %v1141 = vld [vmem:[%s1099 + $0x148] sm:$0xff]
        %v1142 = vld [vmem:[%s1099 + $0x150] sm:$0xff]
        %v1143 = vld [vmem:[%s1099 + $0x158] sm:$0xff]
        %v1144 = vld [vmem:[%s1099 + $0x160] sm:$0xff]
        %v1145 = vld [vmem:[%s1099 + $0x168] sm:$0xff]
        %v1146 = vld [vmem:[%s1099 + $0x170] sm:$0xff]
        %v1147 = vld [vmem:[%s1099 + $0x178] sm:$0xff]
        %v1148 = vld [vmem:[%s7] sm:$0x1]
        %s1149 = scalar_lea.vmem %s7, 1
        %v1150 = vld [vmem:[%s1149] sm:$0x1]
        %v1151 = vld [vmem:[#allocation2] sm:$0xff]
        %v1152 = vld [vmem:[#allocation2 + $0x8] sm:$0xff]
        %s1153 = smul.u32 %s40, 4
        %s1154 = ssub.s32 11, %s1153
        %s1155 = smul.u32 0, 3
        %s1156 = smul.addr %s1155, 8
        %s1157 = scalar_lea.vmem [#allocation3], %s1156
        %v1158 = vld [vmem:[%s1157] sm:$0xff]
        %v1159 = vld [vmem:[%s1157 + $0x8] sm:$0xff]
        %v1160 = vld [vmem:[%s1157 + $0x10] sm:$0xff]
        %s1161 = smul.u32 3, 3
        %s1162 = smul.addr %s1161, 8
        %s1163 = scalar_lea.vmem [#allocation4], %s1162
        %v1164 = vld [vmem:[%s1163] sm:$0xff]
        %v1165 = vld [vmem:[%s1163 + $0x8] sm:$0xff]
        %v1166 = vld [vmem:[%s1163 + $0x10] sm:$0xff]
        %1167 = vmatprep.subr.mxu0 %v1097
        %1168 = vmatpush1.msra.mxu0 %v1096
        %1169 = vmatprep.subr.mxu0 %v1094
        %1170 = vmatpush1.msra.mxu0 %v1093
        %1171 = vmatprep.subr.mxu0 %v1091
        %1172 = vmatpush1.msra.mxu0 %v1090
        %1173 = vmatprep.subr.mxu0 %v1088
        %1174 = vmatpush1.msra.mxu0 %v1087
        %1175 = vmatprep.subr.mxu0 %v1085
        %1176 = vmatpush1.msra.mxu0 %v1084
        %1177 = vmatprep.subr.mxu0 %v1082
        %1178 = vmatpush1.msra.mxu0 %v1081
        %1179 = vmatprep.subr.mxu0 %v1079
        %1180 = vmatpush1.msra.mxu0 %v1078
        %1181 = vmatprep.subr.mxu0 %v1076
        %1182 = vmatpush1.msra.mxu0 %v1075
        %1183 = vmatprep.subr.mxu0 %v1073
        %1184 = vmatpush1.msra.mxu0 %v1072
        %1185 = vmatprep.subr.mxu0 %v1070
        %1186 = vmatpush1.msra.mxu0 %v1069
        %1187 = vmatprep.subr.mxu0 %v1067
        %1188 = vmatpush1.msra.mxu0 %v1066
        %1189 = vmatprep.subr.mxu0 %v1064
        %1190 = vmatpush1.msra.mxu0 %v1063
        %1191 = vmatprep.subr.mxu0 %v1061
        %1192 = vmatpush1.msra.mxu0 %v1060
        %1193 = vmatprep.subr.mxu0 %v1058
        %1194 = vmatpush1.msra.mxu0 %v1057
        %1195 = vmatprep.subr.mxu0 %v1055
        %1196 = vmatpush1.msra.mxu0 %v1054
        %1197 = vmatprep.subr.mxu0 %v1052
        %1198 = vmatpush1.msra.mxu0 %v1051
        %1199 = vmatprep.subr.mxu0 0.0
        %1200 = vmatpush2.msra.mxu0 0.0
        %1201 = vmatprep.subr.mxu0 0.0
        %1202 = vmatpush2.msra.mxu0 0.0
        %1203 = vmatprep.subr.mxu0 0.0
        %1204 = vmatpush2.msra.mxu0 0.0
        %1205 = vmatprep.subr.mxu0 0.0
        %1206 = vmatpush2.msra.mxu0 0.0
        %1207 = vmatprep.subr.mxu0 0.0
        %1208 = vmatpush2.msra.mxu0 0.0
        %1209 = vmatprep.subr.mxu0 0.0
        %1210 = vmatpush2.msra.mxu0 0.0
        %1211 = vmatprep.subr.mxu0 0.0
        %1212 = vmatpush2.msra.mxu0 0.0
        %1213 = vmatprep.subr.mxu0 0.0
        %1214 = vmatpush2.msra.mxu0 0.0
        %1215 = vmatprep.subr.mxu0 0.0
        %1216 = vmatpush2.msra.mxu0 0.0
        %1217 = vmatprep.subr.mxu0 0.0
        %1218 = vmatpush2.msra.mxu0 0.0
        %1219 = vmatprep.subr.mxu0 0.0
        %1220 = vmatpush2.msra.mxu0 0.0
        %1221 = vmatprep.subr.mxu0 0.0
        %1222 = vmatpush2.msra.mxu0 0.0
        %1223 = vmatprep.subr.mxu0 0.0
        %1224 = vmatpush2.msra.mxu0 0.0
        %1225 = vmatprep.subr.mxu0 0.0
        %1226 = vmatpush2.msra.mxu0 0.0
        %1227 = vmatprep.subr.mxu0 0.0
        %1228 = vmatpush2.msra.mxu0 0.0
        %1229 = vmatprep.subr.mxu0 0.0
        %1230 = vmatpush2.msra.mxu0 0.0
        %1231 = vmatprep.mubr.f32.mxu0 0.0
        %1232 = vmatmul.mubr.f32.gmra.mxu0 %v1151
        %v1233 = vpop.f32.mrf.mxu0
        %v1234 = vadd.f32 0.0, %v1233
        %v1235 = vpop.f32.mrf.mxu0
        %v1236 = vadd.f32 0.0, %v1235
        %1237 = vdwg.mxu0
        %1238 = vmatprep.subr.mxu0 0.0
        %1239 = vmatpush1.msra.mxu0 %v1098
        %1240 = vmatprep.subr.mxu0 0.0
        %1241 = vmatpush1.msra.mxu0 %v1095
        %1242 = vmatprep.subr.mxu0 0.0
        %1243 = vmatpush1.msra.mxu0 %v1092
        %1244 = vmatprep.subr.mxu0 0.0
        %1245 = vmatpush1.msra.mxu0 %v1089
        %1246 = vmatprep.subr.mxu0 0.0
        %1247 = vmatpush1.msra.mxu0 %v1086
        %1248 = vmatprep.subr.mxu0 0.0
        %1249 = vmatpush1.msra.mxu0 %v1083
        %1250 = vmatprep.subr.mxu0 0.0
        %1251 = vmatpush1.msra.mxu0 %v1080
        %1252 = vmatprep.subr.mxu0 0.0
        %1253 = vmatpush1.msra.mxu0 %v1077
        %1254 = vmatprep.subr.mxu0 0.0
        %1255 = vmatpush1.msra.mxu0 %v1074
        %1256 = vmatprep.subr.mxu0 0.0
        %1257 = vmatpush1.msra.mxu0 %v1071
        %1258 = vmatprep.subr.mxu0 0.0
        %1259 = vmatpush1.msra.mxu0 %v1068
        %1260 = vmatprep.subr.mxu0 0.0
        %1261 = vmatpush1.msra.mxu0 %v1065
        %1262 = vmatprep.subr.mxu0 0.0
        %1263 = vmatpush1.msra.mxu0 %v1062
        %1264 = vmatprep.subr.mxu0 0.0
        %1265 = vmatpush1.msra.mxu0 %v1059
        %1266 = vmatprep.subr.mxu0 0.0
        %1267 = vmatpush1.msra.mxu0 %v1056
        %1268 = vmatprep.subr.mxu0 0.0
        %1269 = vmatpush1.msra.mxu0 %v1053
        %1270 = vmatprep.subr.mxu0 0.0
        %1271 = vmatpush2.msra.mxu0 0.0
        %1272 = vmatprep.subr.mxu0 0.0
        %1273 = vmatpush2.msra.mxu0 0.0
        %1274 = vmatprep.subr.mxu0 0.0
        %1275 = vmatpush2.msra.mxu0 0.0
        %1276 = vmatprep.subr.mxu0 0.0
        %1277 = vmatpush2.msra.mxu0 0.0
        %1278 = vmatprep.subr.mxu0 0.0
        %1279 = vmatpush2.msra.mxu0 0.0
        %1280 = vmatprep.subr.mxu0 0.0
        %1281 = vmatpush2.msra.mxu0 0.0
        %1282 = vmatprep.subr.mxu0 0.0
        %1283 = vmatpush2.msra.mxu0 0.0
        %1284 = vmatprep.subr.mxu0 0.0
        %1285 = vmatpush2.msra.mxu0 0.0
        %1286 = vmatprep.subr.mxu0 0.0
        %1287 = vmatpush2.msra.mxu0 0.0
        %1288 = vmatprep.subr.mxu0 0.0
        %1289 = vmatpush2.msra.mxu0 0.0
        %1290 = vmatprep.subr.mxu0 0.0
        %1291 = vmatpush2.msra.mxu0 0.0
        %1292 = vmatprep.subr.mxu0 0.0
        %1293 = vmatpush2.msra.mxu0 0.0
        %1294 = vmatprep.subr.mxu0 0.0
        %1295 = vmatpush2.msra.mxu0 0.0
        %1296 = vmatprep.subr.mxu0 0.0
        %1297 = vmatpush2.msra.mxu0 0.0
        %1298 = vmatprep.subr.mxu0 0.0
        %1299 = vmatpush2.msra.mxu0 0.0
        %1300 = vmatprep.subr.mxu0 0.0
        %1301 = vmatpush2.msra.mxu0 0.0
        %1302 = vmatprep.mubr.f32.mxu0 0.0
        %1303 = vmatmul.mubr.f32.gmra.mxu0 %v1151
        %v1304 = vpop.f32.mrf.mxu0
        %v1305 = vadd.f32 0.0, %v1304
        %v1306 = vpop.f32.mrf.mxu0
        %1307 = vdwg.mxu0
        %1308 = vmatprep.subr.mxu0 %v1146
        %1309 = vmatpush1.msra.mxu0 %v1145
        %1310 = vmatprep.subr.mxu0 %v1143
        %1311 = vmatpush1.msra.mxu0 %v1142
        %1312 = vmatprep.subr.mxu0 %v1140
        %1313 = vmatpush1.msra.mxu0 %v1139
        %1314 = vmatprep.subr.mxu0 %v1137
        %1315 = vmatpush1.msra.mxu0 %v1136
        %1316 = vmatprep.subr.mxu0 %v1134
        %1317 = vmatpush1.msra.mxu0 %v1133
        %1318 = vmatprep.subr.mxu0 %v1131
        %1319 = vmatpush1.msra.mxu0 %v1130
        %1320 = vmatprep.subr.mxu0 %v1128
        %1321 = vmatpush1.msra.mxu0 %v1127
        %1322 = vmatprep.subr.mxu0 %v1125
        %1323 = vmatpush1.msra.mxu0 %v1124
        %1324 = vmatprep.subr.mxu0 %v1122
        %1325 = vmatpush1.msra.mxu0 %v1121
        %1326 = vmatprep.subr.mxu0 %v1119
        %1327 = vmatpush1.msra.mxu0 %v1118
        %1328 = vmatprep.subr.mxu0 %v1116
        %1329 = vmatpush1.msra.mxu0 %v1115
        %1330 = vmatprep.subr.mxu0 %v1113
        %1331 = vmatpush1.msra.mxu0 %v1112
        %1332 = vmatprep.subr.mxu0 %v1110
        %1333 = vmatpush1.msra.mxu0 %v1109
        %1334 = vmatprep.subr.mxu0 %v1107
        %1335 = vmatpush1.msra.mxu0 %v1106
        %1336 = vmatprep.subr.mxu0 %v1104
        %1337 = vmatpush1.msra.mxu0 %v1103
        %1338 = vmatprep.subr.mxu0 %v1101
        %1339 = vmatpush1.msra.mxu0 %v1100
        %1340 = vmatprep.subr.mxu0 0.0
        %1341 = vmatpush2.msra.mxu0 0.0
        %1342 = vmatprep.subr.mxu0 0.0
        %1343 = vmatpush2.msra.mxu0 0.0
        %1344 = vmatprep.subr.mxu0 0.0
        %1345 = vmatpush2.msra.mxu0 0.0
        %1346 = vmatprep.subr.mxu0 0.0
        %1347 = vmatpush2.msra.mxu0 0.0
        %1348 = vmatprep.subr.mxu0 0.0
        %1349 = vmatpush2.msra.mxu0 0.0
        %1350 = vmatprep.subr.mxu0 0.0
        %1351 = vmatpush2.msra.mxu0 0.0
        %1352 = vmatprep.subr.mxu0 0.0
        %1353 = vmatpush2.msra.mxu0 0.0
        %1354 = vmatprep.subr.mxu0 0.0
        %1355 = vmatpush2.msra.mxu0 0.0
        %1356 = vmatprep.subr.mxu0 0.0
        %1357 = vmatpush2.msra.mxu0 0.0
        %1358 = vmatprep.subr.mxu0 0.0
        %1359 = vmatpush2.msra.mxu0 0.0
        %1360 = vmatprep.subr.mxu0 0.0
        %1361 = vmatpush2.msra.mxu0 0.0
        %1362 = vmatprep.subr.mxu0 0.0
        %1363 = vmatpush2.msra.mxu0 0.0
        %1364 = vmatprep.subr.mxu0 0.0
        %1365 = vmatpush2.msra.mxu0 0.0
        %1366 = vmatprep.subr.mxu0 0.0
        %1367 = vmatpush2.msra.mxu0 0.0
        %1368 = vmatprep.subr.mxu0 0.0
        %1369 = vmatpush2.msra.mxu0 0.0
        %1370 = vmatprep.subr.mxu0 0.0
        %1371 = vmatpush2.msra.mxu0 0.0
        %1372 = vmatprep.mubr.f32.mxu0 0.0
        %1373 = vmatmul.mubr.f32.gmra.mxu0 %v1152
        %v1374 = vpop.f32.mrf.mxu0
        %v1375 = vadd.f32 0.0, %v1374
        %v1376 = vpop.f32.mrf.mxu0
        %v1377 = vadd.f32 0.0, %v1376
        %1378 = vdwg.mxu0
        %1379 = vmatprep.subr.mxu0 0.0
        %1380 = vmatpush1.msra.mxu0 %v1147
        %1381 = vmatprep.subr.mxu0 0.0
        %1382 = vmatpush1.msra.mxu0 %v1144
        %1383 = vmatprep.subr.mxu0 0.0
        %1384 = vmatpush1.msra.mxu0 %v1141
        %1385 = vmatprep.subr.mxu0 0.0
        %1386 = vmatpush1.msra.mxu0 %v1138
        %1387 = vmatprep.subr.mxu0 0.0
        %1388 = vmatpush1.msra.mxu0 %v1135
        %1389 = vmatprep.subr.mxu0 0.0
        %1390 = vmatpush1.msra.mxu0 %v1132
        %1391 = vmatprep.subr.mxu0 0.0
        %1392 = vmatpush1.msra.mxu0 %v1129
        %1393 = vmatprep.subr.mxu0 0.0
        %1394 = vmatpush1.msra.mxu0 %v1126
        %1395 = vmatprep.subr.mxu0 0.0
        %1396 = vmatpush1.msra.mxu0 %v1123
        %1397 = vmatprep.subr.mxu0 0.0
        %1398 = vmatpush1.msra.mxu0 %v1120
        %1399 = vmatprep.subr.mxu0 0.0
        %1400 = vmatpush1.msra.mxu0 %v1117
        %1401 = vmatprep.subr.mxu0 0.0
        %1402 = vmatpush1.msra.mxu0 %v1114
        %1403 = vmatprep.subr.mxu0 0.0
        %1404 = vmatpush1.msra.mxu0 %v1111
        %1405 = vmatprep.subr.mxu0 0.0
        %1406 = vmatpush1.msra.mxu0 %v1108
        %1407 = vmatprep.subr.mxu0 0.0
        %1408 = vmatpush1.msra.mxu0 %v1105
        %1409 = vmatprep.subr.mxu0 0.0
        %1410 = vmatpush1.msra.mxu0 %v1102
        %1411 = vmatprep.subr.mxu0 0.0
        %1412 = vmatpush2.msra.mxu0 0.0
        %1413 = vmatprep.subr.mxu0 0.0
        %1414 = vmatpush2.msra.mxu0 0.0
        %1415 = vmatprep.subr.mxu0 0.0
        %1416 = vmatpush2.msra.mxu0 0.0
        %1417 = vmatprep.subr.mxu0 0.0
        %1418 = vmatpush2.msra.mxu0 0.0
        %1419 = vmatprep.subr.mxu0 0.0
        %1420 = vmatpush2.msra.mxu0 0.0
        %1421 = vmatprep.subr.mxu0 0.0
        %1422 = vmatpush2.msra.mxu0 0.0
        %1423 = vmatprep.subr.mxu0 0.0
        %1424 = vmatpush2.msra.mxu0 0.0
        %1425 = vmatprep.subr.mxu0 0.0
        %1426 = vmatpush2.msra.mxu0 0.0
        %1427 = vmatprep.subr.mxu0 0.0
        %1428 = vmatpush2.msra.mxu0 0.0
        %1429 = vmatprep.subr.mxu0 0.0
        %1430 = vmatpush2.msra.mxu0 0.0
        %1431 = vmatprep.subr.mxu0 0.0
        %1432 = vmatpush2.msra.mxu0 0.0
        %1433 = vmatprep.subr.mxu0 0.0
        %1434 = vmatpush2.msra.mxu0 0.0
        %1435 = vmatprep.subr.mxu0 0.0
        %1436 = vmatpush2.msra.mxu0 0.0
        %1437 = vmatprep.subr.mxu0 0.0
        %1438 = vmatpush2.msra.mxu0 0.0
        %1439 = vmatprep.subr.mxu0 0.0
        %1440 = vmatpush2.msra.mxu0 0.0
        %1441 = vmatprep.subr.mxu0 0.0
        %1442 = vmatpush2.msra.mxu0 0.0
        %1443 = vmatprep.mubr.f32.mxu0 0.0
        %1444 = vmatmul.mubr.f32.gmra.mxu0 %v1152
        %v1445 = vpop.f32.mrf.mxu0
        %v1446 = vadd.f32 0.0, %v1445
        %v1447 = vpop.f32.mrf.mxu0
        %1448 = vdwg.mxu0
        %v1449 = vadd.f32 %v1158, %v1234
        %v1450 = vxor.u32 %v1449, 2147483648
        %v1451 = vmul.f32 %v1450, 1.442695
        %v1452 = vpow.pop %v1451
        %v1453 = vadd.f32 %v1452, 1.0
        %v1454 = vrcp.pop %v1453
        %v1455 = vmul.f32 1.0, %v1454
        %v1456 = vadd.f32 %v1159, %v1236
        %v1457 = vxor.u32 %v1456, 2147483648
        %v1458 = vmul.f32 %v1457, 1.442695
        %v1459 = vpow.pop %v1458
        %v1460 = vadd.f32 %v1459, 1.0
        %v1461 = vrcp.pop %v1460
        %v1462 = vmul.f32 1.0, %v1461
        %v1464 = vlaneseq
        %v1465 = vshrl.u32 %v1464, 7
        %v1466 = vsub.s32 0, %v1465
        %v1467 = vrot.slane %v1148, %v1466
        %v1469 = vadd.f32 %v1305, %v1467
        %v1470 = vmul.f32 %v1455, %v1469
        %v1471 = vadd.f32 %v1160, %v1470
        %v1472 = vtanh.pop %v1471
        %v1473 = vsub.f32 1.0, %v1462
        %v1474 = vmul.f32 %v1473, %v1472
        %v1475 = vmul.f32 %v1462, %v1151
        %v1476 = vadd.f32 %v1474, %v1475
        %v1477 = vadd.f32 %v1164, %v1375
        %v1478 = vxor.u32 %v1477, 2147483648
        %v1479 = vmul.f32 %v1478, 1.442695
        %v1480 = vpow.pop %v1479
        %v1481 = vadd.f32 %v1480, 1.0
        %v1482 = vrcp.pop %v1481
        %v1483 = vmul.f32 1.0, %v1482
        %v1484 = vadd.f32 %v1165, %v1377
        %v1485 = vxor.u32 %v1484, 2147483648
        %v1486 = vmul.f32 %v1485, 1.442695
        %v1487 = vpow.pop %v1486
        %v1488 = vadd.f32 %v1487, 1.0
        %v1489 = vrcp.pop %v1488
        %v1490 = vmul.f32 1.0, %v1489
        %v1492 = vlaneseq
        %v1493 = vshrl.u32 %v1492, 7
        %v1494 = vsub.s32 0, %v1493
        %v1495 = vrot.slane %v1150, %v1494
        %v1497 = vadd.f32 %v1446, %v1495
        %v1498 = vmul.f32 %v1483, %v1497
        %v1499 = vadd.f32 %v1166, %v1498
        %v1500 = vtanh.pop %v1499
        %v1501 = vsub.f32 1.0, %v1490
        %v1502 = vmul.f32 %v1501, %v1500
        %v1503 = vmul.f32 %v1490, %v1152
        %v1504 = vadd.f32 %v1502, %v1503
        %v1505 = vstv %s1153
        %vm1506 = vcmp.lt.s32.totalorder %v1505, %v1050
        %v1507 = vstv %s1154
        %vm1508 = vcmp.lt.s32.totalorder %v1507, %v1050
        %v1509 = vsel %vm1506, 1, 0
        %1510 = vset.pattern.permute.xlu0 0
        %1511 = vperm.xlu0 %1510, %v1509
        %v1512 = vpop.permute.xlu0 %1511
        %vm1513 = vcmp.eq.s32.totalorder %v1512, 1
        %v1514 = vsel %vm1513, %v1476, 0.0
        %1515 = vst [vmem:[%s510] sm:$0xff] %v1514
        %v1516 = vsel %vm1508, 1, 0
        %1517 = vset.pattern.permute.xlu0 0
        %1518 = vperm.xlu0 %1517, %v1516
        %v1519 = vpop.permute.xlu0 %1518
        %vm1520 = vcmp.eq.s32.totalorder %v1519, 1
        %v1521 = vsel %vm1520, %v1504, 0.0
        %s1522 = scalar_lea.vmem %s517, 24 [#allocation15]
        %1523 = vst [vmem:[%s1522] sm:$0xff] %v1521
        %v1524 = vsel %vm1513, %v1476, %v1151
        %v1525 = vsel %vm1520, %v1504, %v1152
        %s1526 = sadd.s32 %s1153, 1
        %s1527 = ssub.s32 10, %s1153
        %s1528 = smul.u32 1, 3
        %s1529 = smul.addr %s1528, 8
        %s1530 = scalar_lea.vmem [#allocation3], %s1529
        %v1531 = vld [vmem:[%s1530] sm:$0xff]
        %v1532 = vld [vmem:[%s1530 + $0x8] sm:$0xff]
        %v1533 = vld [vmem:[%s1530 + $0x10] sm:$0xff]
        %s1534 = smul.u32 2, 3
        %s1535 = smul.addr %s1534, 8
        %s1536 = scalar_lea.vmem [#allocation4], %s1535
        %v1537 = vld [vmem:[%s1536] sm:$0xff]
        %v1538 = vld [vmem:[%s1536 + $0x8] sm:$0xff]
        %v1539 = vld [vmem:[%s1536 + $0x10] sm:$0xff]
        %1540 = vmatprep.subr.mxu0 %v1097
        %1541 = vmatpush1.msra.mxu0 %v1096
        %1542 = vmatprep.subr.mxu0 %v1094
        %1543 = vmatpush1.msra.mxu0 %v1093
        %1544 = vmatprep.subr.mxu0 %v1091
        %1545 = vmatpush1.msra.mxu0 %v1090
        %1546 = vmatprep.subr.mxu0 %v1088
        %1547 = vmatpush1.msra.mxu0 %v1087
        %1548 = vmatprep.subr.mxu0 %v1085
        %1549 = vmatpush1.msra.mxu0 %v1084
        %1550 = vmatprep.subr.mxu0 %v1082
        %1551 = vmatpush1.msra.mxu0 %v1081
        %1552 = vmatprep.subr.mxu0 %v1079
        %1553 = vmatpush1.msra.mxu0 %v1078
        %1554 = vmatprep.subr.mxu0 %v1076
        %1555 = vmatpush1.msra.mxu0 %v1075
        %1556 = vmatprep.subr.mxu0 %v1073
        %1557 = vmatpush1.msra.mxu0 %v1072
        %1558 = vmatprep.subr.mxu0 %v1070
        %1559 = vmatpush1.msra.mxu0 %v1069
        %1560 = vmatprep.subr.mxu0 %v1067
        %1561 = vmatpush1.msra.mxu0 %v1066
        %1562 = vmatprep.subr.mxu0 %v1064
        %1563 = vmatpush1.msra.mxu0 %v1063
        %1564 = vmatprep.subr.mxu0 %v1061
        %1565 = vmatpush1.msra.mxu0 %v1060
        %1566 = vmatprep.subr.mxu0 %v1058
        %1567 = vmatpush1.msra.mxu0 %v1057
        %1568 = vmatprep.subr.mxu0 %v1055
        %1569 = vmatpush1.msra.mxu0 %v1054
        %1570 = vmatprep.subr.mxu0 %v1052
        %1571 = vmatpush1.msra.mxu0 %v1051
        %1572 = vmatprep.subr.mxu0 0.0
        %1573 = vmatpush2.msra.mxu0 0.0
        %1574 = vmatprep.subr.mxu0 0.0
        %1575 = vmatpush2.msra.mxu0 0.0
        %1576 = vmatprep.subr.mxu0 0.0
        %1577 = vmatpush2.msra.mxu0 0.0
        %1578 = vmatprep.subr.mxu0 0.0
        %1579 = vmatpush2.msra.mxu0 0.0
        %1580 = vmatprep.subr.mxu0 0.0
        %1581 = vmatpush2.msra.mxu0 0.0
        %1582 = vmatprep.subr.mxu0 0.0
        %1583 = vmatpush2.msra.mxu0 0.0
        %1584 = vmatprep.subr.mxu0 0.0
        %1585 = vmatpush2.msra.mxu0 0.0
        %1586 = vmatprep.subr.mxu0 0.0
        %1587 = vmatpush2.msra.mxu0 0.0
        %1588 = vmatprep.subr.mxu0 0.0
        %1589 = vmatpush2.msra.mxu0 0.0
        %1590 = vmatprep.subr.mxu0 0.0
        %1591 = vmatpush2.msra.mxu0 0.0
        %1592 = vmatprep.subr.mxu0 0.0
        %1593 = vmatpush2.msra.mxu0 0.0
        %1594 = vmatprep.subr.mxu0 0.0
        %1595 = vmatpush2.msra.mxu0 0.0
        %1596 = vmatprep.subr.mxu0 0.0
        %1597 = vmatpush2.msra.mxu0 0.0
        %1598 = vmatprep.subr.mxu0 0.0
        %1599 = vmatpush2.msra.mxu0 0.0
        %1600 = vmatprep.subr.mxu0 0.0
        %1601 = vmatpush2.msra.mxu0 0.0
        %1602 = vmatprep.subr.mxu0 0.0
        %1603 = vmatpush2.msra.mxu0 0.0
        %1604 = vmatprep.mubr.f32.mxu0 0.0
        %1605 = vmatmul.mubr.f32.gmra.mxu0 %v1524
        %v1606 = vpop.f32.mrf.mxu0
        %v1607 = vadd.f32 0.0, %v1606
        %v1608 = vpop.f32.mrf.mxu0
        %v1609 = vadd.f32 0.0, %v1608
        %1610 = vdwg.mxu0
        %1611 = vmatprep.subr.mxu0 0.0
        %1612 = vmatpush1.msra.mxu0 %v1098
        %1613 = vmatprep.subr.mxu0 0.0
        %1614 = vmatpush1.msra.mxu0 %v1095
        %1615 = vmatprep.subr.mxu0 0.0
        %1616 = vmatpush1.msra.mxu0 %v1092
        %1617 = vmatprep.subr.mxu0 0.0
        %1618 = vmatpush1.msra.mxu0 %v1089
        %1619 = vmatprep.subr.mxu0 0.0
        %1620 = vmatpush1.msra.mxu0 %v1086
        %1621 = vmatprep.subr.mxu0 0.0
        %1622 = vmatpush1.msra.mxu0 %v1083
        %1623 = vmatprep.subr.mxu0 0.0
        %1624 = vmatpush1.msra.mxu0 %v1080
        %1625 = vmatprep.subr.mxu0 0.0
        %1626 = vmatpush1.msra.mxu0 %v1077
        %1627 = vmatprep.subr.mxu0 0.0
        %1628 = vmatpush1.msra.mxu0 %v1074
        %1629 = vmatprep.subr.mxu0 0.0
        %1630 = vmatpush1.msra.mxu0 %v1071
        %1631 = vmatprep.subr.mxu0 0.0
        %1632 = vmatpush1.msra.mxu0 %v1068
        %1633 = vmatprep.subr.mxu0 0.0
        %1634 = vmatpush1.msra.mxu0 %v1065
        %1635 = vmatprep.subr.mxu0 0.0
        %1636 = vmatpush1.msra.mxu0 %v1062
        %1637 = vmatprep.subr.mxu0 0.0
        %1638 = vmatpush1.msra.mxu0 %v1059
        %1639 = vmatprep.subr.mxu0 0.0
        %1640 = vmatpush1.msra.mxu0 %v1056
        %1641 = vmatprep.subr.mxu0 0.0
        %1642 = vmatpush1.msra.mxu0 %v1053
        %1643 = vmatprep.subr.mxu0 0.0
        %1644 = vmatpush2.msra.mxu0 0.0
        %1645 = vmatprep.subr.mxu0 0.0
        %1646 = vmatpush2.msra.mxu0 0.0
        %1647 = vmatprep.subr.mxu0 0.0
        %1648 = vmatpush2.msra.mxu0 0.0
        %1649 = vmatprep.subr.mxu0 0.0
        %1650 = vmatpush2.msra.mxu0 0.0
        %1651 = vmatprep.subr.mxu0 0.0
        %1652 = vmatpush2.msra.mxu0 0.0
        %1653 = vmatprep.subr.mxu0 0.0
        %1654 = vmatpush2.msra.mxu0 0.0
        %1655 = vmatprep.subr.mxu0 0.0
        %1656 = vmatpush2.msra.mxu0 0.0
        %1657 = vmatprep.subr.mxu0 0.0
        %1658 = vmatpush2.msra.mxu0 0.0
        %1659 = vmatprep.subr.mxu0 0.0
        %1660 = vmatpush2.msra.mxu0 0.0
        %1661 = vmatprep.subr.mxu0 0.0
        %1662 = vmatpush2.msra.mxu0 0.0
        %1663 = vmatprep.subr.mxu0 0.0
        %1664 = vmatpush2.msra.mxu0 0.0
        %1665 = vmatprep.subr.mxu0 0.0
        %1666 = vmatpush2.msra.mxu0 0.0
        %1667 = vmatprep.subr.mxu0 0.0
        %1668 = vmatpush2.msra.mxu0 0.0
        %1669 = vmatprep.subr.mxu0 0.0
        %1670 = vmatpush2.msra.mxu0 0.0
        %1671 = vmatprep.subr.mxu0 0.0
        %1672 = vmatpush2.msra.mxu0 0.0
        %1673 = vmatprep.subr.mxu0 0.0
        %1674 = vmatpush2.msra.mxu0 0.0
        %1675 = vmatprep.mubr.f32.mxu0 0.0
        %1676 = vmatmul.mubr.f32.gmra.mxu0 %v1524
        %v1677 = vpop.f32.mrf.mxu0
        %v1678 = vadd.f32 0.0, %v1677
        %v1679 = vpop.f32.mrf.mxu0
        %1680 = vdwg.mxu0
        %1681 = vmatprep.subr.mxu0 %v1146
        %1682 = vmatpush1.msra.mxu0 %v1145
        %1683 = vmatprep.subr.mxu0 %v1143
        %1684 = vmatpush1.msra.mxu0 %v1142
        %1685 = vmatprep.subr.mxu0 %v1140
        %1686 = vmatpush1.msra.mxu0 %v1139
        %1687 = vmatprep.subr.mxu0 %v1137
        %1688 = vmatpush1.msra.mxu0 %v1136
        %1689 = vmatprep.subr.mxu0 %v1134
        %1690 = vmatpush1.msra.mxu0 %v1133
        %1691 = vmatprep.subr.mxu0 %v1131
        %1692 = vmatpush1.msra.mxu0 %v1130
        %1693 = vmatprep.subr.mxu0 %v1128
        %1694 = vmatpush1.msra.mxu0 %v1127
        %1695 = vmatprep.subr.mxu0 %v1125
        %1696 = vmatpush1.msra.mxu0 %v1124
        %1697 = vmatprep.subr.mxu0 %v1122
        %1698 = vmatpush1.msra.mxu0 %v1121
        %1699 = vmatprep.subr.mxu0 %v1119
        %1700 = vmatpush1.msra.mxu0 %v1118
        %1701 = vmatprep.subr.mxu0 %v1116
        %1702 = vmatpush1.msra.mxu0 %v1115
        %1703 = vmatprep.subr.mxu0 %v1113
        %1704 = vmatpush1.msra.mxu0 %v1112
        %1705 = vmatprep.subr.mxu0 %v1110
        %1706 = vmatpush1.msra.mxu0 %v1109
        %1707 = vmatprep.subr.mxu0 %v1107
        %1708 = vmatpush1.msra.mxu0 %v1106
        %1709 = vmatprep.subr.mxu0 %v1104
        %1710 = vmatpush1.msra.mxu0 %v1103
        %1711 = vmatprep.subr.mxu0 %v1101
        %1712 = vmatpush1.msra.mxu0 %v1100
        %1713 = vmatprep.subr.mxu0 0.0
        %1714 = vmatpush2.msra.mxu0 0.0
        %1715 = vmatprep.subr.mxu0 0.0
        %1716 = vmatpush2.msra.mxu0 0.0
        %1717 = vmatprep.subr.mxu0 0.0
        %1718 = vmatpush2.msra.mxu0 0.0
        %1719 = vmatprep.subr.mxu0 0.0
        %1720 = vmatpush2.msra.mxu0 0.0
        %1721 = vmatprep.subr.mxu0 0.0
        %1722 = vmatpush2.msra.mxu0 0.0
        %1723 = vmatprep.subr.mxu0 0.0
        %1724 = vmatpush2.msra.mxu0 0.0
        %1725 = vmatprep.subr.mxu0 0.0
        %1726 = vmatpush2.msra.mxu0 0.0
        %1727 = vmatprep.subr.mxu0 0.0
        %1728 = vmatpush2.msra.mxu0 0.0
        %1729 = vmatprep.subr.mxu0 0.0
        %1730 = vmatpush2.msra.mxu0 0.0
        %1731 = vmatprep.subr.mxu0 0.0
        %1732 = vmatpush2.msra.mxu0 0.0
        %1733 = vmatprep.subr.mxu0 0.0
        %1734 = vmatpush2.msra.mxu0 0.0
        %1735 = vmatprep.subr.mxu0 0.0
        %1736 = vmatpush2.msra.mxu0 0.0
        %1737 = vmatprep.subr.mxu0 0.0
        %1738 = vmatpush2.msra.mxu0 0.0
        %1739 = vmatprep.subr.mxu0 0.0
        %1740 = vmatpush2.msra.mxu0 0.0
        %1741 = vmatprep.subr.mxu0 0.0
        %1742 = vmatpush2.msra.mxu0 0.0
        %1743 = vmatprep.subr.mxu0 0.0
        %1744 = vmatpush2.msra.mxu0 0.0
        %1745 = vmatprep.mubr.f32.mxu0 0.0
        %1746 = vmatmul.mubr.f32.gmra.mxu0 %v1525
        %v1747 = vpop.f32.mrf.mxu0
        %v1748 = vadd.f32 0.0, %v1747
        %v1749 = vpop.f32.mrf.mxu0
        %v1750 = vadd.f32 0.0, %v1749
        %1751 = vdwg.mxu0
        %1752 = vmatprep.subr.mxu0 0.0
        %1753 = vmatpush1.msra.mxu0 %v1147
        %1754 = vmatprep.subr.mxu0 0.0
        %1755 = vmatpush1.msra.mxu0 %v1144
        %1756 = vmatprep.subr.mxu0 0.0
        %1757 = vmatpush1.msra.mxu0 %v1141
        %1758 = vmatprep.subr.mxu0 0.0
        %1759 = vmatpush1.msra.mxu0 %v1138
        %1760 = vmatprep.subr.mxu0 0.0
        %1761 = vmatpush1.msra.mxu0 %v1135
        %1762 = vmatprep.subr.mxu0 0.0
        %1763 = vmatpush1.msra.mxu0 %v1132
        %1764 = vmatprep.subr.mxu0 0.0
        %1765 = vmatpush1.msra.mxu0 %v1129
        %1766 = vmatprep.subr.mxu0 0.0
        %1767 = vmatpush1.msra.mxu0 %v1126
        %1768 = vmatprep.subr.mxu0 0.0
        %1769 = vmatpush1.msra.mxu0 %v1123
        %1770 = vmatprep.subr.mxu0 0.0
        %1771 = vmatpush1.msra.mxu0 %v1120
        %1772 = vmatprep.subr.mxu0 0.0
        %1773 = vmatpush1.msra.mxu0 %v1117
        %1774 = vmatprep.subr.mxu0 0.0
        %1775 = vmatpush1.msra.mxu0 %v1114
        %1776 = vmatprep.subr.mxu0 0.0
        %1777 = vmatpush1.msra.mxu0 %v1111
        %1778 = vmatprep.subr.mxu0 0.0
        %1779 = vmatpush1.msra.mxu0 %v1108
        %1780 = vmatprep.subr.mxu0 0.0
        %1781 = vmatpush1.msra.mxu0 %v1105
        %1782 = vmatprep.subr.mxu0 0.0
        %1783 = vmatpush1.msra.mxu0 %v1102
        %1784 = vmatprep.subr.mxu0 0.0
        %1785 = vmatpush2.msra.mxu0 0.0
        %1786 = vmatprep.subr.mxu0 0.0
        %1787 = vmatpush2.msra.mxu0 0.0
        %1788 = vmatprep.subr.mxu0 0.0
        %1789 = vmatpush2.msra.mxu0 0.0
        %1790 = vmatprep.subr.mxu0 0.0
        %1791 = vmatpush2.msra.mxu0 0.0
        %1792 = vmatprep.subr.mxu0 0.0
        %1793 = vmatpush2.msra.mxu0 0.0
        %1794 = vmatprep.subr.mxu0 0.0
        %1795 = vmatpush2.msra.mxu0 0.0
        %1796 = vmatprep.subr.mxu0 0.0
        %1797 = vmatpush2.msra.mxu0 0.0
        %1798 = vmatprep.subr.mxu0 0.0
        %1799 = vmatpush2.msra.mxu0 0.0
        %1800 = vmatprep.subr.mxu0 0.0
        %1801 = vmatpush2.msra.mxu0 0.0
        %1802 = vmatprep.subr.mxu0 0.0
        %1803 = vmatpush2.msra.mxu0 0.0
        %1804 = vmatprep.subr.mxu0 0.0
        %1805 = vmatpush2.msra.mxu0 0.0
        %1806 = vmatprep.subr.mxu0 0.0
        %1807 = vmatpush2.msra.mxu0 0.0
        %1808 = vmatprep.subr.mxu0 0.0
        %1809 = vmatpush2.msra.mxu0 0.0
        %1810 = vmatprep.subr.mxu0 0.0
        %1811 = vmatpush2.msra.mxu0 0.0
        %1812 = vmatprep.subr.mxu0 0.0
        %1813 = vmatpush2.msra.mxu0 0.0
        %1814 = vmatprep.subr.mxu0 0.0
        %1815 = vmatpush2.msra.mxu0 0.0
        %1816 = vmatprep.mubr.f32.mxu0 0.0
        %1817 = vmatmul.mubr.f32.gmra.mxu0 %v1525
        %v1818 = vpop.f32.mrf.mxu0
        %v1819 = vadd.f32 0.0, %v1818
        %v1820 = vpop.f32.mrf.mxu0
        %1821 = vdwg.mxu0
        %v1822 = vadd.f32 %v1531, %v1607
        %v1823 = vxor.u32 %v1822, 2147483648
        %v1824 = vmul.f32 %v1823, 1.442695
        %v1825 = vpow.pop %v1824
        %v1826 = vadd.f32 %v1825, 1.0
        %v1827 = vrcp.pop %v1826
        %v1828 = vmul.f32 1.0, %v1827
        %v1829 = vadd.f32 %v1532, %v1609
        %v1830 = vxor.u32 %v1829, 2147483648
        %v1831 = vmul.f32 %v1830, 1.442695
        %v1832 = vpow.pop %v1831
        %v1833 = vadd.f32 %v1832, 1.0
        %v1834 = vrcp.pop %v1833
        %v1835 = vmul.f32 1.0, %v1834
        %v1836 = vadd.f32 %v1678, %v1467
        %v1837 = vmul.f32 %v1828, %v1836
        %v1838 = vadd.f32 %v1533, %v1837
        %v1839 = vtanh.pop %v1838
        %v1840 = vsub.f32 1.0, %v1835
        %v1841 = vmul.f32 %v1840, %v1839
        %v1842 = vmul.f32 %v1835, %v1524
        %v1843 = vadd.f32 %v1841, %v1842
        %v1844 = vadd.f32 %v1537, %v1748
        %v1845 = vxor.u32 %v1844, 2147483648
        %v1846 = vmul.f32 %v1845, 1.442695
        %v1847 = vpow.pop %v1846
        %v1848 = vadd.f32 %v1847, 1.0
        %v1849 = vrcp.pop %v1848
        %v1850 = vmul.f32 1.0, %v1849
        %v1851 = vadd.f32 %v1538, %v1750
        %v1852 = vxor.u32 %v1851, 2147483648
        %v1853 = vmul.f32 %v1852, 1.442695
        %v1854 = vpow.pop %v1853
        %v1855 = vadd.f32 %v1854, 1.0
        %v1856 = vrcp.pop %v1855
        %v1857 = vmul.f32 1.0, %v1856
        %v1858 = vadd.f32 %v1819, %v1495
        %v1859 = vmul.f32 %v1850, %v1858
        %v1860 = vadd.f32 %v1539, %v1859
        %v1861 = vtanh.pop %v1860
        %v1862 = vsub.f32 1.0, %v1857
        %v1863 = vmul.f32 %v1862, %v1861
        %v1864 = vmul.f32 %v1857, %v1525
        %v1865 = vadd.f32 %v1863, %v1864
        %v1866 = vstv %s1526
        %vm1867 = vcmp.lt.s32.totalorder %v1866, %v1050
        %v1868 = vstv %s1527
        %vm1869 = vcmp.lt.s32.totalorder %v1868, %v1050
        %v1870 = vsel %vm1867, 1, 0
        %1871 = vset.pattern.permute.xlu0 0
        %1872 = vperm.xlu0 %1871, %v1870
        %v1873 = vpop.permute.xlu0 %1872
        %vm1874 = vcmp.eq.s32.totalorder %v1873, 1
        %v1875 = vsel %vm1874, %v1843, 0.0
        %s1876 = scalar_lea.vmem %s510, 8 [#allocation14]
        %1877 = vst [vmem:[%s1876] sm:$0xff] %v1875
        %v1878 = vsel %vm1869, 1, 0
        %1879 = vset.pattern.permute.xlu0 0
        %1880 = vperm.xlu0 %1879, %v1878
        %v1881 = vpop.permute.xlu0 %1880
        %vm1882 = vcmp.eq.s32.totalorder %v1881, 1
        %v1883 = vsel %vm1882, %v1865, 0.0
        %s1884 = scalar_lea.vmem %s517, 16 [#allocation15]
        %1885 = vst [vmem:[%s1884] sm:$0xff] %v1883
        %v1886 = vsel %vm1874, %v1843, %v1524
        %v1887 = vsel %vm1882, %v1865, %v1525
        %s1888 = sadd.s32 %s1153, 2
        %s1889 = ssub.s32 9, %s1153
        %s1890 = smul.addr %s1534, 8
        %s1891 = scalar_lea.vmem [#allocation3], %s1890
        %v1892 = vld [vmem:[%s1891] sm:$0xff]
        %v1893 = vld [vmem:[%s1891 + $0x8] sm:$0xff]
        %v1894 = vld [vmem:[%s1891 + $0x10] sm:$0xff]
        %s1895 = smul.addr %s1528, 8
        %s1896 = scalar_lea.vmem [#allocation4], %s1895
        %v1897 = vld [vmem:[%s1896] sm:$0xff]
        %v1898 = vld [vmem:[%s1896 + $0x8] sm:$0xff]
        %v1899 = vld [vmem:[%s1896 + $0x10] sm:$0xff]
        %1900 = vmatprep.subr.mxu0 %v1097
        %1901 = vmatpush1.msra.mxu0 %v1096
        %1902 = vmatprep.subr.mxu0 %v1094
        %1903 = vmatpush1.msra.mxu0 %v1093
        %1904 = vmatprep.subr.mxu0 %v1091
        %1905 = vmatpush1.msra.mxu0 %v1090
        %1906 = vmatprep.subr.mxu0 %v1088
        %1907 = vmatpush1.msra.mxu0 %v1087
        %1908 = vmatprep.subr.mxu0 %v1085
        %1909 = vmatpush1.msra.mxu0 %v1084
        %1910 = vmatprep.subr.mxu0 %v1082
        %1911 = vmatpush1.msra.mxu0 %v1081
        %1912 = vmatprep.subr.mxu0 %v1079
        %1913 = vmatpush1.msra.mxu0 %v1078
        %1914 = vmatprep.subr.mxu0 %v1076
        %1915 = vmatpush1.msra.mxu0 %v1075
        %1916 = vmatprep.subr.mxu0 %v1073
        %1917 = vmatpush1.msra.mxu0 %v1072
        %1918 = vmatprep.subr.mxu0 %v1070
        %1919 = vmatpush1.msra.mxu0 %v1069
        %1920 = vmatprep.subr.mxu0 %v1067
        %1921 = vmatpush1.msra.mxu0 %v1066
        %1922 = vmatprep.subr.mxu0 %v1064
        %1923 = vmatpush1.msra.mxu0 %v1063
        %1924 = vmatprep.subr.mxu0 %v1061
        %1925 = vmatpush1.msra.mxu0 %v1060
        %1926 = vmatprep.subr.mxu0 %v1058
        %1927 = vmatpush1.msra.mxu0 %v1057
        %1928 = vmatprep.subr.mxu0 %v1055
        %1929 = vmatpush1.msra.mxu0 %v1054
        %1930 = vmatprep.subr.mxu0 %v1052
        %1931 = vmatpush1.msra.mxu0 %v1051
        %1932 = vmatprep.subr.mxu0 0.0
        %1933 = vmatpush2.msra.mxu0 0.0
        %1934 = vmatprep.subr.mxu0 0.0
        %1935 = vmatpush2.msra.mxu0 0.0
        %1936 = vmatprep.subr.mxu0 0.0
        %1937 = vmatpush2.msra.mxu0 0.0
        %1938 = vmatprep.subr.mxu0 0.0
        %1939 = vmatpush2.msra.mxu0 0.0
        %1940 = vmatprep.subr.mxu0 0.0
        %1941 = vmatpush2.msra.mxu0 0.0
        %1942 = vmatprep.subr.mxu0 0.0
        %1943 = vmatpush2.msra.mxu0 0.0
        %1944 = vmatprep.subr.mxu0 0.0
        %1945 = vmatpush2.msra.mxu0 0.0
        %1946 = vmatprep.subr.mxu0 0.0
        %1947 = vmatpush2.msra.mxu0 0.0
        %1948 = vmatprep.subr.mxu0 0.0
        %1949 = vmatpush2.msra.mxu0 0.0
        %1950 = vmatprep.subr.mxu0 0.0
        %1951 = vmatpush2.msra.mxu0 0.0
        %1952 = vmatprep.subr.mxu0 0.0
        %1953 = vmatpush2.msra.mxu0 0.0
        %1954 = vmatprep.subr.mxu0 0.0
        %1955 = vmatpush2.msra.mxu0 0.0
        %1956 = vmatprep.subr.mxu0 0.0
        %1957 = vmatpush2.msra.mxu0 0.0
        %1958 = vmatprep.subr.mxu0 0.0
        %1959 = vmatpush2.msra.mxu0 0.0
        %1960 = vmatprep.subr.mxu0 0.0
        %1961 = vmatpush2.msra.mxu0 0.0
        %1962 = vmatprep.subr.mxu0 0.0
        %1963 = vmatpush2.msra.mxu0 0.0
        %1964 = vmatprep.mubr.f32.mxu0 0.0
        %1965 = vmatmul.mubr.f32.gmra.mxu0 %v1886
        %v1966 = vpop.f32.mrf.mxu0
        %v1967 = vadd.f32 0.0, %v1966
        %v1968 = vpop.f32.mrf.mxu0
        %v1969 = vadd.f32 0.0, %v1968
        %1970 = vdwg.mxu0
        %1971 = vmatprep.subr.mxu0 0.0
        %1972 = vmatpush1.msra.mxu0 %v1098
        %1973 = vmatprep.subr.mxu0 0.0
        %1974 = vmatpush1.msra.mxu0 %v1095
        %1975 = vmatprep.subr.mxu0 0.0
        %1976 = vmatpush1.msra.mxu0 %v1092
        %1977 = vmatprep.subr.mxu0 0.0
        %1978 = vmatpush1.msra.mxu0 %v1089
        %1979 = vmatprep.subr.mxu0 0.0
        %1980 = vmatpush1.msra.mxu0 %v1086
        %1981 = vmatprep.subr.mxu0 0.0
        %1982 = vmatpush1.msra.mxu0 %v1083
        %1983 = vmatprep.subr.mxu0 0.0
        %1984 = vmatpush1.msra.mxu0 %v1080
        %1985 = vmatprep.subr.mxu0 0.0
        %1986 = vmatpush1.msra.mxu0 %v1077
        %1987 = vmatprep.subr.mxu0 0.0
        %1988 = vmatpush1.msra.mxu0 %v1074
        %1989 = vmatprep.subr.mxu0 0.0
        %1990 = vmatpush1.msra.mxu0 %v1071
        %1991 = vmatprep.subr.mxu0 0.0
        %1992 = vmatpush1.msra.mxu0 %v1068
        %1993 = vmatprep.subr.mxu0 0.0
        %1994 = vmatpush1.msra.mxu0 %v1065
        %1995 = vmatprep.subr.mxu0 0.0
        %1996 = vmatpush1.msra.mxu0 %v1062
        %1997 = vmatprep.subr.mxu0 0.0
        %1998 = vmatpush1.msra.mxu0 %v1059
        %1999 = vmatprep.subr.mxu0 0.0
        %2000 = vmatpush1.msra.mxu0 %v1056
        %2001 = vmatprep.subr.mxu0 0.0
        %2002 = vmatpush1.msra.mxu0 %v1053
        %2003 = vmatprep.subr.mxu0 0.0
        %2004 = vmatpush2.msra.mxu0 0.0
        %2005 = vmatprep.subr.mxu0 0.0
        %2006 = vmatpush2.msra.mxu0 0.0
        %2007 = vmatprep.subr.mxu0 0.0
        %2008 = vmatpush2.msra.mxu0 0.0
        %2009 = vmatprep.subr.mxu0 0.0
        %2010 = vmatpush2.msra.mxu0 0.0
        %2011 = vmatprep.subr.mxu0 0.0
        %2012 = vmatpush2.msra.mxu0 0.0
        %2013 = vmatprep.subr.mxu0 0.0
        %2014 = vmatpush2.msra.mxu0 0.0
        %2015 = vmatprep.subr.mxu0 0.0
        %2016 = vmatpush2.msra.mxu0 0.0
        %2017 = vmatprep.subr.mxu0 0.0
        %2018 = vmatpush2.msra.mxu0 0.0
        %2019 = vmatprep.subr.mxu0 0.0
        %2020 = vmatpush2.msra.mxu0 0.0
        %2021 = vmatprep.subr.mxu0 0.0
        %2022 = vmatpush2.msra.mxu0 0.0
        %2023 = vmatprep.subr.mxu0 0.0
        %2024 = vmatpush2.msra.mxu0 0.0
        %2025 = vmatprep.subr.mxu0 0.0
        %2026 = vmatpush2.msra.mxu0 0.0
        %2027 = vmatprep.subr.mxu0 0.0
        %2028 = vmatpush2.msra.mxu0 0.0
        %2029 = vmatprep.subr.mxu0 0.0
        %2030 = vmatpush2.msra.mxu0 0.0
        %2031 = vmatprep.subr.mxu0 0.0
        %2032 = vmatpush2.msra.mxu0 0.0
        %2033 = vmatprep.subr.mxu0 0.0
        %2034 = vmatpush2.msra.mxu0 0.0
        %2035 = vmatprep.mubr.f32.mxu0 0.0
        %2036 = vmatmul.mubr.f32.gmra.mxu0 %v1886
        %v2037 = vpop.f32.mrf.mxu0
        %v2038 = vadd.f32 0.0, %v2037
        %v2039 = vpop.f32.mrf.mxu0
        %2040 = vdwg.mxu0
        %2041 = vmatprep.subr.mxu0 %v1146
        %2042 = vmatpush1.msra.mxu0 %v1145
        %2043 = vmatprep.subr.mxu0 %v1143
        %2044 = vmatpush1.msra.mxu0 %v1142
        %2045 = vmatprep.subr.mxu0 %v1140
        %2046 = vmatpush1.msra.mxu0 %v1139
        %2047 = vmatprep.subr.mxu0 %v1137
        %2048 = vmatpush1.msra.mxu0 %v1136
        %2049 = vmatprep.subr.mxu0 %v1134
        %2050 = vmatpush1.msra.mxu0 %v1133
        %2051 = vmatprep.subr.mxu0 %v1131
        %2052 = vmatpush1.msra.mxu0 %v1130
        %2053 = vmatprep.subr.mxu0 %v1128
        %2054 = vmatpush1.msra.mxu0 %v1127
        %2055 = vmatprep.subr.mxu0 %v1125
        %2056 = vmatpush1.msra.mxu0 %v1124
        %2057 = vmatprep.subr.mxu0 %v1122
        %2058 = vmatpush1.msra.mxu0 %v1121
        %2059 = vmatprep.subr.mxu0 %v1119
        %2060 = vmatpush1.msra.mxu0 %v1118
        %2061 = vmatprep.subr.mxu0 %v1116
        %2062 = vmatpush1.msra.mxu0 %v1115
        %2063 = vmatprep.subr.mxu0 %v1113
        %2064 = vmatpush1.msra.mxu0 %v1112
        %2065 = vmatprep.subr.mxu0 %v1110
        %2066 = vmatpush1.msra.mxu0 %v1109
        %2067 = vmatprep.subr.mxu0 %v1107
        %2068 = vmatpush1.msra.mxu0 %v1106
        %2069 = vmatprep.subr.mxu0 %v1104
        %2070 = vmatpush1.msra.mxu0 %v1103
        %2071 = vmatprep.subr.mxu0 %v1101
        %2072 = vmatpush1.msra.mxu0 %v1100
        %2073 = vmatprep.subr.mxu0 0.0
        %2074 = vmatpush2.msra.mxu0 0.0
        %2075 = vmatprep.subr.mxu0 0.0
        %2076 = vmatpush2.msra.mxu0 0.0
        %2077 = vmatprep.subr.mxu0 0.0
        %2078 = vmatpush2.msra.mxu0 0.0
        %2079 = vmatprep.subr.mxu0 0.0
        %2080 = vmatpush2.msra.mxu0 0.0
        %2081 = vmatprep.subr.mxu0 0.0
        %2082 = vmatpush2.msra.mxu0 0.0
        %2083 = vmatprep.subr.mxu0 0.0
        %2084 = vmatpush2.msra.mxu0 0.0
        %2085 = vmatprep.subr.mxu0 0.0
        %2086 = vmatpush2.msra.mxu0 0.0
        %2087 = vmatprep.subr.mxu0 0.0
        %2088 = vmatpush2.msra.mxu0 0.0
        %2089 = vmatprep.subr.mxu0 0.0
        %2090 = vmatpush2.msra.mxu0 0.0
        %2091 = vmatprep.subr.mxu0 0.0
        %2092 = vmatpush2.msra.mxu0 0.0
        %2093 = vmatprep.subr.mxu0 0.0
        %2094 = vmatpush2.msra.mxu0 0.0
        %2095 = vmatprep.subr.mxu0 0.0
        %2096 = vmatpush2.msra.mxu0 0.0
        %2097 = vmatprep.subr.mxu0 0.0
        %2098 = vmatpush2.msra.mxu0 0.0
        %2099 = vmatprep.subr.mxu0 0.0
        %2100 = vmatpush2.msra.mxu0 0.0
        %2101 = vmatprep.subr.mxu0 0.0
        %2102 = vmatpush2.msra.mxu0 0.0
        %2103 = vmatprep.subr.mxu0 0.0
        %2104 = vmatpush2.msra.mxu0 0.0
        %2105 = vmatprep.mubr.f32.mxu0 0.0
        %2106 = vmatmul.mubr.f32.gmra.mxu0 %v1887
        %v2107 = vpop.f32.mrf.mxu0
        %v2108 = vadd.f32 0.0, %v2107
        %v2109 = vpop.f32.mrf.mxu0
        %v2110 = vadd.f32 0.0, %v2109
        %2111 = vdwg.mxu0
        %2112 = vmatprep.subr.mxu0 0.0
        %2113 = vmatpush1.msra.mxu0 %v1147
        %2114 = vmatprep.subr.mxu0 0.0
        %2115 = vmatpush1.msra.mxu0 %v1144
        %2116 = vmatprep.subr.mxu0 0.0
        %2117 = vmatpush1.msra.mxu0 %v1141
        %2118 = vmatprep.subr.mxu0 0.0
        %2119 = vmatpush1.msra.mxu0 %v1138
        %2120 = vmatprep.subr.mxu0 0.0
        %2121 = vmatpush1.msra.mxu0 %v1135
        %2122 = vmatprep.subr.mxu0 0.0
        %2123 = vmatpush1.msra.mxu0 %v1132
        %2124 = vmatprep.subr.mxu0 0.0
        %2125 = vmatpush1.msra.mxu0 %v1129
        %2126 = vmatprep.subr.mxu0 0.0
        %2127 = vmatpush1.msra.mxu0 %v1126
        %2128 = vmatprep.subr.mxu0 0.0
        %2129 = vmatpush1.msra.mxu0 %v1123
        %2130 = vmatprep.subr.mxu0 0.0
        %2131 = vmatpush1.msra.mxu0 %v1120
        %2132 = vmatprep.subr.mxu0 0.0
        %2133 = vmatpush1.msra.mxu0 %v1117
        %2134 = vmatprep.subr.mxu0 0.0
        %2135 = vmatpush1.msra.mxu0 %v1114
        %2136 = vmatprep.subr.mxu0 0.0
        %2137 = vmatpush1.msra.mxu0 %v1111
        %2138 = vmatprep.subr.mxu0 0.0
        %2139 = vmatpush1.msra.mxu0 %v1108
        %2140 = vmatprep.subr.mxu0 0.0
        %2141 = vmatpush1.msra.mxu0 %v1105
        %2142 = vmatprep.subr.mxu0 0.0
        %2143 = vmatpush1.msra.mxu0 %v1102
        %2144 = vmatprep.subr.mxu0 0.0
        %2145 = vmatpush2.msra.mxu0 0.0
        %2146 = vmatprep.subr.mxu0 0.0
        %2147 = vmatpush2.msra.mxu0 0.0
        %2148 = vmatprep.subr.mxu0 0.0
        %2149 = vmatpush2.msra.mxu0 0.0
        %2150 = vmatprep.subr.mxu0 0.0
        %2151 = vmatpush2.msra.mxu0 0.0
        %2152 = vmatprep.subr.mxu0 0.0
        %2153 = vmatpush2.msra.mxu0 0.0
        %2154 = vmatprep.subr.mxu0 0.0
        %2155 = vmatpush2.msra.mxu0 0.0
        %2156 = vmatprep.subr.mxu0 0.0
        %2157 = vmatpush2.msra.mxu0 0.0
        %2158 = vmatprep.subr.mxu0 0.0
        %2159 = vmatpush2.msra.mxu0 0.0
        %2160 = vmatprep.subr.mxu0 0.0
        %2161 = vmatpush2.msra.mxu0 0.0
        %2162 = vmatprep.subr.mxu0 0.0
        %2163 = vmatpush2.msra.mxu0 0.0
        %2164 = vmatprep.subr.mxu0 0.0
        %2165 = vmatpush2.msra.mxu0 0.0
        %2166 = vmatprep.subr.mxu0 0.0
        %2167 = vmatpush2.msra.mxu0 0.0
        %2168 = vmatprep.subr.mxu0 0.0
        %2169 = vmatpush2.msra.mxu0 0.0
        %2170 = vmatprep.subr.mxu0 0.0
        %2171 = vmatpush2.msra.mxu0 0.0
        %2172 = vmatprep.subr.mxu0 0.0
        %2173 = vmatpush2.msra.mxu0 0.0
        %2174 = vmatprep.subr.mxu0 0.0
        %2175 = vmatpush2.msra.mxu0 0.0
        %2176 = vmatprep.mubr.f32.mxu0 0.0
        %2177 = vmatmul.mubr.f32.gmra.mxu0 %v1887
        %v2178 = vpop.f32.mrf.mxu0
        %v2179 = vadd.f32 0.0, %v2178
        %v2180 = vpop.f32.mrf.mxu0
        %2181 = vdwg.mxu0
        %v2182 = vadd.f32 %v1892, %v1967
        %v2183 = vxor.u32 %v2182, 2147483648
        %v2184 = vmul.f32 %v2183, 1.442695
        %v2185 = vpow.pop %v2184
        %v2186 = vadd.f32 %v2185, 1.0
        %v2187 = vrcp.pop %v2186
        %v2188 = vmul.f32 1.0, %v2187
        %v2189 = vadd.f32 %v1893, %v1969
        %v2190 = vxor.u32 %v2189, 2147483648
        %v2191 = vmul.f32 %v2190, 1.442695
        %v2192 = vpow.pop %v2191
        %v2193 = vadd.f32 %v2192, 1.0
        %v2194 = vrcp.pop %v2193
        %v2195 = vmul.f32 1.0, %v2194
        %v2196 = vadd.f32 %v2038, %v1467
        %v2197 = vmul.f32 %v2188, %v2196
        %v2198 = vadd.f32 %v1894, %v2197
        %v2199 = vtanh.pop %v2198
        %v2200 = vsub.f32 1.0, %v2195
        %v2201 = vmul.f32 %v2200, %v2199
        %v2202 = vmul.f32 %v2195, %v1886
        %v2203 = vadd.f32 %v2201, %v2202
        %v2204 = vadd.f32 %v1897, %v2108
        %v2205 = vxor.u32 %v2204, 2147483648
        %v2206 = vmul.f32 %v2205, 1.442695
        %v2207 = vpow.pop %v2206
        %v2208 = vadd.f32 %v2207, 1.0
        %v2209 = vrcp.pop %v2208
        %v2210 = vmul.f32 1.0, %v2209
        %v2211 = vadd.f32 %v1898, %v2110
        %v2212 = vxor.u32 %v2211, 2147483648
        %v2213 = vmul.f32 %v2212, 1.442695
        %v2214 = vpow.pop %v2213
        %v2215 = vadd.f32 %v2214, 1.0
        %v2216 = vrcp.pop %v2215
        %v2217 = vmul.f32 1.0, %v2216
        %v2218 = vadd.f32 %v2179, %v1495
        %v2219 = vmul.f32 %v2210, %v2218
        %v2220 = vadd.f32 %v1899, %v2219
        %v2221 = vtanh.pop %v2220
        %v2222 = vsub.f32 1.0, %v2217
        %v2223 = vmul.f32 %v2222, %v2221
        %v2224 = vmul.f32 %v2217, %v1887
        %v2225 = vadd.f32 %v2223, %v2224
        %v2226 = vstv %s1888
        %vm2227 = vcmp.lt.s32.totalorder %v2226, %v1050
        %v2228 = vstv %s1889
        %vm2229 = vcmp.lt.s32.totalorder %v2228, %v1050
        %v2230 = vsel %vm2227, 1, 0
        %2231 = vset.pattern.permute.xlu0 0
        %2232 = vperm.xlu0 %2231, %v2230
        %v2233 = vpop.permute.xlu0 %2232
        %vm2234 = vcmp.eq.s32.totalorder %v2233, 1
        %v2235 = vsel %vm2234, %v2203, 0.0
        %s2236 = scalar_lea.vmem %s510, 16 [#allocation14]
        %2237 = vst [vmem:[%s2236] sm:$0xff] %v2235
        %v2238 = vsel %vm2229, 1, 0
        %2239 = vset.pattern.permute.xlu0 0
        %2240 = vperm.xlu0 %2239, %v2238
        %v2241 = vpop.permute.xlu0 %2240
        %vm2242 = vcmp.eq.s32.totalorder %v2241, 1
        %v2243 = vsel %vm2242, %v2225, 0.0
        %s2244 = scalar_lea.vmem %s517, 8 [#allocation15]
        %2245 = vst [vmem:[%s2244] sm:$0xff] %v2243
        %v2246 = vsel %vm2234, %v2203, %v1886
        %v2247 = vsel %vm2242, %v2225, %v1887
        %s2248 = sadd.s32 %s1153, 3
        %s2249 = ssub.s32 8, %s1153
        %s2250 = smul.addr %s1161, 8
        %s2251 = scalar_lea.vmem [#allocation3], %s2250
        %v2252 = vld [vmem:[%s2251] sm:$0xff]
        %v2253 = vld [vmem:[%s2251 + $0x8] sm:$0xff]
        %v2254 = vld [vmem:[%s2251 + $0x10] sm:$0xff]
        %s2255 = smul.addr %s1155, 8
        %s2256 = scalar_lea.vmem [#allocation4], %s2255
        %v2257 = vld [vmem:[%s2256] sm:$0xff]
        %v2258 = vld [vmem:[%s2256 + $0x8] sm:$0xff]
        %v2259 = vld [vmem:[%s2256 + $0x10] sm:$0xff]
        %2260 = vmatprep.subr.mxu0 %v1097
        %2261 = vmatpush1.msra.mxu0 %v1096
        %2262 = vmatprep.subr.mxu0 %v1094
        %2263 = vmatpush1.msra.mxu0 %v1093
        %2264 = vmatprep.subr.mxu0 %v1091
        %2265 = vmatpush1.msra.mxu0 %v1090
        %2266 = vmatprep.subr.mxu0 %v1088
        %2267 = vmatpush1.msra.mxu0 %v1087
        %2268 = vmatprep.subr.mxu0 %v1085
        %2269 = vmatpush1.msra.mxu0 %v1084
        %2270 = vmatprep.subr.mxu0 %v1082
        %2271 = vmatpush1.msra.mxu0 %v1081
        %2272 = vmatprep.subr.mxu0 %v1079
        %2273 = vmatpush1.msra.mxu0 %v1078
        %2274 = vmatprep.subr.mxu0 %v1076
        %2275 = vmatpush1.msra.mxu0 %v1075
        %2276 = vmatprep.subr.mxu0 %v1073
        %2277 = vmatpush1.msra.mxu0 %v1072
        %2278 = vmatprep.subr.mxu0 %v1070
        %2279 = vmatpush1.msra.mxu0 %v1069
        %2280 = vmatprep.subr.mxu0 %v1067
        %2281 = vmatpush1.msra.mxu0 %v1066
        %2282 = vmatprep.subr.mxu0 %v1064
        %2283 = vmatpush1.msra.mxu0 %v1063
        %2284 = vmatprep.subr.mxu0 %v1061
        %2285 = vmatpush1.msra.mxu0 %v1060
        %2286 = vmatprep.subr.mxu0 %v1058
        %2287 = vmatpush1.msra.mxu0 %v1057
        %2288 = vmatprep.subr.mxu0 %v1055
        %2289 = vmatpush1.msra.mxu0 %v1054
        %2290 = vmatprep.subr.mxu0 %v1052
        %2291 = vmatpush1.msra.mxu0 %v1051
        %2292 = vmatprep.subr.mxu0 0.0
        %2293 = vmatpush2.msra.mxu0 0.0
        %2294 = vmatprep.subr.mxu0 0.0
        %2295 = vmatpush2.msra.mxu0 0.0
        %2296 = vmatprep.subr.mxu0 0.0
        %2297 = vmatpush2.msra.mxu0 0.0
        %2298 = vmatprep.subr.mxu0 0.0
        %2299 = vmatpush2.msra.mxu0 0.0
        %2300 = vmatprep.subr.mxu0 0.0
        %2301 = vmatpush2.msra.mxu0 0.0
        %2302 = vmatprep.subr.mxu0 0.0
        %2303 = vmatpush2.msra.mxu0 0.0
        %2304 = vmatprep.subr.mxu0 0.0
        %2305 = vmatpush2.msra.mxu0 0.0
        %2306 = vmatprep.subr.mxu0 0.0
        %2307 = vmatpush2.msra.mxu0 0.0
        %2308 = vmatprep.subr.mxu0 0.0
        %2309 = vmatpush2.msra.mxu0 0.0
        %2310 = vmatprep.subr.mxu0 0.0
        %2311 = vmatpush2.msra.mxu0 0.0
        %2312 = vmatprep.subr.mxu0 0.0
        %2313 = vmatpush2.msra.mxu0 0.0
        %2314 = vmatprep.subr.mxu0 0.0
        %2315 = vmatpush2.msra.mxu0 0.0
        %2316 = vmatprep.subr.mxu0 0.0
        %2317 = vmatpush2.msra.mxu0 0.0
        %2318 = vmatprep.subr.mxu0 0.0
        %2319 = vmatpush2.msra.mxu0 0.0
        %2320 = vmatprep.subr.mxu0 0.0
        %2321 = vmatpush2.msra.mxu0 0.0
        %2322 = vmatprep.subr.mxu0 0.0
        %2323 = vmatpush2.msra.mxu0 0.0
        %2324 = vmatprep.mubr.f32.mxu0 0.0
        %2325 = vmatmul.mubr.f32.gmra.mxu0 %v2246
        %v2326 = vpop.f32.mrf.mxu0
        %v2327 = vadd.f32 0.0, %v2326
        %v2328 = vpop.f32.mrf.mxu0
        %v2329 = vadd.f32 0.0, %v2328
        %2330 = vdwg.mxu0
        %2331 = vmatprep.subr.mxu0 0.0
        %2332 = vmatpush1.msra.mxu0 %v1098
        %2333 = vmatprep.subr.mxu0 0.0
        %2334 = vmatpush1.msra.mxu0 %v1095
        %2335 = vmatprep.subr.mxu0 0.0
        %2336 = vmatpush1.msra.mxu0 %v1092
        %2337 = vmatprep.subr.mxu0 0.0
        %2338 = vmatpush1.msra.mxu0 %v1089
        %2339 = vmatprep.subr.mxu0 0.0
        %2340 = vmatpush1.msra.mxu0 %v1086
        %2341 = vmatprep.subr.mxu0 0.0
        %2342 = vmatpush1.msra.mxu0 %v1083
        %2343 = vmatprep.subr.mxu0 0.0
        %2344 = vmatpush1.msra.mxu0 %v1080
        %2345 = vmatprep.subr.mxu0 0.0
        %2346 = vmatpush1.msra.mxu0 %v1077
        %2347 = vmatprep.subr.mxu0 0.0
        %2348 = vmatpush1.msra.mxu0 %v1074
        %2349 = vmatprep.subr.mxu0 0.0
        %2350 = vmatpush1.msra.mxu0 %v1071
        %2351 = vmatprep.subr.mxu0 0.0
        %2352 = vmatpush1.msra.mxu0 %v1068
        %2353 = vmatprep.subr.mxu0 0.0
        %2354 = vmatpush1.msra.mxu0 %v1065
        %2355 = vmatprep.subr.mxu0 0.0
        %2356 = vmatpush1.msra.mxu0 %v1062
        %2357 = vmatprep.subr.mxu0 0.0
        %2358 = vmatpush1.msra.mxu0 %v1059
        %2359 = vmatprep.subr.mxu0 0.0
        %2360 = vmatpush1.msra.mxu0 %v1056
        %2361 = vmatprep.subr.mxu0 0.0
        %2362 = vmatpush1.msra.mxu0 %v1053
        %2363 = vmatprep.subr.mxu0 0.0
        %2364 = vmatpush2.msra.mxu0 0.0
        %2365 = vmatprep.subr.mxu0 0.0
        %2366 = vmatpush2.msra.mxu0 0.0
        %2367 = vmatprep.subr.mxu0 0.0
        %2368 = vmatpush2.msra.mxu0 0.0
        %2369 = vmatprep.subr.mxu0 0.0
        %2370 = vmatpush2.msra.mxu0 0.0
        %2371 = vmatprep.subr.mxu0 0.0
        %2372 = vmatpush2.msra.mxu0 0.0
        %2373 = vmatprep.subr.mxu0 0.0
        %2374 = vmatpush2.msra.mxu0 0.0
        %2375 = vmatprep.subr.mxu0 0.0
        %2376 = vmatpush2.msra.mxu0 0.0
        %2377 = vmatprep.subr.mxu0 0.0
        %2378 = vmatpush2.msra.mxu0 0.0
        %2379 = vmatprep.subr.mxu0 0.0
        %2380 = vmatpush2.msra.mxu0 0.0
        %2381 = vmatprep.subr.mxu0 0.0
        %2382 = vmatpush2.msra.mxu0 0.0
        %2383 = vmatprep.subr.mxu0 0.0
        %2384 = vmatpush2.msra.mxu0 0.0
        %2385 = vmatprep.subr.mxu0 0.0
        %2386 = vmatpush2.msra.mxu0 0.0
        %2387 = vmatprep.subr.mxu0 0.0
        %2388 = vmatpush2.msra.mxu0 0.0
        %2389 = vmatprep.subr.mxu0 0.0
        %2390 = vmatpush2.msra.mxu0 0.0
        %2391 = vmatprep.subr.mxu0 0.0
        %2392 = vmatpush2.msra.mxu0 0.0
        %2393 = vmatprep.subr.mxu0 0.0
        %2394 = vmatpush2.msra.mxu0 0.0
        %2395 = vmatprep.mubr.f32.mxu0 0.0
        %2396 = vmatmul.mubr.f32.gmra.mxu0 %v2246
        %v2397 = vpop.f32.mrf.mxu0
        %v2398 = vadd.f32 0.0, %v2397
        %v2399 = vpop.f32.mrf.mxu0
        %2400 = vdwg.mxu0
        %2401 = vmatprep.subr.mxu0 %v1146
        %2402 = vmatpush1.msra.mxu0 %v1145
        %2403 = vmatprep.subr.mxu0 %v1143
        %2404 = vmatpush1.msra.mxu0 %v1142
        %2405 = vmatprep.subr.mxu0 %v1140
        %2406 = vmatpush1.msra.mxu0 %v1139
        %2407 = vmatprep.subr.mxu0 %v1137
        %2408 = vmatpush1.msra.mxu0 %v1136
        %2409 = vmatprep.subr.mxu0 %v1134
        %2410 = vmatpush1.msra.mxu0 %v1133
        %2411 = vmatprep.subr.mxu0 %v1131
        %2412 = vmatpush1.msra.mxu0 %v1130
        %2413 = vmatprep.subr.mxu0 %v1128
        %2414 = vmatpush1.msra.mxu0 %v1127
        %2415 = vmatprep.subr.mxu0 %v1125
        %2416 = vmatpush1.msra.mxu0 %v1124
        %2417 = vmatprep.subr.mxu0 %v1122
        %2418 = vmatpush1.msra.mxu0 %v1121
        %2419 = vmatprep.subr.mxu0 %v1119
        %2420 = vmatpush1.msra.mxu0 %v1118
        %2421 = vmatprep.subr.mxu0 %v1116
        %2422 = vmatpush1.msra.mxu0 %v1115
        %2423 = vmatprep.subr.mxu0 %v1113
        %2424 = vmatpush1.msra.mxu0 %v1112
        %2425 = vmatprep.subr.mxu0 %v1110
        %2426 = vmatpush1.msra.mxu0 %v1109
        %2427 = vmatprep.subr.mxu0 %v1107
        %2428 = vmatpush1.msra.mxu0 %v1106
        %2429 = vmatprep.subr.mxu0 %v1104
        %2430 = vmatpush1.msra.mxu0 %v1103
        %2431 = vmatprep.subr.mxu0 %v1101
        %2432 = vmatpush1.msra.mxu0 %v1100
        %2433 = vmatprep.subr.mxu0 0.0
        %2434 = vmatpush2.msra.mxu0 0.0
        %2435 = vmatprep.subr.mxu0 0.0
        %2436 = vmatpush2.msra.mxu0 0.0
        %2437 = vmatprep.subr.mxu0 0.0
        %2438 = vmatpush2.msra.mxu0 0.0
        %2439 = vmatprep.subr.mxu0 0.0
        %2440 = vmatpush2.msra.mxu0 0.0
        %2441 = vmatprep.subr.mxu0 0.0
        %2442 = vmatpush2.msra.mxu0 0.0
        %2443 = vmatprep.subr.mxu0 0.0
        %2444 = vmatpush2.msra.mxu0 0.0
        %2445 = vmatprep.subr.mxu0 0.0
        %2446 = vmatpush2.msra.mxu0 0.0
        %2447 = vmatprep.subr.mxu0 0.0
        %2448 = vmatpush2.msra.mxu0 0.0
        %2449 = vmatprep.subr.mxu0 0.0
        %2450 = vmatpush2.msra.mxu0 0.0
        %2451 = vmatprep.subr.mxu0 0.0
        %2452 = vmatpush2.msra.mxu0 0.0
        %2453 = vmatprep.subr.mxu0 0.0
        %2454 = vmatpush2.msra.mxu0 0.0
        %2455 = vmatprep.subr.mxu0 0.0
        %2456 = vmatpush2.msra.mxu0 0.0
        %2457 = vmatprep.subr.mxu0 0.0
        %2458 = vmatpush2.msra.mxu0 0.0
        %2459 = vmatprep.subr.mxu0 0.0
        %2460 = vmatpush2.msra.mxu0 0.0
        %2461 = vmatprep.subr.mxu0 0.0
        %2462 = vmatpush2.msra.mxu0 0.0
        %2463 = vmatprep.subr.mxu0 0.0
        %2464 = vmatpush2.msra.mxu0 0.0
        %2465 = vmatprep.mubr.f32.mxu0 0.0
        %2466 = vmatmul.mubr.f32.gmra.mxu0 %v2247
        %v2467 = vpop.f32.mrf.mxu0
        %v2468 = vadd.f32 0.0, %v2467
        %v2469 = vpop.f32.mrf.mxu0
        %v2470 = vadd.f32 0.0, %v2469
        %2471 = vdwg.mxu0
        %2472 = vmatprep.subr.mxu0 0.0
        %2473 = vmatpush1.msra.mxu0 %v1147
        %2474 = vmatprep.subr.mxu0 0.0
        %2475 = vmatpush1.msra.mxu0 %v1144
        %2476 = vmatprep.subr.mxu0 0.0
        %2477 = vmatpush1.msra.mxu0 %v1141
        %2478 = vmatprep.subr.mxu0 0.0
        %2479 = vmatpush1.msra.mxu0 %v1138
        %2480 = vmatprep.subr.mxu0 0.0
        %2481 = vmatpush1.msra.mxu0 %v1135
        %2482 = vmatprep.subr.mxu0 0.0
        %2483 = vmatpush1.msra.mxu0 %v1132
        %2484 = vmatprep.subr.mxu0 0.0
        %2485 = vmatpush1.msra.mxu0 %v1129
        %2486 = vmatprep.subr.mxu0 0.0
        %2487 = vmatpush1.msra.mxu0 %v1126
        %2488 = vmatprep.subr.mxu0 0.0
        %2489 = vmatpush1.msra.mxu0 %v1123
        %2490 = vmatprep.subr.mxu0 0.0
        %2491 = vmatpush1.msra.mxu0 %v1120
        %2492 = vmatprep.subr.mxu0 0.0
        %2493 = vmatpush1.msra.mxu0 %v1117
        %2494 = vmatprep.subr.mxu0 0.0
        %2495 = vmatpush1.msra.mxu0 %v1114
        %2496 = vmatprep.subr.mxu0 0.0
        %2497 = vmatpush1.msra.mxu0 %v1111
        %2498 = vmatprep.subr.mxu0 0.0
        %2499 = vmatpush1.msra.mxu0 %v1108
        %2500 = vmatprep.subr.mxu0 0.0
        %2501 = vmatpush1.msra.mxu0 %v1105
        %2502 = vmatprep.subr.mxu0 0.0
        %2503 = vmatpush1.msra.mxu0 %v1102
        %2504 = vmatprep.subr.mxu0 0.0
        %2505 = vmatpush2.msra.mxu0 0.0
        %2506 = vmatprep.subr.mxu0 0.0
        %2507 = vmatpush2.msra.mxu0 0.0
        %2508 = vmatprep.subr.mxu0 0.0
        %2509 = vmatpush2.msra.mxu0 0.0
        %2510 = vmatprep.subr.mxu0 0.0
        %2511 = vmatpush2.msra.mxu0 0.0
        %2512 = vmatprep.subr.mxu0 0.0
        %2513 = vmatpush2.msra.mxu0 0.0
        %2514 = vmatprep.subr.mxu0 0.0
        %2515 = vmatpush2.msra.mxu0 0.0
        %2516 = vmatprep.subr.mxu0 0.0
        %2517 = vmatpush2.msra.mxu0 0.0
        %2518 = vmatprep.subr.mxu0 0.0
        %2519 = vmatpush2.msra.mxu0 0.0
        %2520 = vmatprep.subr.mxu0 0.0
        %2521 = vmatpush2.msra.mxu0 0.0
        %2522 = vmatprep.subr.mxu0 0.0
        %2523 = vmatpush2.msra.mxu0 0.0
        %2524 = vmatprep.subr.mxu0 0.0
        %2525 = vmatpush2.msra.mxu0 0.0
        %2526 = vmatprep.subr.mxu0 0.0
        %2527 = vmatpush2.msra.mxu0 0.0
        %2528 = vmatprep.subr.mxu0 0.0
        %2529 = vmatpush2.msra.mxu0 0.0
        %2530 = vmatprep.subr.mxu0 0.0
        %2531 = vmatpush2.msra.mxu0 0.0
        %2532 = vmatprep.subr.mxu0 0.0
        %2533 = vmatpush2.msra.mxu0 0.0
        %2534 = vmatprep.subr.mxu0 0.0
        %2535 = vmatpush2.msra.mxu0 0.0
        %2536 = vmatprep.mubr.f32.mxu0 0.0
        %2537 = vmatmul.mubr.f32.gmra.mxu0 %v2247
        %v2538 = vpop.f32.mrf.mxu0
        %v2539 = vadd.f32 0.0, %v2538
        %v2540 = vpop.f32.mrf.mxu0
        %2541 = vdwg.mxu0
        %v2542 = vadd.f32 %v2252, %v2327
        %v2543 = vxor.u32 %v2542, 2147483648
        %v2544 = vmul.f32 %v2543, 1.442695
        %v2545 = vpow.pop %v2544
        %v2546 = vadd.f32 %v2545, 1.0
        %v2547 = vrcp.pop %v2546
        %v2548 = vmul.f32 1.0, %v2547
        %v2549 = vadd.f32 %v2253, %v2329
        %v2550 = vxor.u32 %v2549, 2147483648
        %v2551 = vmul.f32 %v2550, 1.442695
        %v2552 = vpow.pop %v2551
        %v2553 = vadd.f32 %v2552, 1.0
        %v2554 = vrcp.pop %v2553
        %v2555 = vmul.f32 1.0, %v2554
        %v2556 = vadd.f32 %v2398, %v1467
        %v2557 = vmul.f32 %v2548, %v2556
        %v2558 = vadd.f32 %v2254, %v2557
        %v2559 = vtanh.pop %v2558
        %v2560 = vsub.f32 1.0, %v2555
        %v2561 = vmul.f32 %v2560, %v2559
        %v2562 = vmul.f32 %v2555, %v2246
        %v2563 = vadd.f32 %v2561, %v2562
        %v2564 = vadd.f32 %v2257, %v2468
        %v2565 = vxor.u32 %v2564, 2147483648
        %v2566 = vmul.f32 %v2565, 1.442695
        %v2567 = vpow.pop %v2566
        %v2568 = vadd.f32 %v2567, 1.0
        %v2569 = vrcp.pop %v2568
        %v2570 = vmul.f32 1.0, %v2569
        %v2571 = vadd.f32 %v2258, %v2470
        %v2572 = vxor.u32 %v2571, 2147483648
        %v2573 = vmul.f32 %v2572, 1.442695
        %v2574 = vpow.pop %v2573
        %v2575 = vadd.f32 %v2574, 1.0
        %v2576 = vrcp.pop %v2575
        %v2577 = vmul.f32 1.0, %v2576
        %v2578 = vadd.f32 %v2539, %v1495
        %v2579 = vmul.f32 %v2570, %v2578
        %v2580 = vadd.f32 %v2259, %v2579
        %v2581 = vtanh.pop %v2580
        %v2582 = vsub.f32 1.0, %v2577
        %v2583 = vmul.f32 %v2582, %v2581
        %v2584 = vmul.f32 %v2577, %v2247
        %v2585 = vadd.f32 %v2583, %v2584
        %v2586 = vstv %s2248
        %vm2587 = vcmp.lt.s32.totalorder %v2586, %v1050
        %v2588 = vstv %s2249
        %vm2589 = vcmp.lt.s32.totalorder %v2588, %v1050
        %v2590 = vsel %vm2587, 1, 0
        %2591 = vset.pattern.permute.xlu0 0
        %2592 = vperm.xlu0 %2591, %v2590
        %v2593 = vpop.permute.xlu0 %2592
        %vm2594 = vcmp.eq.s32.totalorder %v2593, 1
        %v2595 = vsel %vm2594, %v2563, 0.0
        %s2596 = scalar_lea.vmem %s510, 24 [#allocation14]
        %2597 = vst [vmem:[%s2596] sm:$0xff] %v2595
        %v2598 = vsel %vm2589, 1, 0
        %2599 = vset.pattern.permute.xlu0 0
        %2600 = vperm.xlu0 %2599, %v2598
        %v2601 = vpop.permute.xlu0 %2600
        %vm2602 = vcmp.eq.s32.totalorder %v2601, 1
        %v2603 = vsel %vm2602, %v2585, 0.0
        %2604 = vst [vmem:[%s517] sm:$0xff] %v2603
        %v2605 = vsel %vm2594, %v2563, %v2246
        %v2606 = vsel %vm2602, %v2585, %v2247
        %2607 = vst [vmem:[#allocation2] sm:$0xff] %v2605
        %2608 = vst [vmem:[#allocation2 + $0x8] sm:$0xff] %v2606
        %2609 = vst [vmem:[#allocation17] sm:$0xff] %v2605
        %s2610 = scalar_lea.vmem [#allocation17], 8
        %2611 = vst [vmem:[%s2610] sm:$0xff] %v2606
        %s2612 = sand.u32 %s251, 1
        %s2613 = scalar_lea.sflag [#allocation7], %s2612
        %s2614 = sand.u32 %s251, 1
        %s2615 = smul.addr %s2614, 32
        %s2616 = scalar_lea.vmem [#allocation14], %s2615
        %s2617 = sand.u32 %s35, 1
        %s2618 = scalar_lea.sflag [#allocation16], %s2617
        %s2619 = sand.u32 %s281, 1
        %s2620 = smul.addr %s2619, 32
        %s2621 = scalar_lea.vmem [#allocation15], %s2620
        // Predicated region
        $region77: #{tpu_custom_call.1} parent=51 // pred_check
          %p2622 = pneg %p261
        $region78: #{tpu_custom_call.1} parent=51 // pred_check_branch
          %2624 = sbr.rel (%p2622) target = $region80
        $region79: #{tpu_custom_call.1} parent=51 // pred_region
          %s2625 = smul.u32 4, %s40
          %s2627 = ssub.s32 512, 512
          %2628 = vsyncadd %s2613, %s2627
          %s2629 = sadd.s32 %s39, %s2625
          %s2630 = smul.addr %s2629, 128
          %s2631 = scalar_lea.hbm %s8, %s2630
          %s2632 = sshll.u32 %s2616, 4
          %s2633 = int_to_ptr.vmem [resolvable:$true] %s2632
          %2638 = dma.vmem_to_hbm [thread:$0]  %s2633, 512, %s2631, %s2613, 128, 128, 8
        $region80: #{tpu_custom_call.1} parent=51 // pred_fallthru
          _
        // Predicated region
        $region81: #{tpu_custom_call.1} parent=51 // pred_check
          %p2639 = pneg %p291
        $region82: #{tpu_custom_call.1} parent=51 // pred_check_branch
          %2641 = sbr.rel (%p2639) target = $region84
        $region83: #{tpu_custom_call.1} parent=51 // pred_region
          %s2642 = ssub.s32 2, %s40
          %s2643 = smul.u32 4, %s2642
          %s2645 = ssub.s32 512, 512
          %2646 = vsyncadd %s2618, %s2645
          %s2647 = sadd.s32 %s39, %s2643
          %s2648 = smul.addr %s2647, 128
          %s2649 = scalar_lea.hbm %s9, %s2648
          %s2650 = sshll.u32 %s2621, 4
          %s2651 = int_to_ptr.vmem [resolvable:$true] %s2650
          %2656 = dma.vmem_to_hbm [thread:$0]  %s2651, 512, %s2649, %s2618, 128, 128, 8
        $region84: #{tpu_custom_call.1} parent=51 // pred_fallthru
          _
        // Predicated region
        $region85: #{tpu_custom_call.1} parent=51 // pred_check
          %p2657 = pneg %p317
        $region86: #{tpu_custom_call.1} parent=51 // pred_check_branch
          %2659 = sbr.rel (%p2657) target = $region88
        $region87: #{tpu_custom_call.1} parent=51 // pred_region
          %s2661 = ssub.s32 256, 256
          %2662 = vsyncadd [#allocation16], %s2661
          %s2663 = smul.addr %s39, 128
          %s2664 = scalar_lea.hbm %s10, %s2663
          %s2665 = sshll.u32 [#allocation17], 4
          %s2666 = int_to_ptr.vmem [resolvable:$true] %s2665
          %2671 = dma.vmem_to_hbm [thread:$0]  %s2666, 256, %s2664, [#allocation16], 128, 128, 8
        $region88: #{tpu_custom_call.1} parent=51 // pred_fallthru
          _
        // Predicated region
        $region89: #{tpu_custom_call.1} parent=51 // pred_check
          %p2672 = pneg %p317
        $region90: #{tpu_custom_call.1} parent=51 // pred_check_branch
          %2674 = sbr.rel (%p2672) target = $region92
        $region91: #{tpu_custom_call.1} parent=51 // pred_region
          %2675 = dma.done [#allocation16], 256
        $region92: #{tpu_custom_call.1} parent=51 // pred_fallthru
          _
      $region52: #{tpu_custom_call.1} parent=5 // pred_fallthru
        _
      %p2676 = scmp.le.s32.totalorder 2, %s30
      // Predicated region
      $region93: #{tpu_custom_call.1} parent=5 // pred_check
        %p2677 = pneg %p2676
      $region94: #{tpu_custom_call.1} parent=5 // pred_check_branch
        %2679 = sbr.rel (%p2677) target = $region96
      $region95: #{tpu_custom_call.1} parent=5 // pred_region
        %s2680 = ssub.s32 %s30, 2
        // Predicated region
        $region97: #{tpu_custom_call.1} parent=95 // pred_check
          %p2681 = pneg %p267
        $region98: #{tpu_custom_call.1} parent=95 // pred_check_branch
          %2683 = sbr.rel (%p2681) target = $region100
        $region99: #{tpu_custom_call.1} parent=95 // pred_region
          %s2684 = sand.u32 %s252, 1
          %s2685 = scalar_lea.sflag [#allocation7], %s2684
          %s2686 = sand.u32 %s252, 1
          %s2687 = smul.addr %s2686, 32
          %s2688 = scalar_lea.vmem [#allocation14], %s2687
          %2689 = dma.done %s2685, 512
        $region100: #{tpu_custom_call.1} parent=95 // pred_fallthru
          _
        // Predicated region
        $region101: #{tpu_custom_call.1} parent=95 // pred_check
          %p2690 = pneg %p297
        $region102: #{tpu_custom_call.1} parent=95 // pred_check_branch
          %2692 = sbr.rel (%p2690) target = $region104
        $region103: #{tpu_custom_call.1} parent=95 // pred_region
          %s2693 = sand.u32 %s36, 1
          %s2694 = scalar_lea.sflag [#allocation16], %s2693
          %s2695 = sand.u32 %s282, 1
          %s2696 = smul.addr %s2695, 32
          %s2697 = scalar_lea.vmem [#allocation15], %s2696
          %2698 = dma.done %s2694, 512
        $region104: #{tpu_custom_call.1} parent=95 // pred_fallthru
          _
      $region96: #{tpu_custom_call.1} parent=5 // pred_fallthru
        _
    $region6: #{tpu_custom_call.1} parent=1 // loop_footer
      %s34 = sadd.s32 1, %s30
    $region7: #{tpu_custom_call.1} parent=1 // loop_footer_branch
      %29 = sbr.rel target = $region3
    $region8: #{tpu_custom_call.1} parent=1 // loop_exit
      _
    %2699 = vsyncpa [#allocation6], 1
    %s2700 = scalar_lea.sflag [#allocation6], 1
    %2701 = vsyncpa %s2700, 1
    %2702 = vsyncpa [#allocation9], 1
    %s2703 = scalar_lea.sflag [#allocation9], 1
    %2704 = vsyncpa %s2703, 1
    %2705 = vsyncpa [#allocation12], 1
    %2706 = vsyncpa [#allocation7], 1
    %s2707 = scalar_lea.sflag [#allocation7], 1
    %2708 = vsyncpa %s2707, 1
    %2709 = vsyncpa [#allocation16], 1
    %s2710 = scalar_lea.sflag [#allocation16], 1
    %2711 = vsyncpa %s2710, 1

</llo_original>
